<compile_context>
chip_gen: v7x
topology: tpu7x:2x2x1
jax: 0.10.0
libtpu: 0.0.40
codegen_flags: <defaults>
</compile_context>

<pallas_src>
import functools
import math

import jax
import jax.numpy as jnp
from jax.experimental import pallas as pl
from jax.experimental.pallas import tpu as pltpu


def _layernorm(x, w, b, eps=1e-5):
    mu = jnp.mean(x, axis=-1, keepdims=True)
    var = jnp.mean((x - mu) ** 2, axis=-1, keepdims=True)
    return (x - mu) * jax.lax.rsqrt(var + eps) * w + b


def _encoder_cls_kernel(x_ref, vec_ref, ws_ref, wv_ref, wo_ref, w1_ref, w2_ref, fc_ref,
                        out_ref, *, Bt, HW, nh, hd, C):
    f32 = jnp.float32
    R = Bt * HW

    # ---- constant-vector slab (single DMA); static slices are cheap views ----
    b_s = vec_ref[0:1, 0:nh]       # folded score-projection bias (per head)
    s_c = vec_ref[1:2, 0:nh]       # cls-query . cls-key score (constant)
    bv = vec_ref[2:3, 0:C]         # value bias
    v_c = vec_ref[3:4, 0:C]        # cls value (constant)
    res1b = vec_ref[4:5, 0:C]      # cls_token + attention out-proj bias
    ln1_w = vec_ref[5:6, 0:C]
    ln1_b = vec_ref[6:7, 0:C]
    b2 = vec_ref[7:8, 0:C]         # FFN second bias
    ln2_w = vec_ref[8:9, 0:C]
    ln2_b = vec_ref[9:10, 0:C]

    # ---- (Bt, C, HW) -> (Bt*HW, C) patch tokens: minor-dim transpose in-kernel (XLU),
    #      replacing the old separate HBM transpose pass in the wrapper. ----
    if Bt == 1:
        flat = jnp.transpose(x_ref[0], (1, 0))                               # (HW, C)
    else:
        flat = jnp.transpose(x_ref[...], (0, 2, 1)).reshape(R, C)            # (R, C)

    # ---- cls-query scores (query folded host-side into ws/b_s) and V projection ----
    s = jnp.dot(flat, ws_ref[...], preferred_element_type=f32) + b_s         # (R, nh)
    v = jnp.dot(flat, wv_ref[...], preferred_element_type=f32) + bv          # (R, C)

    # ---- numerically stable softmax over {cls} U patch tokens.  The max is taken
    #      over the whole tile (exact by shift invariance within each group). ----
    m = jnp.maximum(jnp.max(s, axis=0, keepdims=True), s_c)                  # (1, nh)
    e = jnp.exp(s - m)                                                       # (R, nh)
    e_c = jnp.exp(s_c - m)                                                   # (1, nh)

    # batch-membership (Bt, R) and head->channel (nh, C) one-hots built from iota
    # in-kernel (no constant DMA, no integer division); keeps every op 2D.
    r_idx = jax.lax.broadcasted_iota(jnp.int32, (Bt, R), 1)
    b_lo = jax.lax.broadcasted_iota(jnp.int32, (Bt, R), 0) * HW
    sel = ((r_idx >= b_lo) & (r_idx < b_lo + HW)).astype(f32)                # (Bt, R)
    c_idx = jax.lax.broadcasted_iota(jnp.int32, (nh, C), 1)
    h_lo = jax.lax.broadcasted_iota(jnp.int32, (nh, C), 0) * hd
    gt = ((c_idx >= h_lo) & (c_idx < h_lo + hd)).astype(f32)                 # (nh, C)

    denom = jnp.dot(sel, e, preferred_element_type=f32) + e_c                # (Bt, nh)
    inv = pl.reciprocal(denom, approx=False)                                 # exact; EUP cost ~0

    # attention output of the cls query: expand head weights to channels via gt,
    # weight V, reduce per batch element via the membership matmul, then normalize.
    ev = jnp.dot(e, gt, preferred_element_type=f32) * v                      # (R, C)
    o = jnp.dot(sel, ev, preferred_element_type=f32)                         # (Bt, C)
    o = o + jnp.dot(e_c, gt, preferred_element_type=f32) * v_c               # cls key/value term
    o = o * jnp.dot(inv, gt, preferred_element_type=f32)                     # per-(b, head) normalize

    # ---- post-LN encoder tail + classifier, cls row only (dropout = identity) ----
    z1 = jnp.dot(o, wo_ref[...], preferred_element_type=f32) + res1b         # cls + attn output
    h1 = _layernorm(z1, ln1_w, ln1_b)
    ff = jnp.maximum(
        jnp.dot(h1, w1_ref[0:C, :], preferred_element_type=f32) + w1_ref[C:C + 1, :], 0.0)
    ff = jnp.dot(ff, w2_ref[...], preferred_element_type=f32) + b2
    h2 = _layernorm(h1 + ff, ln2_w, ln2_b)

    logits = jnp.dot(h2, fc_ref[0:C, :], preferred_element_type=f32) + fc_ref[C:C + 1, :]
    out_ref[...] = logits.astype(out_ref.dtype)


def transformer_pool_cls(x, params, num_heads):
    """x: (B, C, H, W) float32. Returns (B, num_classes)."""
    B, C, H, W = x.shape
    HW = H * W
    nh = num_heads
    hd = C // nh
    f32 = jnp.float32
    scale = 1.0 / math.sqrt(hd)

    # ---- batch tiling: ~64-element tiles for large B (amortizes per-step overhead);
    #      always >= 2 grid steps when B > 1 so both v7x TensorCores get work. ----
    G = 1 if B == 1 else max(2, -(-B // 64))
    Bt = -(-B // G)
    B_pad = G * Bt

    # (B, C, H, W) -> (B_pad, C, HW).  Merging H,W is a free view; the per-batch
    # (C, HW) -> (HW, C) transpose happens inside the kernel (no HBM round trip).
    x3 = x.reshape(B, C, HW)
    if B_pad != B:
        x3 = jnp.pad(x3, ((0, B_pad - B), (0, 0), (0, 0)))

    # ---- fold the constant cls-token query path host-side ----
    cls_vec = params["cls_token"].reshape(1, C).astype(f32)
    q = (cls_vec @ params["wq"] + params["bq"]) * scale                      # (1, C) scaled cls query
    head_1h = (jnp.arange(C)[:, None] // hd == jnp.arange(nh)[None, :]).astype(f32)
    qmask = q.reshape(C, 1) * head_1h                                        # (C, nh)
    w_s = params["wk"] @ qmask                                               # (C, nh): flat@w_s = per-head q.k
    b_s = params["bk"].reshape(1, C) @ qmask                                 # (1, nh)
    s_c = cls_vec @ w_s + b_s                                                # (1, nh): cls-vs-cls score
    v_c = cls_vec @ params["wv"] + params["bv"]                              # (1, C): cls value
    res1b = cls_vec + params["bo"]                                           # (1, C): cls + out-proj bias

    # ---- classifier padded to a lane-dense 128-wide output (sliced back below) ----
    NC = params["fc_w"].shape[1]
    Np = ((NC + 127) // 128) * 128

    # ---- all 1-row constants in one slab; biases appended as extra weight rows:
    #      8 kernel inputs total instead of 21 (shorter DMA prologue). ----
    VW = ((max(C, nh) + 127) // 128) * 128

    def row(v):
        v = v.reshape(1, -1).astype(f32)
        return jnp.pad(v, ((0, 0), (0, VW - v.shape[1])))

    vecs = jnp.concatenate(
        [row(b_s), row(s_c), row(params["bv"]), row(v_c), row(res1b),
         row(params["ln1_w"]), row(params["ln1_b"]), row(params["b2"]),
         row(params["ln2_w"]), row(params["ln2_b"])], axis=0)                # (10, VW)
    w1b = jnp.concatenate([params["w1"], params["b1"].reshape(1, -1)], axis=0)        # (C+1, F)
    fc_wb = jnp.concatenate([params["fc_w"], params["fc_b"].reshape(1, -1)], axis=0)  # (C+1, NC)
    fc_wb = jnp.pad(fc_wb, ((0, 0), (0, Np - NC)))                                    # (C+1, Np)

    weights = [vecs, w_s.astype(f32), params["wv"].astype(f32), params["wo"].astype(f32),
               w1b.astype(f32), params["w2"].astype(f32), fc_wb.astype(f32)]

    kernel = functools.partial(_encoder_cls_kernel, Bt=Bt, HW=HW, nh=nh, hd=hd, C=C)

    out = pl.pallas_call(
        kernel,
        out_shape=jax.ShapeDtypeStruct((G, Bt, Np), x.dtype),
        grid_spec=pltpu.PrefetchScalarGridSpec(
            num_scalar_prefetch=0,
            grid=(G,),
            in_specs=[pl.BlockSpec((Bt, C, HW), lambda b: (b, 0, 0))]
                     + [pl.BlockSpec(w.shape, lambda b: (0, 0)) for w in weights],
            # 3-D output so the block's last two dims equal the full dims (Bt can be
            # any size) and the store stays lane-dense (width 128).
            out_specs=pl.BlockSpec((None, Bt, Np), lambda b: (b, 0, 0)),
        ),
        compiler_params=pltpu.CompilerParams(dimension_semantics=("parallel",)),
    )(x3, *weights)
    return out.reshape(B_pad, Np)[:B, :NC]


def init_params(key, in_channels, num_classes, dim_ff=2048):
    C = in_channels
    keys = jax.random.split(key, 12)

    def nrm(k, shape, s):
        return jax.random.normal(k, shape, jnp.float32) * s

    return dict(
        cls_token=nrm(keys[0], (1, 1, C), 1.0),
        wq=nrm(keys[1], (C, C), 1.0 / math.sqrt(C)),
        wk=nrm(keys[2], (C, C), 1.0 / math.sqrt(C)),
        wv=nrm(keys[3], (C, C), 1.0 / math.sqrt(C)),
        bq=nrm(keys[4], (1, C), 0.02),
        bk=nrm(keys[5], (1, C), 0.02),
        bv=nrm(keys[6], (1, C), 0.02),
        wo=nrm(keys[7], (C, C), 1.0 / math.sqrt(C)),
        bo=jnp.zeros((1, C), jnp.float32),
        ln1_w=jnp.ones((1, C), jnp.float32),
        ln1_b=jnp.zeros((1, C), jnp.float32),
        w1=nrm(keys[8], (C, dim_ff), 1.0 / math.sqrt(C)),
        b1=nrm(keys[9], (1, dim_ff), 0.02),
        w2=nrm(keys[10], (dim_ff, C), 1.0 / math.sqrt(dim_ff)),
        b2=jnp.zeros((1, C), jnp.float32),
        ln2_w=jnp.ones((1, C), jnp.float32),
        ln2_b=jnp.zeros((1, C), jnp.float32),
        fc_w=nrm(keys[11], (C, num_classes), 1.0 / math.sqrt(C)),
        fc_b=jnp.zeros((1, num_classes), jnp.float32),
    )


def reference(x, params, num_heads):
    """Pure-JAX reference of the PyTorch forward (eval mode), full encoder."""
    B, C, H, W = x.shape
    tokens = x.reshape(B, C, H * W).transpose(0, 2, 1)
    cls = jnp.broadcast_to(params["cls_token"], (B, 1, C))
    t = jnp.concatenate([cls, tokens], axis=1)           # (B, S, C)
    hd = C // num_heads

    q = t @ params["wq"] + params["bq"]
    k = t @ params["wk"] + params["bk"]
    v = t @ params["wv"] + params["bv"]

    def split(a):
        return a.reshape(B, -1, num_heads, hd).transpose(0, 2, 1, 3)

    qh, kh, vh = split(q), split(k), split(v)
    sc = jnp.einsum("bhqd,bhkd->bhqk", qh, kh) / math.sqrt(hd)
    p = jax.nn.softmax(sc, axis=-1)
    o = jnp.einsum("bhqk,bhkd->bhqd", p, vh).transpose(0, 2, 1, 3).reshape(B, -1, C)
    attn = o @ params["wo"] + params["bo"]

    def ln(a, w, b):
        mu = a.mean(-1, keepdims=True)
        var = ((a - mu) ** 2).mean(-1, keepdims=True)
        return (a - mu) / jnp.sqrt(var + 1e-5) * w + b

    h1 = ln(t + attn, params["ln1_w"], params["ln1_b"])
    ff = jax.nn.relu(h1 @ params["w1"] + params["b1"]) @ params["w2"] + params["b2"]
    h2 = ln(h1 + ff, params["ln2_w"], params["ln2_b"])
    return h2[:, 0] @ params["fc_w"] + params["fc_b"]


if __name__ == "__main__":
    B, C, H, W = 2, 32, 8, 8         # in_channels=32 (divisible by num_heads=8)
    num_heads = 8
    num_classes = 10

    key = jax.random.PRNGKey(0)
    kx, kp = jax.random.split(key)
    x = jax.random.normal(kx, (B, C, H, W), jnp.float32)
    params = init_params(kp, C, num_classes)

    # One jit so the (tiny) host-side constant folding fuses with the pallas_call.
    fwd = jax.jit(functools.partial(transformer_pool_cls, num_heads=num_heads))
    out = jax.block_until_ready(fwd(x, params))

    ref = reference(x, params, num_heads)
    assert out.shape == (B, num_classes)
    assert jnp.allclose(out, ref, atol=2e-3, rtol=2e-3), (out, ref)

    print("KERNEL_OK")
</pallas_src>

<mosaic_0001>
module attributes {stable_mosaic.version = 11 : i64} {
  func.func @_encoder_cls_kernel(%arg0: i32, %arg1: memref<1x32x64xf32, #tpu.memory_space<vmem>>, %arg2: memref<10x128xf32, #tpu.memory_space<vmem>>, %arg3: memref<32x8xf32, #tpu.memory_space<vmem>>, %arg4: memref<32x32xf32, #tpu.memory_space<vmem>>, %arg5: memref<32x32xf32, #tpu.memory_space<vmem>>, %arg6: memref<33x2048xf32, #tpu.memory_space<vmem>>, %arg7: memref<2048x32xf32, #tpu.memory_space<vmem>>, %arg8: memref<33x128xf32, #tpu.memory_space<vmem>>, %arg9: memref<1x1x128xf32, #tpu.memory_space<vmem>>) attributes {dimension_semantics = [#tpu.dimension_semantics<parallel>], iteration_bounds = array<i64: 2>, scalar_prefetch = 0 : i64, scratch_operands = 0 : i64, tpu.core_type = #tpu.core_type<tc>, window_params = [{transform_indices = @transform_0, window_bounds = array<i64: 1, 32, 64>}, {pipeline_mode = #tpu.pipeline_mode<synchronous>, transform_indices = @transform_1, window_bounds = array<i64: 10, 128>}, {pipeline_mode = #tpu.pipeline_mode<synchronous>, transform_indices = @transform_2, window_bounds = array<i64: 32, 8>}, {pipeline_mode = #tpu.pipeline_mode<synchronous>, transform_indices = @transform_3, window_bounds = array<i64: 32, 32>}, {pipeline_mode = #tpu.pipeline_mode<synchronous>, transform_indices = @transform_4, window_bounds = array<i64: 32, 32>}, {pipeline_mode = #tpu.pipeline_mode<synchronous>, transform_indices = @transform_5, window_bounds = array<i64: 33, 2048>}, {pipeline_mode = #tpu.pipeline_mode<synchronous>, transform_indices = @transform_6, window_bounds = array<i64: 2048, 32>}, {pipeline_mode = #tpu.pipeline_mode<synchronous>, transform_indices = @transform_7, window_bounds = array<i64: 33, 128>}, {transform_indices = @transform_8, window_bounds = array<i64: 1, 1, 128>}]} {
    %c0 = arith.constant 0 : index
    %c0_0 = arith.constant 0 : index
    %0 = vector.load %arg2[%c0, %c0_0] : memref<10x128xf32, #tpu.memory_space<vmem>>, vector<1x8xf32>
    %c1 = arith.constant 1 : index
    %c0_1 = arith.constant 0 : index
    %1 = vector.load %arg2[%c1, %c0_1] : memref<10x128xf32, #tpu.memory_space<vmem>>, vector<1x8xf32>
    %c2 = arith.constant 2 : index
    %c0_2 = arith.constant 0 : index
    %2 = vector.load %arg2[%c2, %c0_2] : memref<10x128xf32, #tpu.memory_space<vmem>>, vector<1x32xf32>
    %c3 = arith.constant 3 : index
    %c0_3 = arith.constant 0 : index
    %3 = vector.load %arg2[%c3, %c0_3] : memref<10x128xf32, #tpu.memory_space<vmem>>, vector<1x32xf32>
    %c4 = arith.constant 4 : index
    %c0_4 = arith.constant 0 : index
    %4 = vector.load %arg2[%c4, %c0_4] : memref<10x128xf32, #tpu.memory_space<vmem>>, vector<1x32xf32>
    %c5 = arith.constant 5 : index
    %c0_5 = arith.constant 0 : index
    %5 = vector.load %arg2[%c5, %c0_5] : memref<10x128xf32, #tpu.memory_space<vmem>>, vector<1x32xf32>
    %c6 = arith.constant 6 : index
    %c0_6 = arith.constant 0 : index
    %6 = vector.load %arg2[%c6, %c0_6] : memref<10x128xf32, #tpu.memory_space<vmem>>, vector<1x32xf32>
    %c7 = arith.constant 7 : index
    %c0_7 = arith.constant 0 : index
    %7 = vector.load %arg2[%c7, %c0_7] : memref<10x128xf32, #tpu.memory_space<vmem>>, vector<1x32xf32>
    %c8 = arith.constant 8 : index
    %c0_8 = arith.constant 0 : index
    %8 = vector.load %arg2[%c8, %c0_8] : memref<10x128xf32, #tpu.memory_space<vmem>>, vector<1x32xf32>
    %c9 = arith.constant 9 : index
    %c0_9 = arith.constant 0 : index
    %9 = vector.load %arg2[%c9, %c0_9] : memref<10x128xf32, #tpu.memory_space<vmem>>, vector<1x32xf32>
    %c0_10 = arith.constant 0 : index
    %c0_11 = arith.constant 0 : index
    %c0_12 = arith.constant 0 : index
    %10 = vector.load %arg1[%c0_10, %c0_11, %c0_12] : memref<1x32x64xf32, #tpu.memory_space<vmem>>, vector<1x32x64xf32>
    %11 = vector.shape_cast %10 : vector<1x32x64xf32> to vector<32x64xf32>
    %12 = tpu.transpose %11, [1, 0] : vector<32x64xf32> -> vector<64x32xf32>
    %c0_13 = arith.constant 0 : index
    %c0_14 = arith.constant 0 : index
    %13 = vector.load %arg3[%c0_13, %c0_14] : memref<32x8xf32, #tpu.memory_space<vmem>>, vector<32x8xf32>
    %cst = arith.constant dense<0.000000e+00> : vector<64x8xf32>
    %14 = tpu.matmul %12, %13, %cst {dimension_numbers = #tpu.dot_dimension_numbers<[1], [0], [0], [1], [0, 0, 1, 1], [], []>} : vector<64x32xf32>, vector<32x8xf32>, vector<64x8xf32> -> vector<64x8xf32>
    %15 = vector.broadcast %0 : vector<1x8xf32> to vector<64x8xf32>
    %16 = arith.addf %14, %15 : vector<64x8xf32>
    %c0_15 = arith.constant 0 : index
    %c0_16 = arith.constant 0 : index
    %17 = vector.load %arg4[%c0_15, %c0_16] : memref<32x32xf32, #tpu.memory_space<vmem>>, vector<32x32xf32>
    %cst_17 = arith.constant dense<0.000000e+00> : vector<64x32xf32>
    %18 = tpu.matmul %12, %17, %cst_17 {dimension_numbers = #tpu.dot_dimension_numbers<[1], [0], [0], [1], [0, 0, 1, 1], [], []>} : vector<64x32xf32>, vector<32x32xf32>, vector<64x32xf32> -> vector<64x32xf32>
    %19 = vector.broadcast %2 : vector<1x32xf32> to vector<64x32xf32>
    %20 = arith.addf %18, %19 : vector<64x32xf32>
    %cst_18 = arith.constant dense<0xFF800000> : vector<8xf32>
    %21 = vector.multi_reduction <maximumf>, %16, %cst_18 [0] : vector<64x8xf32> to vector<8xf32>
    %22 = vector.shape_cast %21 : vector<8xf32> to vector<1x8xf32>
    %23 = arith.maximumf %22, %1 : vector<1x8xf32>
    %24 = vector.broadcast %23 : vector<1x8xf32> to vector<64x8xf32>
    %25 = arith.subf %16, %24 : vector<64x8xf32>
    %26 = math.exp %25 : vector<64x8xf32>
    %27 = arith.subf %1, %23 : vector<1x8xf32>
    %28 = math.exp %27 : vector<1x8xf32>
    %29 = tpu.iota {dimensions = array<i32: 1>} : vector<1x64xi32>
    %30 = tpu.iota {dimensions = array<i32: 0>} : vector<1x64xi32>
    %c64_i32 = arith.constant 64 : i32
    %31 = vector.broadcast %c64_i32 : i32 to vector<1x64xi32>
    %32 = arith.muli %30, %31 : vector<1x64xi32>
    %33 = arith.cmpi sge, %29, %32 : vector<1x64xi32>
    %c64_i32_19 = arith.constant 64 : i32
    %34 = vector.broadcast %c64_i32_19 : i32 to vector<1x64xi32>
    %35 = arith.addi %32, %34 : vector<1x64xi32>
    %36 = arith.cmpi slt, %29, %35 : vector<1x64xi32>
    %37 = arith.andi %33, %36 : vector<1x64xi1>
    %38 = arith.extui %37 : vector<1x64xi1> to vector<1x64xi32>
    %39 = arith.sitofp %38 : vector<1x64xi32> to vector<1x64xf32>
    %40 = tpu.iota {dimensions = array<i32: 1>} : vector<8x32xi32>
    %41 = tpu.iota {dimensions = array<i32: 0>} : vector<8x32xi32>
    %c4_i32 = arith.constant 4 : i32
    %42 = vector.broadcast %c4_i32 : i32 to vector<8x32xi32>
    %43 = arith.muli %41, %42 : vector<8x32xi32>
    %44 = arith.cmpi sge, %40, %43 : vector<8x32xi32>
    %c4_i32_20 = arith.constant 4 : i32
    %45 = vector.broadcast %c4_i32_20 : i32 to vector<8x32xi32>
    %46 = arith.addi %43, %45 : vector<8x32xi32>
    %47 = arith.cmpi slt, %40, %46 : vector<8x32xi32>
    %48 = arith.andi %44, %47 : vector<8x32xi1>
    %49 = arith.extui %48 : vector<8x32xi1> to vector<8x32xi32>
    %50 = arith.sitofp %49 : vector<8x32xi32> to vector<8x32xf32>
    %cst_21 = arith.constant dense<0.000000e+00> : vector<1x8xf32>
    %51 = tpu.matmul %39, %26, %cst_21 {dimension_numbers = #tpu.dot_dimension_numbers<[1], [0], [0], [1], [0, 0, 1, 1], [], []>} : vector<1x64xf32>, vector<64x8xf32>, vector<1x8xf32> -> vector<1x8xf32>
    %52 = arith.addf %51, %28 : vector<1x8xf32>
    %53 = tpu.reciprocal %52 : vector<1x8xf32> -> vector<1x8xf32>
    %cst_22 = arith.constant dense<0.000000e+00> : vector<64x32xf32>
    %54 = tpu.matmul %26, %50, %cst_22 {dimension_numbers = #tpu.dot_dimension_numbers<[1], [0], [0], [1], [0, 0, 1, 1], [], []>} : vector<64x8xf32>, vector<8x32xf32>, vector<64x32xf32> -> vector<64x32xf32>
    %55 = arith.mulf %54, %20 : vector<64x32xf32>
    %cst_23 = arith.constant dense<0.000000e+00> : vector<1x32xf32>
    %56 = tpu.matmul %39, %55, %cst_23 {dimension_numbers = #tpu.dot_dimension_numbers<[1], [0], [0], [1], [0, 0, 1, 1], [], []>} : vector<1x64xf32>, vector<64x32xf32>, vector<1x32xf32> -> vector<1x32xf32>
    %cst_24 = arith.constant dense<0.000000e+00> : vector<1x32xf32>
    %57 = tpu.matmul %28, %50, %cst_24 {dimension_numbers = #tpu.dot_dimension_numbers<[1], [0], [0], [1], [0, 0, 1, 1], [], []>} : vector<1x8xf32>, vector<8x32xf32>, vector<1x32xf32> -> vector<1x32xf32>
    %58 = arith.mulf %57, %3 : vector<1x32xf32>
    %59 = arith.addf %56, %58 : vector<1x32xf32>
    %cst_25 = arith.constant dense<0.000000e+00> : vector<1x32xf32>
    %60 = tpu.matmul %53, %50, %cst_25 {dimension_numbers = #tpu.dot_dimension_numbers<[1], [0], [0], [1], [0, 0, 1, 1], [], []>} : vector<1x8xf32>, vector<8x32xf32>, vector<1x32xf32> -> vector<1x32xf32>
    %61 = arith.mulf %59, %60 : vector<1x32xf32>
    %c0_26 = arith.constant 0 : index
    %c0_27 = arith.constant 0 : index
    %62 = vector.load %arg5[%c0_26, %c0_27] : memref<32x32xf32, #tpu.memory_space<vmem>>, vector<32x32xf32>
    %cst_28 = arith.constant dense<0.000000e+00> : vector<1x32xf32>
    %63 = tpu.matmul %61, %62, %cst_28 {dimension_numbers = #tpu.dot_dimension_numbers<[1], [0], [0], [1], [0, 0, 1, 1], [], []>} : vector<1x32xf32>, vector<32x32xf32>, vector<1x32xf32> -> vector<1x32xf32>
    %64 = arith.addf %63, %4 : vector<1x32xf32>
    %cst_29 = arith.constant dense<0.000000e+00> : vector<1xf32>
    %65 = vector.multi_reduction <add>, %64, %cst_29 [1] : vector<1x32xf32> to vector<1xf32>
    %66 = vector.shape_cast %65 : vector<1xf32> to vector<1x1xf32>
    %cst_30 = arith.constant 3.200000e+01 : f32
    %67 = vector.broadcast %cst_30 : f32 to vector<1x1xf32>
    %68 = arith.divf %66, %67 : vector<1x1xf32>
    %69 = vector.broadcast %68 : vector<1x1xf32> to vector<1x32xf32>
    %70 = arith.subf %64, %69 : vector<1x32xf32>
    %71 = arith.mulf %70, %70 : vector<1x32xf32>
    %cst_31 = arith.constant dense<0.000000e+00> : vector<1xf32>
    %72 = vector.multi_reduction <add>, %71, %cst_31 [1] : vector<1x32xf32> to vector<1xf32>
    %73 = vector.shape_cast %72 : vector<1xf32> to vector<1x1xf32>
    %cst_32 = arith.constant 3.200000e+01 : f32
    %74 = vector.broadcast %cst_32 : f32 to vector<1x1xf32>
    %75 = arith.divf %73, %74 : vector<1x1xf32>
    %76 = vector.broadcast %68 : vector<1x1xf32> to vector<1x32xf32>
    %77 = arith.subf %64, %76 : vector<1x32xf32>
    %cst_33 = arith.constant 9.99999974E-6 : f32
    %78 = vector.broadcast %cst_33 : f32 to vector<1x1xf32>
    %79 = arith.addf %75, %78 : vector<1x1xf32>
    %80 = math.rsqrt %79 : vector<1x1xf32>
    %81 = vector.broadcast %80 : vector<1x1xf32> to vector<1x32xf32>
    %82 = arith.mulf %77, %81 : vector<1x32xf32>
    %83 = arith.mulf %82, %5 : vector<1x32xf32>
    %84 = arith.addf %83, %6 : vector<1x32xf32>
    %c0_34 = arith.constant 0 : index
    %c0_35 = arith.constant 0 : index
    %85 = vector.load %arg6[%c0_34, %c0_35] : memref<33x2048xf32, #tpu.memory_space<vmem>>, vector<32x2048xf32>
    %cst_36 = arith.constant dense<0.000000e+00> : vector<1x2048xf32>
    %86 = tpu.matmul %84, %85, %cst_36 {dimension_numbers = #tpu.dot_dimension_numbers<[1], [0], [0], [1], [0, 0, 1, 1], [], []>} : vector<1x32xf32>, vector<32x2048xf32>, vector<1x2048xf32> -> vector<1x2048xf32>
    %c32 = arith.constant 32 : index
    %c0_37 = arith.constant 0 : index
    %87 = vector.load %arg6[%c32, %c0_37] : memref<33x2048xf32, #tpu.memory_space<vmem>>, vector<1x2048xf32>
    %88 = arith.addf %86, %87 : vector<1x2048xf32>
    %cst_38 = arith.constant 0.000000e+00 : f32
    %89 = vector.broadcast %cst_38 : f32 to vector<1x2048xf32>
    %90 = arith.maximumf %88, %89 : vector<1x2048xf32>
    %c0_39 = arith.constant 0 : index
    %c0_40 = arith.constant 0 : index
    %91 = vector.load %arg7[%c0_39, %c0_40] : memref<2048x32xf32, #tpu.memory_space<vmem>>, vector<2048x32xf32>
    %cst_41 = arith.constant dense<0.000000e+00> : vector<1x32xf32>
    %92 = tpu.matmul %90, %91, %cst_41 {dimension_numbers = #tpu.dot_dimension_numbers<[1], [0], [0], [1], [0, 0, 1, 1], [], []>} : vector<1x2048xf32>, vector<2048x32xf32>, vector<1x32xf32> -> vector<1x32xf32>
    %93 = arith.addf %92, %7 : vector<1x32xf32>
    %94 = arith.addf %84, %93 : vector<1x32xf32>
    %cst_42 = arith.constant dense<0.000000e+00> : vector<1xf32>
    %95 = vector.multi_reduction <add>, %94, %cst_42 [1] : vector<1x32xf32> to vector<1xf32>
    %96 = vector.shape_cast %95 : vector<1xf32> to vector<1x1xf32>
    %cst_43 = arith.constant 3.200000e+01 : f32
    %97 = vector.broadcast %cst_43 : f32 to vector<1x1xf32>
    %98 = arith.divf %96, %97 : vector<1x1xf32>
    %99 = vector.broadcast %98 : vector<1x1xf32> to vector<1x32xf32>
    %100 = arith.subf %94, %99 : vector<1x32xf32>
    %101 = arith.mulf %100, %100 : vector<1x32xf32>
    %cst_44 = arith.constant dense<0.000000e+00> : vector<1xf32>
    %102 = vector.multi_reduction <add>, %101, %cst_44 [1] : vector<1x32xf32> to vector<1xf32>
    %103 = vector.shape_cast %102 : vector<1xf32> to vector<1x1xf32>
    %cst_45 = arith.constant 3.200000e+01 : f32
    %104 = vector.broadcast %cst_45 : f32 to vector<1x1xf32>
    %105 = arith.divf %103, %104 : vector<1x1xf32>
    %106 = vector.broadcast %98 : vector<1x1xf32> to vector<1x32xf32>
    %107 = arith.subf %94, %106 : vector<1x32xf32>
    %cst_46 = arith.constant 9.99999974E-6 : f32
    %108 = vector.broadcast %cst_46 : f32 to vector<1x1xf32>
    %109 = arith.addf %105, %108 : vector<1x1xf32>
    %110 = math.rsqrt %109 : vector<1x1xf32>
    %111 = vector.broadcast %110 : vector<1x1xf32> to vector<1x32xf32>
    %112 = arith.mulf %107, %111 : vector<1x32xf32>
    %113 = arith.mulf %112, %8 : vector<1x32xf32>
    %114 = arith.addf %113, %9 : vector<1x32xf32>
    %c0_47 = arith.constant 0 : index
    %c0_48 = arith.constant 0 : index
    %115 = vector.load %arg8[%c0_47, %c0_48] : memref<33x128xf32, #tpu.memory_space<vmem>>, vector<32x128xf32>
    %cst_49 = arith.constant dense<0.000000e+00> : vector<1x128xf32>
    %116 = tpu.matmul %114, %115, %cst_49 {dimension_numbers = #tpu.dot_dimension_numbers<[1], [0], [0], [1], [0, 0, 1, 1], [], []>} : vector<1x32xf32>, vector<32x128xf32>, vector<1x128xf32> -> vector<1x128xf32>
    %c32_50 = arith.constant 32 : index
    %c0_51 = arith.constant 0 : index
    %117 = vector.load %arg8[%c32_50, %c0_51] : memref<33x128xf32, #tpu.memory_space<vmem>>, vector<1x128xf32>
    %118 = arith.addf %116, %117 : vector<1x128xf32>
    %c0_52 = arith.constant 0 : index
    %c0_53 = arith.constant 0 : index
    %c0_54 = arith.constant 0 : index
    %119 = vector.load %arg9[%c0_52, %c0_53, %c0_54] : memref<1x1x128xf32, #tpu.memory_space<vmem>>, vector<1x1x128xf32>
    %120 = vector.shape_cast %119 : vector<1x1x128xf32> to vector<1x128xf32>
    %121 = vector.shape_cast %118 : vector<1x128xf32> to vector<1x1x128xf32>
    tpu.vector_store %arg9[%c0_52, %c0_53, %c0_54], %121 {strides = array<i32>} : memref<1x1x128xf32, #tpu.memory_space<vmem>>, vector<1x1x128xf32>,
    return
  }
  func.func @transform_0(%arg0: i32) -> (i32, i32, i32) {
    %c0_i32 = arith.constant 0 : i32
    %c0_i32_0 = arith.constant 0 : i32
    %c0_i32_1 = arith.constant 0 : i32
    return %arg0, %c0_i32, %c0_i32_0 : i32, i32, i32
  }
  func.func @transform_1(%arg0: i32) -> (i32, i32) {
    %c0_i32 = arith.constant 0 : i32
    %c0_i32_0 = arith.constant 0 : i32
    %c0_i32_1 = arith.constant 0 : i32
    return %c0_i32, %c0_i32_0 : i32, i32
  }
  func.func @transform_2(%arg0: i32) -> (i32, i32) {
    %c0_i32 = arith.constant 0 : i32
    %c0_i32_0 = arith.constant 0 : i32
    %c0_i32_1 = arith.constant 0 : i32
    return %c0_i32, %c0_i32_0 : i32, i32
  }
  func.func @transform_3(%arg0: i32) -> (i32, i32) {
    %c0_i32 = arith.constant 0 : i32
    %c0_i32_0 = arith.constant 0 : i32
    %c0_i32_1 = arith.constant 0 : i32
    return %c0_i32, %c0_i32_0 : i32, i32
  }
  func.func @transform_4(%arg0: i32) -> (i32, i32) {
    %c0_i32 = arith.constant 0 : i32
    %c0_i32_0 = arith.constant 0 : i32
    %c0_i32_1 = arith.constant 0 : i32
    return %c0_i32, %c0_i32_0 : i32, i32
  }
  func.func @transform_5(%arg0: i32) -> (i32, i32) {
    %c0_i32 = arith.constant 0 : i32
    %c0_i32_0 = arith.constant 0 : i32
    %c0_i32_1 = arith.constant 0 : i32
    return %c0_i32, %c0_i32_0 : i32, i32
  }
  func.func @transform_6(%arg0: i32) -> (i32, i32) {
    %c0_i32 = arith.constant 0 : i32
    %c0_i32_0 = arith.constant 0 : i32
    %c0_i32_1 = arith.constant 0 : i32
    return %c0_i32, %c0_i32_0 : i32, i32
  }
  func.func @transform_7(%arg0: i32) -> (i32, i32) {
    %c0_i32 = arith.constant 0 : i32
    %c0_i32_0 = arith.constant 0 : i32
    %c0_i32_1 = arith.constant 0 : i32
    return %c0_i32, %c0_i32_0 : i32, i32
  }
  func.func @transform_8(%arg0: i32) -> (i32, i32, i32) {
    %c0_i32 = arith.constant 0 : i32
    %c0_i32_0 = arith.constant 0 : i32
    %c0_i32_1 = arith.constant 0 : i32
    return %arg0, %c0_i32, %c0_i32_0 : i32, i32, i32
  }
}

</mosaic_0001>

<llo_original>
// kernel: transformer_pool_cls.1
$region0: #{transformer_pool_cls.1}
  #allocation0 [shape = 'u32[]', space=smem, size = 0x4, offset = 0x4, fixed_abs, tag = 'smem constant byte address 0x4 - core index']
  #allocation1 [shape = 'u32[144,128]{1,0:T(1,128)}', space=vmem, size = 0x12000, scoped, tag = 'internal scratch']
  %s0 = inlined_call_operand.vmem [shape: f32[2,32,64], index: 0, kind: input, shape index: {}]
  %s1 = inlined_call_operand.vmem [shape: f32[10,128], index: 1, kind: input, shape index: {}]
  %s2 = inlined_call_operand.vmem [shape: f32[32,8], index: 2, kind: input, shape index: {}]
  %s3 = inlined_call_operand.vmem [shape: f32[32,32], index: 3, kind: input, shape index: {}]
  %s4 = inlined_call_operand.vmem [shape: f32[32,32], index: 4, kind: input, shape index: {}]
  %s5 = inlined_call_operand.vmem [shape: f32[33,2048], index: 5, kind: input, shape index: {}]
  %s6 = inlined_call_operand.vmem [shape: f32[2048,32], index: 6, kind: input, shape index: {}]
  %s7 = inlined_call_operand.vmem [shape: f32[33,128], index: 7, kind: input, shape index: {}]
  %s8 = inlined_call_operand.hbm [shape: f32[2,1,128], index: 8, kind: output, shape index: {}]
  %s9 = sld [smem:[#allocation0]]
  $region65: #{transformer_pool_cls.1} parent=0
    _
  %s11 = ssub.s32 1, %s9
  %s12 = scalar_select 0, %s11, %s9
  $region1: #{transformer_pool_cls.1} parent=0
    #allocation2 [shape = 'u8[1024]{0}', space=vmem, size = 0x400, scoped, tag = 'output window, operand 0']
    #allocation3 [shape = 's32[2]{0}', space=sflag, size = 0x8, scoped, tag = 'scoped memory for transformer_pool_cls.1']
    %13 = vsyncpa [#allocation3], 0
    %s14 = scalar_lea.sflag [#allocation3], 1
    %15 = vsyncpa %s14, 0
    loop: start=0, step=1, limit=4
    $region2: #{transformer_pool_cls.1} parent=1 // loop_pre_header
      _
    $region3: #{transformer_pool_cls.1} parent=1 // loop_header
      %s17 = sphi 0, %s21
      %p18 = scmp.ge.s32.totalorder %s17, 4
      %s27 = sphi 0, %s29
      %s30 = sphi 0, %s27
      %s31 = sphi 0, %s30
      %s47 = sphi 0, %s31
      %s51 = sphi 0, %s51
      %s53 = sphi 0, %s51
      %s54 = sphi 0, %s53
      %s68 = sphi 0, %s54
      %s72 = sphi 0, %s72
      %s74 = sphi 0, %s72
      %s75 = sphi 0, %s74
      %s89 = sphi 0, %s75
      %s93 = sphi 0, %s93
      %s95 = sphi 0, %s93
      %s96 = sphi 0, %s95
      %s110 = sphi 0, %s96
      %s114 = sphi 0, %s114
      %s116 = sphi 0, %s114
      %s117 = sphi 0, %s116
      %s131 = sphi 0, %s117
      %s135 = sphi 0, %s135
      %s137 = sphi 0, %s135
      %s138 = sphi 0, %s137
      %s152 = sphi 0, %s138
      %s156 = sphi 0, %s156
      %s158 = sphi 0, %s156
      %s159 = sphi 0, %s158
      %s173 = sphi 0, %s159
      %s177 = sphi 0, %s177
      %s179 = sphi 0, %s177
      %s180 = sphi 0, %s179
      %s194 = sphi 0, %s180
      %s200 = sphi 0, %s202
      %s203 = sphi 0, %s200
      %s204 = sphi 0, %s203
      %s220 = sphi 0, %s204
    $region4: #{transformer_pool_cls.1} parent=1 // loop_header_branch
      %20 = sbr.rel (%p18) target = $region8
    $region5: #{transformer_pool_cls.1} parent=1 // loop_body
      %s22 = ssub.s32 %s17, 1
      %s23 = ssub.s32 %s17, 2
      %s24 = sadd.s32 %s17, 1
      %s25 = ssub.s32 %s17, %s24
      %p26 = scmp.eq.s32.totalorder %s25, 0
      %s28 = sadd.s32 %s27, 1
      %s29 = scalar_select %p26, %s27, %s28
      %p32 = pneg %p26
      %p33 = scmp.eq.s32.totalorder %s17, 1
      %p34 = por %p32, %p33
      %p35 = scmp.ne.s32.totalorder %s27, %s30
      %p36 = scmp.eq.s32.totalorder %s17, 0
      %p37 = por %p35, %p36
      %p38 = scmp.ne.s32.totalorder %s27, %s30
      %p39 = scmp.eq.s32.totalorder %s22, 1
      %p40 = por %p38, %p39
      %p41 = scmp.ne.s32.totalorder %s30, %s31
      %p42 = scmp.eq.s32.totalorder %s22, 0
      %p43 = por %p41, %p42
      %p44 = scmp.ne.s32.totalorder %s30, %s31
      %p45 = scmp.eq.s32.totalorder %s23, 1
      %p46 = por %p44, %p45
      %p48 = scmp.ne.s32.totalorder %s31, %s47
      %p49 = scmp.eq.s32.totalorder %s23, 0
      %p50 = por %p48, %p49
      %s52 = sadd.s32 %s51, 1
      %p55 = scmp.eq.s32.totalorder %s17, 1
      %p56 = scmp.ne.s32.totalorder %s51, %s53
      %p57 = scmp.eq.s32.totalorder %s17, 0
      %p58 = por %p56, %p57
      %p59 = scmp.ne.s32.totalorder %s51, %s53
      %p60 = scmp.eq.s32.totalorder %s22, 1
      %p61 = por %p59, %p60
      %p62 = scmp.ne.s32.totalorder %s53, %s54
      %p63 = scmp.eq.s32.totalorder %s22, 0
      %p64 = por %p62, %p63
      %p65 = scmp.ne.s32.totalorder %s53, %s54
      %p66 = scmp.eq.s32.totalorder %s23, 1
      %p67 = por %p65, %p66
      %p69 = scmp.ne.s32.totalorder %s54, %s68
      %p70 = scmp.eq.s32.totalorder %s23, 0
      %p71 = por %p69, %p70
      %s73 = sadd.s32 %s72, 1
      %p76 = scmp.eq.s32.totalorder %s17, 1
      %p77 = scmp.ne.s32.totalorder %s72, %s74
      %p78 = scmp.eq.s32.totalorder %s17, 0
      %p79 = por %p77, %p78
      %p80 = scmp.ne.s32.totalorder %s72, %s74
      %p81 = scmp.eq.s32.totalorder %s22, 1
      %p82 = por %p80, %p81
      %p83 = scmp.ne.s32.totalorder %s74, %s75
      %p84 = scmp.eq.s32.totalorder %s22, 0
      %p85 = por %p83, %p84
      %p86 = scmp.ne.s32.totalorder %s74, %s75
      %p87 = scmp.eq.s32.totalorder %s23, 1
      %p88 = por %p86, %p87
      %p90 = scmp.ne.s32.totalorder %s75, %s89
      %p91 = scmp.eq.s32.totalorder %s23, 0
      %p92 = por %p90, %p91
      %s94 = sadd.s32 %s93, 1
      %p97 = scmp.eq.s32.totalorder %s17, 1
      %p98 = scmp.ne.s32.totalorder %s93, %s95
      %p99 = scmp.eq.s32.totalorder %s17, 0
      %p100 = por %p98, %p99
      %p101 = scmp.ne.s32.totalorder %s93, %s95
      %p102 = scmp.eq.s32.totalorder %s22, 1
      %p103 = por %p101, %p102
      %p104 = scmp.ne.s32.totalorder %s95, %s96
      %p105 = scmp.eq.s32.totalorder %s22, 0
      %p106 = por %p104, %p105
      %p107 = scmp.ne.s32.totalorder %s95, %s96
      %p108 = scmp.eq.s32.totalorder %s23, 1
      %p109 = por %p107, %p108
      %p111 = scmp.ne.s32.totalorder %s96, %s110
      %p112 = scmp.eq.s32.totalorder %s23, 0
      %p113 = por %p111, %p112
      %s115 = sadd.s32 %s114, 1
      %p118 = scmp.eq.s32.totalorder %s17, 1
      %p119 = scmp.ne.s32.totalorder %s114, %s116
      %p120 = scmp.eq.s32.totalorder %s17, 0
      %p121 = por %p119, %p120
      %p122 = scmp.ne.s32.totalorder %s114, %s116
      %p123 = scmp.eq.s32.totalorder %s22, 1
      %p124 = por %p122, %p123
      %p125 = scmp.ne.s32.totalorder %s116, %s117
      %p126 = scmp.eq.s32.totalorder %s22, 0
      %p127 = por %p125, %p126
      %p128 = scmp.ne.s32.totalorder %s116, %s117
      %p129 = scmp.eq.s32.totalorder %s23, 1
      %p130 = por %p128, %p129
      %p132 = scmp.ne.s32.totalorder %s117, %s131
      %p133 = scmp.eq.s32.totalorder %s23, 0
      %p134 = por %p132, %p133
      %s136 = sadd.s32 %s135, 1
      %p139 = scmp.eq.s32.totalorder %s17, 1
      %p140 = scmp.ne.s32.totalorder %s135, %s137
      %p141 = scmp.eq.s32.totalorder %s17, 0
      %p142 = por %p140, %p141
      %p143 = scmp.ne.s32.totalorder %s135, %s137
      %p144 = scmp.eq.s32.totalorder %s22, 1
      %p145 = por %p143, %p144
      %p146 = scmp.ne.s32.totalorder %s137, %s138
      %p147 = scmp.eq.s32.totalorder %s22, 0
      %p148 = por %p146, %p147
      %p149 = scmp.ne.s32.totalorder %s137, %s138
      %p150 = scmp.eq.s32.totalorder %s23, 1
      %p151 = por %p149, %p150
      %p153 = scmp.ne.s32.totalorder %s138, %s152
      %p154 = scmp.eq.s32.totalorder %s23, 0
      %p155 = por %p153, %p154
      %s157 = sadd.s32 %s156, 1
      %p160 = scmp.eq.s32.totalorder %s17, 1
      %p161 = scmp.ne.s32.totalorder %s156, %s158
      %p162 = scmp.eq.s32.totalorder %s17, 0
      %p163 = por %p161, %p162
      %p164 = scmp.ne.s32.totalorder %s156, %s158
      %p165 = scmp.eq.s32.totalorder %s22, 1
      %p166 = por %p164, %p165
      %p167 = scmp.ne.s32.totalorder %s158, %s159
      %p168 = scmp.eq.s32.totalorder %s22, 0
      %p169 = por %p167, %p168
      %p170 = scmp.ne.s32.totalorder %s158, %s159
      %p171 = scmp.eq.s32.totalorder %s23, 1
      %p172 = por %p170, %p171
      %p174 = scmp.ne.s32.totalorder %s159, %s173
      %p175 = scmp.eq.s32.totalorder %s23, 0
      %p176 = por %p174, %p175
      %s178 = sadd.s32 %s177, 1
      %p181 = scmp.eq.s32.totalorder %s17, 1
      %p182 = scmp.ne.s32.totalorder %s177, %s179
      %p183 = scmp.eq.s32.totalorder %s17, 0
      %p184 = por %p182, %p183
      %p185 = scmp.ne.s32.totalorder %s177, %s179
      %p186 = scmp.eq.s32.totalorder %s22, 1
      %p187 = por %p185, %p186
      %p188 = scmp.ne.s32.totalorder %s179, %s180
      %p189 = scmp.eq.s32.totalorder %s22, 0
      %p190 = por %p188, %p189
      %p191 = scmp.ne.s32.totalorder %s179, %s180
      %p192 = scmp.eq.s32.totalorder %s23, 1
      %p193 = por %p191, %p192
      %p195 = scmp.ne.s32.totalorder %s180, %s194
      %p196 = scmp.eq.s32.totalorder %s23, 0
      %p197 = por %p195, %p196
      %s198 = ssub.s32 %s17, %s24
      %p199 = scmp.eq.s32.totalorder %s198, 0
      %s201 = sadd.s32 %s200, 1
      %s202 = scalar_select %p199, %s200, %s201
      %p205 = pneg %p199
      %p206 = scmp.eq.s32.totalorder %s17, 1
      %p207 = por %p205, %p206
      %p208 = scmp.ne.s32.totalorder %s200, %s203
      %p209 = scmp.eq.s32.totalorder %s17, 0
      %p210 = por %p208, %p209
      %p211 = scmp.ne.s32.totalorder %s200, %s203
      %p212 = scmp.eq.s32.totalorder %s22, 1
      %p213 = por %p211, %p212
      %p214 = scmp.ne.s32.totalorder %s203, %s204
      %p215 = scmp.eq.s32.totalorder %s22, 0
      %p216 = por %p214, %p215
      %p217 = scmp.ne.s32.totalorder %s203, %s204
      %p218 = scmp.eq.s32.totalorder %s23, 1
      %p219 = por %p217, %p218
      %p221 = scmp.ne.s32.totalorder %s204, %s220
      %p222 = scmp.eq.s32.totalorder %s23, 0
      %p223 = por %p221, %p222
      %p224 = scmp.le.s32.totalorder 1, %s17
      %p225 = scmp.lt.s32.totalorder %s17, 3
      %p226 = pnand %p224, %p225
      %p227 = pneg %p226
      // Predicated region
      $region9: #{transformer_pool_cls.1} parent=5 // pred_check
        _
      $region10: #{transformer_pool_cls.1} parent=5 // pred_check_branch
        %229 = sbr.rel (%p226) target = $region12
      $region11: #{transformer_pool_cls.1} parent=5 // pred_region
        %s230 = ssub.s32 %s17, 1
        // Predicated region
        $region13: #{transformer_pool_cls.1} parent=11 // pred_check
          %p231 = pneg %p64
        $region14: #{transformer_pool_cls.1} parent=11 // pred_check_branch
          %233 = sbr.rel (%p231) target = $region16
        $region15: #{transformer_pool_cls.1} parent=11 // pred_region
          _
        $region16: #{transformer_pool_cls.1} parent=11 // pred_fallthru
          _
        // Predicated region
        $region17: #{transformer_pool_cls.1} parent=11 // pred_check
          %p234 = pneg %p85
        $region18: #{transformer_pool_cls.1} parent=11 // pred_check_branch
          %236 = sbr.rel (%p234) target = $region20
        $region19: #{transformer_pool_cls.1} parent=11 // pred_region
          _
        $region20: #{transformer_pool_cls.1} parent=11 // pred_fallthru
          _
        // Predicated region
        $region21: #{transformer_pool_cls.1} parent=11 // pred_check
          %p237 = pneg %p106
        $region22: #{transformer_pool_cls.1} parent=11 // pred_check_branch
          %239 = sbr.rel (%p237) target = $region24
        $region23: #{transformer_pool_cls.1} parent=11 // pred_region
          _
        $region24: #{transformer_pool_cls.1} parent=11 // pred_fallthru
          _
        // Predicated region
        $region25: #{transformer_pool_cls.1} parent=11 // pred_check
          %p240 = pneg %p127
        $region26: #{transformer_pool_cls.1} parent=11 // pred_check_branch
          %242 = sbr.rel (%p240) target = $region28
        $region27: #{transformer_pool_cls.1} parent=11 // pred_region
          _
        $region28: #{transformer_pool_cls.1} parent=11 // pred_fallthru
          _
        // Predicated region
        $region29: #{transformer_pool_cls.1} parent=11 // pred_check
          %p243 = pneg %p148
        $region30: #{transformer_pool_cls.1} parent=11 // pred_check_branch
          %245 = sbr.rel (%p243) target = $region32
        $region31: #{transformer_pool_cls.1} parent=11 // pred_region
          _
        $region32: #{transformer_pool_cls.1} parent=11 // pred_fallthru
          _
        // Predicated region
        $region33: #{transformer_pool_cls.1} parent=11 // pred_check
          %p246 = pneg %p169
        $region34: #{transformer_pool_cls.1} parent=11 // pred_check_branch
          %248 = sbr.rel (%p246) target = $region36
        $region35: #{transformer_pool_cls.1} parent=11 // pred_region
          _
        $region36: #{transformer_pool_cls.1} parent=11 // pred_fallthru
          _
        // Predicated region
        $region37: #{transformer_pool_cls.1} parent=11 // pred_check
          %p249 = pneg %p190
        $region38: #{transformer_pool_cls.1} parent=11 // pred_check_branch
          %251 = sbr.rel (%p249) target = $region40
        $region39: #{transformer_pool_cls.1} parent=11 // pred_region
          _
        $region40: #{transformer_pool_cls.1} parent=11 // pred_fallthru
          _
      $region12: #{transformer_pool_cls.1} parent=5 // pred_fallthru
        _
      %p252 = scmp.lt.s32.totalorder %s17, 2
      // Predicated region
      $region41: #{transformer_pool_cls.1} parent=5 // pred_check
        %p253 = pneg %p252
      $region42: #{transformer_pool_cls.1} parent=5 // pred_check_branch
        %255 = sbr.rel (%p253) target = $region44
      $region43: #{transformer_pool_cls.1} parent=5 // pred_region
        // Predicated region
        $region45: #{transformer_pool_cls.1} parent=43 // pred_check
          %p256 = pneg %p37
        $region46: #{transformer_pool_cls.1} parent=43 // pred_check_branch
          %258 = sbr.rel (%p256) target = $region48
        $region47: #{transformer_pool_cls.1} parent=43 // pred_region
          %p259 = scmp.lt.s32.totalorder %s17, 1
          %s260 = scalar_select %p259, %s17, 1
          %s261 = smul.addr %s260, 4
          %s262 = smul.addr %s261, 8
          %s263 = scalar_lea.vmem %s0, %s262
        $region48: #{transformer_pool_cls.1} parent=43 // pred_fallthru
          _
      $region44: #{transformer_pool_cls.1} parent=5 // pred_fallthru
        _
      %p264 = scmp.le.s32.totalorder 1, %s17
      %p265 = scmp.lt.s32.totalorder %s17, 3
      %p266 = pnand %p264, %p265
      %p267 = pneg %p266
      // Predicated region
      $region49: #{transformer_pool_cls.1} parent=5 // pred_check
        _
      $region50: #{transformer_pool_cls.1} parent=5 // pred_check_branch
        %269 = sbr.rel (%p266) target = $region52
      $region51: #{transformer_pool_cls.1} parent=5 // pred_region
        %s270 = ssub.s32 %s17, 1
        %p271 = scmp.lt.s32.totalorder %s22, 1
        %s272 = scalar_select %p271, %s22, 1
        %s273 = smul.addr %s272, 4
        %s274 = smul.addr %s273, 8
        %s275 = scalar_lea.vmem %s0, %s274
        %p276 = pneg %p43
        %p277 = pneg %p40
        %p278 = pneg %p64
        %p279 = pneg %p61
        %p280 = pneg %p85
        %p281 = pneg %p82
        %p282 = pneg %p106
        %p283 = pneg %p103
        %p284 = pneg %p127
        %p285 = pneg %p124
        %p286 = pneg %p148
        %p287 = pneg %p145
        %p288 = pneg %p169
        %p289 = pneg %p166
        %p290 = pneg %p190
        %p291 = pneg %p187
        %p292 = pneg %p216
        %p293 = pneg %p213
        %s294 = sand.u32 %s203, 1
        %s295 = scalar_lea.sflag [#allocation3], %s294
        %s296 = sand.u32 %s203, 1
        %s297 = scalar_lea.vmem [#allocation2], %s296
        %p298 = scmp.lt.s32.totalorder %s22, 1
        %s299 = scalar_select %p298, %s22, 1
        %s300 = smul.addr %s299, 4
        %s301 = smul.addr %s300, 8
        %s302 = scalar_lea.vmem %s0, %s301
        %v303 = vld [vmem:[%s1] sm:$0x1]
        %v304 = vld [vmem:[%s1 + $0x1] sm:$0x1]
        %v305 = vld [vmem:[%s1 + $0x2] sm:$0x1]
        %v306 = vld [vmem:[%s1 + $0x3] sm:$0x1]
        %v307 = vld [vmem:[%s1 + $0x4] sm:$0x1]
        %v308 = vld [vmem:[%s1 + $0x5] sm:$0x1]
        %v309 = vld [vmem:[%s1 + $0x6] sm:$0x1]
        %v310 = vld [vmem:[%s1 + $0x7] sm:$0x1]
        %v311 = vld [vmem:[%s1 + $0x8] sm:$0x1]
        %v312 = vld [vmem:[%s1 + $0x9] sm:$0x1]
        %v313 = vld [vmem:[%s302] sm:$0xff]
        %v314 = vld [vmem:[%s302 + $0x8] sm:$0xff]
        %v315 = vld [vmem:[%s302 + $0x10] sm:$0xff]
        %v316 = vld [vmem:[%s302 + $0x18] sm:$0xff]
        %317 = vxpose.xlu0.b32.start [1/16] %v313, 128
        %318 = vxpose.xlu0.b32.cont [2/16] %v314, 128
        %319 = vxpose.xlu0.b32.cont [3/16] %v315, 128
        %320 = vxpose.xlu0.b32.cont [4/16] %v316, 128
        %321 = vxpose.xlu0.b32.cont [5/16] 0.0, 128
        %322 = vxpose.xlu0.b32.cont [6/16] 0.0, 128
        %323 = vxpose.xlu0.b32.cont [7/16] 0.0, 128
        %324 = vxpose.xlu0.b32.cont [8/16] 0.0, 128
        %325 = vxpose.xlu0.b32.cont [9/16] 0.0, 128
        %326 = vxpose.xlu0.b32.cont [10/16] 0.0, 128
        %327 = vxpose.xlu0.b32.cont [11/16] 0.0, 128
        %328 = vxpose.xlu0.b32.cont [12/16] 0.0, 128
        %329 = vxpose.xlu0.b32.cont [13/16] 0.0, 128
        %330 = vxpose.xlu0.b32.cont [14/16] 0.0, 128
        %331 = vxpose.xlu0.b32.cont [15/16] 0.0, 128
        %332 = vxpose.xlu0.b32.end [16/16] 0.0, 128
        %v333 = vpop.trf.xlu0
        %v334 = vpop.trf.xlu0
        %v335 = vpop.trf.xlu0
        %v336 = vpop.trf.xlu0
        %v337 = vpop.trf.xlu0
        %v338 = vpop.trf.xlu0
        %v339 = vpop.trf.xlu0
        %v340 = vpop.trf.xlu0
        %v341 = vpop.trf.xlu0
        %v342 = vpop.trf.xlu0
        %v343 = vpop.trf.xlu0
        %v344 = vpop.trf.xlu0
        %v345 = vpop.trf.xlu0
        %v346 = vpop.trf.xlu0
        %v347 = vpop.trf.xlu0
        %v348 = vpop.trf.xlu0
        %v349 = vld [vmem:[%s2] sm:$0xff]
        %v350 = vld [vmem:[%s2 + $0x8] sm:$0xff]
        %v351 = vld [vmem:[%s2 + $0x10] sm:$0xff]
        %v352 = vld [vmem:[%s2 + $0x18] sm:$0xff]
        %v353 = vlaneseq
        %v354 = vshrl.u32 %v353, 7
        %v355 = vsub.s32 0, %v354
        %v356 = vrot.slane %v303, %v355
        %vm357 = vcmask 261120
        %v359 = vsel %vm357, %v333, 0
        %v362 = vsel %vm357, %v334, 0
        %v365 = vsel %vm357, %v335, 0
        %v368 = vsel %vm357, %v336, 0
        %v371 = vsel %vm357, %v337, 0
        %v374 = vsel %vm357, %v338, 0
        %v377 = vsel %vm357, %v339, 0
        %v380 = vsel %vm357, %v340, 0
        %382 = vmatprep.subr.mxu0 0.0
        %383 = vmatpush1.msra.mxu0 %v349
        %384 = vmatprep.subr.mxu0 0.0
        %385 = vmatpush1.msra.mxu0 %v350
        %386 = vmatprep.subr.mxu0 0.0
        %387 = vmatpush1.msra.mxu0 %v351
        %388 = vmatprep.subr.mxu0 0.0
        %389 = vmatpush1.msra.mxu0 %v352
        %390 = vmatprep.subr.mxu0 0.0
        %391 = vmatpush1.msra.mxu0 0.0
        %392 = vmatprep.subr.mxu0 0.0
        %393 = vmatpush1.msra.mxu0 0.0
        %394 = vmatprep.subr.mxu0 0.0
        %395 = vmatpush1.msra.mxu0 0.0
        %396 = vmatprep.subr.mxu0 0.0
        %397 = vmatpush1.msra.mxu0 0.0
        %398 = vmatprep.subr.mxu0 0.0
        %399 = vmatpush1.msra.mxu0 0.0
        %400 = vmatprep.subr.mxu0 0.0
        %401 = vmatpush1.msra.mxu0 0.0
        %402 = vmatprep.subr.mxu0 0.0
        %403 = vmatpush1.msra.mxu0 0.0
        %404 = vmatprep.subr.mxu0 0.0
        %405 = vmatpush1.msra.mxu0 0.0
        %406 = vmatprep.subr.mxu0 0.0
        %407 = vmatpush1.msra.mxu0 0.0
        %408 = vmatprep.subr.mxu0 0.0
        %409 = vmatpush1.msra.mxu0 0.0
        %410 = vmatprep.subr.mxu0 0.0
        %411 = vmatpush1.msra.mxu0 0.0
        %412 = vmatprep.subr.mxu0 0.0
        %413 = vmatpush1.msra.mxu0 0.0
        %414 = vmatprep.subr.mxu0 0.0
        %415 = vmatpush1.msra.mxu0 0.0
        %416 = vmatprep.subr.mxu0 0.0
        %417 = vmatpush1.msra.mxu0 0.0
        %418 = vmatprep.subr.mxu0 0.0
        %419 = vmatpush1.msra.mxu0 0.0
        %420 = vmatprep.subr.mxu0 0.0
        %421 = vmatpush1.msra.mxu0 0.0
        %422 = vmatprep.subr.mxu0 0.0
        %423 = vmatpush1.msra.mxu0 0.0
        %424 = vmatprep.subr.mxu0 0.0
        %425 = vmatpush1.msra.mxu0 0.0
        %426 = vmatprep.subr.mxu0 0.0
        %427 = vmatpush1.msra.mxu0 0.0
        %428 = vmatprep.subr.mxu0 0.0
        %429 = vmatpush1.msra.mxu0 0.0
        %430 = vmatprep.subr.mxu0 0.0
        %431 = vmatpush1.msra.mxu0 0.0
        %432 = vmatprep.subr.mxu0 0.0
        %433 = vmatpush1.msra.mxu0 0.0
        %434 = vmatprep.subr.mxu0 0.0
        %435 = vmatpush1.msra.mxu0 0.0
        %436 = vmatprep.subr.mxu0 0.0
        %437 = vmatpush1.msra.mxu0 0.0
        %438 = vmatprep.subr.mxu0 0.0
        %439 = vmatpush1.msra.mxu0 0.0
        %440 = vmatprep.subr.mxu0 0.0
        %441 = vmatpush1.msra.mxu0 0.0
        %442 = vmatprep.subr.mxu0 0.0
        %443 = vmatpush1.msra.mxu0 0.0
        %444 = vmatprep.subr.mxu0 0.0
        %445 = vmatpush1.msra.mxu0 0.0
        %446 = vmatprep.mubr.f32.mxu0 0.0
        %447 = vmatmul.mubr.f32.gmra.mrb[0].mxu0 %v359
        %v448 = vpop.f32.mrb[0].mxu0
        %v449 = vadd.f32 %v356, %v448
        %v450 = vpop.f32.mrb[0].mxu0
        %451 = vmatprep.mubr.f32.mxu0 0.0
        %452 = vmatmul.mubr.f32.gmra.mrb[0].mxu0 %v362
        %v453 = vpop.f32.mrb[0].mxu0
        %v454 = vadd.f32 %v356, %v453
        %v455 = vpop.f32.mrb[0].mxu0
        %456 = vmatprep.mubr.f32.mxu0 0.0
        %457 = vmatmul.mubr.f32.gmra.mrb[0].mxu0 %v365
        %v458 = vpop.f32.mrb[0].mxu0
        %v459 = vadd.f32 %v356, %v458
        %v460 = vpop.f32.mrb[0].mxu0
        %461 = vmatprep.mubr.f32.mxu0 0.0
        %462 = vmatmul.mubr.f32.gmra.mrb[0].mxu0 %v368
        %v463 = vpop.f32.mrb[0].mxu0
        %v464 = vadd.f32 %v356, %v463
        %v465 = vpop.f32.mrb[0].mxu0
        %466 = vmatprep.mubr.f32.mxu0 0.0
        %467 = vmatmul.mubr.f32.gmra.mrb[0].mxu0 %v371
        %v468 = vpop.f32.mrb[0].mxu0
        %v469 = vadd.f32 %v356, %v468
        %v470 = vpop.f32.mrb[0].mxu0
        %471 = vmatprep.mubr.f32.mxu0 0.0
        %472 = vmatmul.mubr.f32.gmra.mrb[0].mxu0 %v374
        %v473 = vpop.f32.mrb[0].mxu0
        %v474 = vadd.f32 %v356, %v473
        %v475 = vpop.f32.mrb[0].mxu0
        %476 = vmatprep.mubr.f32.mxu0 0.0
        %477 = vmatmul.mubr.f32.gmra.mrb[0].mxu0 %v377
        %v478 = vpop.f32.mrb[0].mxu0
        %v479 = vadd.f32 %v356, %v478
        %v480 = vpop.f32.mrb[0].mxu0
        %481 = vmatprep.mubr.f32.mxu0 0.0
        %482 = vmatmul.mubr.f32.gmra.mrb[0].mxu0 %v380
        %v483 = vpop.f32.mrb[0].mxu0
        %v484 = vadd.f32 %v356, %v483
        %v485 = vpop.f32.mrb[0].mxu0
        %486 = vdwg.mxu0
        %v487 = vld [vmem:[%s3] sm:$0xff]
        %v488 = vld [vmem:[%s3 + $0x8] sm:$0xff]
        %v489 = vld [vmem:[%s3 + $0x10] sm:$0xff]
        %v490 = vld [vmem:[%s3 + $0x18] sm:$0xff]
        %v491 = vlaneseq
        %v492 = vshrl.u32 %v491, 7
        %v493 = vsub.s32 0, %v492
        %v494 = vrot.slane %v305, %v493
        %495 = vmatprep.subr.mxu0 0.0
        %496 = vmatpush1.msra.mxu0 %v487
        %497 = vmatprep.subr.mxu0 0.0
        %498 = vmatpush1.msra.mxu0 %v488
        %499 = vmatprep.subr.mxu0 0.0
        %500 = vmatpush1.msra.mxu0 %v489
        %501 = vmatprep.subr.mxu0 0.0
        %502 = vmatpush1.msra.mxu0 %v490
        %503 = vmatprep.subr.mxu0 0.0
        %504 = vmatpush1.msra.mxu0 0.0
        %505 = vmatprep.subr.mxu0 0.0
        %506 = vmatpush1.msra.mxu0 0.0
        %507 = vmatprep.subr.mxu0 0.0
        %508 = vmatpush1.msra.mxu0 0.0
        %509 = vmatprep.subr.mxu0 0.0
        %510 = vmatpush1.msra.mxu0 0.0
        %511 = vmatprep.subr.mxu0 0.0
        %512 = vmatpush1.msra.mxu0 0.0
        %513 = vmatprep.subr.mxu0 0.0
        %514 = vmatpush1.msra.mxu0 0.0
        %515 = vmatprep.subr.mxu0 0.0
        %516 = vmatpush1.msra.mxu0 0.0
        %517 = vmatprep.subr.mxu0 0.0
        %518 = vmatpush1.msra.mxu0 0.0
        %519 = vmatprep.subr.mxu0 0.0
        %520 = vmatpush1.msra.mxu0 0.0
        %521 = vmatprep.subr.mxu0 0.0
        %522 = vmatpush1.msra.mxu0 0.0
        %523 = vmatprep.subr.mxu0 0.0
        %524 = vmatpush1.msra.mxu0 0.0
        %525 = vmatprep.subr.mxu0 0.0
        %526 = vmatpush1.msra.mxu0 0.0
        %527 = vmatprep.subr.mxu0 0.0
        %528 = vmatpush1.msra.mxu0 0.0
        %529 = vmatprep.subr.mxu0 0.0
        %530 = vmatpush1.msra.mxu0 0.0
        %531 = vmatprep.subr.mxu0 0.0
        %532 = vmatpush1.msra.mxu0 0.0
        %533 = vmatprep.subr.mxu0 0.0
        %534 = vmatpush1.msra.mxu0 0.0
        %535 = vmatprep.subr.mxu0 0.0
        %536 = vmatpush1.msra.mxu0 0.0
        %537 = vmatprep.subr.mxu0 0.0
        %538 = vmatpush1.msra.mxu0 0.0
        %539 = vmatprep.subr.mxu0 0.0
        %540 = vmatpush1.msra.mxu0 0.0
        %541 = vmatprep.subr.mxu0 0.0
        %542 = vmatpush1.msra.mxu0 0.0
        %543 = vmatprep.subr.mxu0 0.0
        %544 = vmatpush1.msra.mxu0 0.0
        %545 = vmatprep.subr.mxu0 0.0
        %546 = vmatpush1.msra.mxu0 0.0
        %547 = vmatprep.subr.mxu0 0.0
        %548 = vmatpush1.msra.mxu0 0.0
        %549 = vmatprep.subr.mxu0 0.0
        %550 = vmatpush1.msra.mxu0 0.0
        %551 = vmatprep.subr.mxu0 0.0
        %552 = vmatpush1.msra.mxu0 0.0
        %553 = vmatprep.subr.mxu0 0.0
        %554 = vmatpush1.msra.mxu0 0.0
        %555 = vmatprep.subr.mxu0 0.0
        %556 = vmatpush1.msra.mxu0 0.0
        %557 = vmatprep.subr.mxu0 0.0
        %558 = vmatpush1.msra.mxu0 0.0
        %559 = vmatprep.mubr.f32.mxu0 0.0
        %560 = vmatmul.mubr.f32.gmra.mrb[0].mxu0 %v359
        %v561 = vpop.f32.mrb[0].mxu0
        %v562 = vadd.f32 %v494, %v561
        %v563 = vpop.f32.mrb[0].mxu0
        %564 = vmatprep.mubr.f32.mxu0 0.0
        %565 = vmatmul.mubr.f32.gmra.mrb[0].mxu0 %v362
        %v566 = vpop.f32.mrb[0].mxu0
        %v567 = vadd.f32 %v494, %v566
        %v568 = vpop.f32.mrb[0].mxu0
        %569 = vmatprep.mubr.f32.mxu0 0.0
        %570 = vmatmul.mubr.f32.gmra.mrb[0].mxu0 %v365
        %v571 = vpop.f32.mrb[0].mxu0
        %v572 = vadd.f32 %v494, %v571
        %v573 = vpop.f32.mrb[0].mxu0
        %574 = vmatprep.mubr.f32.mxu0 0.0
        %575 = vmatmul.mubr.f32.gmra.mrb[0].mxu0 %v368
        %v576 = vpop.f32.mrb[0].mxu0
        %v577 = vadd.f32 %v494, %v576
        %v578 = vpop.f32.mrb[0].mxu0
        %579 = vmatprep.mubr.f32.mxu0 0.0
        %580 = vmatmul.mubr.f32.gmra.mrb[0].mxu0 %v371
        %v581 = vpop.f32.mrb[0].mxu0
        %v582 = vadd.f32 %v494, %v581
        %v583 = vpop.f32.mrb[0].mxu0
        %584 = vmatprep.mubr.f32.mxu0 0.0
        %585 = vmatmul.mubr.f32.gmra.mrb[0].mxu0 %v374
        %v586 = vpop.f32.mrb[0].mxu0
        %v587 = vadd.f32 %v494, %v586
        %v588 = vpop.f32.mrb[0].mxu0
        %589 = vmatprep.mubr.f32.mxu0 0.0
        %590 = vmatmul.mubr.f32.gmra.mrb[0].mxu0 %v377
        %v591 = vpop.f32.mrb[0].mxu0
        %v592 = vadd.f32 %v494, %v591
        %v593 = vpop.f32.mrb[0].mxu0
        %594 = vmatprep.mubr.f32.mxu0 0.0
        %595 = vmatmul.mubr.f32.gmra.mrb[0].mxu0 %v380
        %v596 = vpop.f32.mrb[0].mxu0
        %v597 = vadd.f32 %v494, %v596
        %v598 = vpop.f32.mrb[0].mxu0
        %599 = vdwg.mxu0
        %vm600 = vcmask 64512
        %v601 = vsel %vm600, %v449, -inf
        %v602 = vsel %vm600, %v454, -inf
        %v603 = vsel %vm600, %v459, -inf
        %v604 = vsel %vm600, %v464, -inf
        %v605 = vsel %vm600, %v469, -inf
        %v606 = vmax.f32 %v601, %v605
        %v607 = vsel %vm600, %v474, -inf
        %v608 = vmax.f32 %v602, %v607
        %v609 = vsel %vm600, %v479, -inf
        %v610 = vmax.f32 %v603, %v609
        %v611 = vsel %vm600, %v484, -inf
        %v612 = vmax.f32 %v604, %v611
        %v613 = vmax.f32 %v606, %v608
        %v614 = vmax.f32 %v610, %v612
        %v615 = vmax.f32 %v613, %v614
        %v616 = vrot.slane %v615, 4
        %v617 = vmax.f32 %v615, %v616
        %v618 = vrot.slane %v617, 2
        %v619 = vmax.f32 %v617, %v618
        %v620 = vrot.slane %v619, 1
        %v621 = vmax.f32 %v619, %v620
        %v622 = vmax.f32 %v621, %v304
        %v623 = vlaneseq
        %v624 = vshrl.u32 %v623, 7
        %v625 = vsub.s32 0, %v624
        %v626 = vrot.slane %v622, %v625
        %v627 = vsub.f32 %v449, %v626
        %v628 = vsub.f32 %v454, %v626
        %v629 = vsub.f32 %v459, %v626
        %v630 = vsub.f32 %v464, %v626
        %v631 = vsub.f32 %v469, %v626
        %v632 = vsub.f32 %v474, %v626
        %v633 = vsub.f32 %v479, %v626
        %v634 = vsub.f32 %v484, %v626
        %v635 = vmul.f32 %v627, 1.442695
        %v636 = vpow.pop %v635
        %v637 = vmul.f32 %v628, 1.442695
        %v638 = vpow.pop %v637
        %v639 = vmul.f32 %v629, 1.442695
        %v640 = vpow.pop %v639
        %v641 = vmul.f32 %v630, 1.442695
        %v642 = vpow.pop %v641
        %v643 = vmul.f32 %v631, 1.442695
        %v644 = vpow.pop %v643
        %v645 = vmul.f32 %v632, 1.442695
        %v646 = vpow.pop %v645
        %v647 = vmul.f32 %v633, 1.442695
        %v648 = vpow.pop %v647
        %v649 = vmul.f32 %v634, 1.442695
        %v650 = vpow.pop %v649
        %v651 = vsub.f32 %v304, %v622
        %v652 = vmul.f32 %v651, 1.442695
        %v653 = vpow.pop %v652
        %v654 = vlaneseq
        %v655 = vand.u32 %v654, 127
        %v656 = vlaneseq
        %v657 = vshrl.u32 %v656, 7
        %v658 = vmul.u32 %v657, 64
        %vm659 = vcmp.ge.s32.totalorder %v655, %v658
        %v660 = vadd.s32 %v658, 64
        %vm661 = vcmp.lt.s32.totalorder %v655, %v660
        %vm662 = vmand %vm659, %vm661
        %v663 = vsel %vm662, 1, 0
        %v664 = vcvt.s32.f32 %v663
        %v665 = vmul.u32 %v657, 4
        %vm666 = vcmp.ge.s32.totalorder %v655, %v665
        %v667 = vadd.s32 %v665, 4
        %vm668 = vcmp.lt.s32.totalorder %v655, %v667
        %vm669 = vmand %vm666, %vm668
        %v670 = vsel %vm669, 1, 0
        %v671 = vcvt.s32.f32 %v670
        %vm672 = vcmask 523264
        %v674 = vsel %vm672, %v664, 0
        %676 = vmatprep.subr.mxu0 0.0
        %677 = vmatpush1.msra.mxu0 %v636
        %678 = vmatprep.subr.mxu0 0.0
        %679 = vmatpush1.msra.mxu0 %v638
        %680 = vmatprep.subr.mxu0 0.0
        %681 = vmatpush1.msra.mxu0 %v640
        %682 = vmatprep.subr.mxu0 0.0
        %683 = vmatpush1.msra.mxu0 %v642
        %684 = vmatprep.subr.mxu0 0.0
        %685 = vmatpush1.msra.mxu0 %v644
        %686 = vmatprep.subr.mxu0 0.0
        %687 = vmatpush1.msra.mxu0 %v646
        %688 = vmatprep.subr.mxu0 0.0
        %689 = vmatpush1.msra.mxu0 %v648
        %690 = vmatprep.subr.mxu0 0.0
        %691 = vmatpush1.msra.mxu0 %v650
        %692 = vmatprep.subr.mxu0 0.0
        %693 = vmatpush1.msra.mxu0 0.0
        %694 = vmatprep.subr.mxu0 0.0
        %695 = vmatpush1.msra.mxu0 0.0
        %696 = vmatprep.subr.mxu0 0.0
        %697 = vmatpush1.msra.mxu0 0.0
        %698 = vmatprep.subr.mxu0 0.0
        %699 = vmatpush1.msra.mxu0 0.0
        %700 = vmatprep.subr.mxu0 0.0
        %701 = vmatpush1.msra.mxu0 0.0
        %702 = vmatprep.subr.mxu0 0.0
        %703 = vmatpush1.msra.mxu0 0.0
        %704 = vmatprep.subr.mxu0 0.0
        %705 = vmatpush1.msra.mxu0 0.0
        %706 = vmatprep.subr.mxu0 0.0
        %707 = vmatpush1.msra.mxu0 0.0
        %708 = vmatprep.subr.mxu0 0.0
        %709 = vmatpush1.msra.mxu0 0.0
        %710 = vmatprep.subr.mxu0 0.0
        %711 = vmatpush1.msra.mxu0 0.0
        %712 = vmatprep.subr.mxu0 0.0
        %713 = vmatpush1.msra.mxu0 0.0
        %714 = vmatprep.subr.mxu0 0.0
        %715 = vmatpush1.msra.mxu0 0.0
        %716 = vmatprep.subr.mxu0 0.0
        %717 = vmatpush1.msra.mxu0 0.0
        %718 = vmatprep.subr.mxu0 0.0
        %719 = vmatpush1.msra.mxu0 0.0
        %720 = vmatprep.subr.mxu0 0.0
        %721 = vmatpush1.msra.mxu0 0.0
        %722 = vmatprep.subr.mxu0 0.0
        %723 = vmatpush1.msra.mxu0 0.0
        %724 = vmatprep.subr.mxu0 0.0
        %725 = vmatpush1.msra.mxu0 0.0
        %726 = vmatprep.subr.mxu0 0.0
        %727 = vmatpush1.msra.mxu0 0.0
        %728 = vmatprep.subr.mxu0 0.0
        %729 = vmatpush1.msra.mxu0 0.0
        %730 = vmatprep.subr.mxu0 0.0
        %731 = vmatpush1.msra.mxu0 0.0
        %732 = vmatprep.subr.mxu0 0.0
        %733 = vmatpush1.msra.mxu0 0.0
        %734 = vmatprep.subr.mxu0 0.0
        %735 = vmatpush1.msra.mxu0 0.0
        %736 = vmatprep.subr.mxu0 0.0
        %737 = vmatpush1.msra.mxu0 0.0
        %738 = vmatprep.subr.mxu0 0.0
        %739 = vmatpush1.msra.mxu0 0.0
        %740 = vmatprep.mubr.f32.mxu0 0.0
        %741 = vmatmul.mubr.f32.gmra.mrb[0].mxu0 %v674
        %v742 = vpop.f32.mrb[0].mxu0
        %v743 = vadd.f32 %v653, %v742
        %v744 = vpop.f32.mrb[0].mxu0
        %745 = vdwg.mxu0
        %v746 = vrcp.pop %v743
        %v748 = vsel %vm600, %v636, 0
        %v751 = vsel %vm600, %v638, 0
        %v754 = vsel %vm600, %v640, 0
        %v757 = vsel %vm600, %v642, 0
        %v760 = vsel %vm600, %v644, 0
        %v763 = vsel %vm600, %v646, 0
        %v766 = vsel %vm600, %v648, 0
        %v769 = vsel %vm600, %v650, 0
        %771 = vmatprep.subr.mxu0 0.0
        %772 = vmatpush1.msra.mxu0 %v671
        %773 = vmatprep.subr.mxu0 0.0
        %774 = vmatpush1.msra.mxu0 0.0
        %775 = vmatprep.subr.mxu0 0.0
        %776 = vmatpush1.msra.mxu0 0.0
        %777 = vmatprep.subr.mxu0 0.0
        %778 = vmatpush1.msra.mxu0 0.0
        %779 = vmatprep.subr.mxu0 0.0
        %780 = vmatpush1.msra.mxu0 0.0
        %781 = vmatprep.subr.mxu0 0.0
        %782 = vmatpush1.msra.mxu0 0.0
        %783 = vmatprep.subr.mxu0 0.0
        %784 = vmatpush1.msra.mxu0 0.0
        %785 = vmatprep.subr.mxu0 0.0
        %786 = vmatpush1.msra.mxu0 0.0
        %787 = vmatprep.subr.mxu0 0.0
        %788 = vmatpush1.msra.mxu0 0.0
        %789 = vmatprep.subr.mxu0 0.0
        %790 = vmatpush1.msra.mxu0 0.0
        %791 = vmatprep.subr.mxu0 0.0
        %792 = vmatpush1.msra.mxu0 0.0
        %793 = vmatprep.subr.mxu0 0.0
        %794 = vmatpush1.msra.mxu0 0.0
        %795 = vmatprep.subr.mxu0 0.0
        %796 = vmatpush1.msra.mxu0 0.0
        %797 = vmatprep.subr.mxu0 0.0
        %798 = vmatpush1.msra.mxu0 0.0
        %799 = vmatprep.subr.mxu0 0.0
        %800 = vmatpush1.msra.mxu0 0.0
        %801 = vmatprep.subr.mxu0 0.0
        %802 = vmatpush1.msra.mxu0 0.0
        %803 = vmatprep.subr.mxu0 0.0
        %804 = vmatpush1.msra.mxu0 0.0
        %805 = vmatprep.subr.mxu0 0.0
        %806 = vmatpush1.msra.mxu0 0.0
        %807 = vmatprep.subr.mxu0 0.0
        %808 = vmatpush1.msra.mxu0 0.0
        %809 = vmatprep.subr.mxu0 0.0
        %810 = vmatpush1.msra.mxu0 0.0
        %811 = vmatprep.subr.mxu0 0.0
        %812 = vmatpush1.msra.mxu0 0.0
        %813 = vmatprep.subr.mxu0 0.0
        %814 = vmatpush1.msra.mxu0 0.0
        %815 = vmatprep.subr.mxu0 0.0
        %816 = vmatpush1.msra.mxu0 0.0
        %817 = vmatprep.subr.mxu0 0.0
        %818 = vmatpush1.msra.mxu0 0.0
        %819 = vmatprep.subr.mxu0 0.0
        %820 = vmatpush1.msra.mxu0 0.0
        %821 = vmatprep.subr.mxu0 0.0
        %822 = vmatpush1.msra.mxu0 0.0
        %823 = vmatprep.subr.mxu0 0.0
        %824 = vmatpush1.msra.mxu0 0.0
        %825 = vmatprep.subr.mxu0 0.0
        %826 = vmatpush1.msra.mxu0 0.0
        %827 = vmatprep.subr.mxu0 0.0
        %828 = vmatpush1.msra.mxu0 0.0
        %829 = vmatprep.subr.mxu0 0.0
        %830 = vmatpush1.msra.mxu0 0.0
        %831 = vmatprep.subr.mxu0 0.0
        %832 = vmatpush1.msra.mxu0 0.0
        %833 = vmatprep.subr.mxu0 0.0
        %834 = vmatpush1.msra.mxu0 0.0
        %835 = vmatprep.mubr.f32.mxu0 0.0
        %836 = vmatmul.mubr.f32.gmra.mrb[0].mxu0 %v748
        %v837 = vpop.f32.mrb[0].mxu0
        %v838 = vadd.f32 0.0, %v837
        %v839 = vpop.f32.mrb[0].mxu0
        %840 = vmatprep.mubr.f32.mxu0 0.0
        %841 = vmatmul.mubr.f32.gmra.mrb[0].mxu0 %v751
        %v842 = vpop.f32.mrb[0].mxu0
        %v843 = vadd.f32 0.0, %v842
        %v844 = vpop.f32.mrb[0].mxu0
        %845 = vmatprep.mubr.f32.mxu0 0.0
        %846 = vmatmul.mubr.f32.gmra.mrb[0].mxu0 %v754
        %v847 = vpop.f32.mrb[0].mxu0
        %v848 = vadd.f32 0.0, %v847
        %v849 = vpop.f32.mrb[0].mxu0
        %850 = vmatprep.mubr.f32.mxu0 0.0
        %851 = vmatmul.mubr.f32.gmra.mrb[0].mxu0 %v757
        %v852 = vpop.f32.mrb[0].mxu0
        %v853 = vadd.f32 0.0, %v852
        %v854 = vpop.f32.mrb[0].mxu0
        %855 = vmatprep.mubr.f32.mxu0 0.0
        %856 = vmatmul.mubr.f32.gmra.mrb[0].mxu0 %v760
        %v857 = vpop.f32.mrb[0].mxu0
        %v858 = vadd.f32 0.0, %v857
        %v859 = vpop.f32.mrb[0].mxu0
        %860 = vmatprep.mubr.f32.mxu0 0.0
        %861 = vmatmul.mubr.f32.gmra.mrb[0].mxu0 %v763
        %v862 = vpop.f32.mrb[0].mxu0
        %v863 = vadd.f32 0.0, %v862
        %v864 = vpop.f32.mrb[0].mxu0
        %865 = vmatprep.mubr.f32.mxu0 0.0
        %866 = vmatmul.mubr.f32.gmra.mrb[0].mxu0 %v766
        %v867 = vpop.f32.mrb[0].mxu0
        %v868 = vadd.f32 0.0, %v867
        %v869 = vpop.f32.mrb[0].mxu0
        %870 = vmatprep.mubr.f32.mxu0 0.0
        %871 = vmatmul.mubr.f32.gmra.mrb[0].mxu0 %v769
        %v872 = vpop.f32.mrb[0].mxu0
        %v873 = vadd.f32 0.0, %v872
        %v874 = vpop.f32.mrb[0].mxu0
        %875 = vdwg.mxu0
        %v876 = vmul.f32 %v838, %v562
        %v877 = vmul.f32 %v843, %v567
        %v878 = vmul.f32 %v848, %v572
        %v879 = vmul.f32 %v853, %v577
        %v880 = vmul.f32 %v858, %v582
        %v881 = vmul.f32 %v863, %v587
        %v882 = vmul.f32 %v868, %v592
        %v883 = vmul.f32 %v873, %v597
        %v885 = vsel %vm600, %v653, 0
        %887 = vmatprep.subr.mxu0 0.0
        %888 = vmatpush1.msra.mxu0 %v671
        %889 = vmatprep.subr.mxu0 0.0
        %890 = vmatpush1.msra.mxu0 0.0
        %891 = vmatprep.subr.mxu0 0.0
        %892 = vmatpush1.msra.mxu0 0.0
        %893 = vmatprep.subr.mxu0 0.0
        %894 = vmatpush1.msra.mxu0 0.0
        %895 = vmatprep.subr.mxu0 0.0
        %896 = vmatpush1.msra.mxu0 0.0
        %897 = vmatprep.subr.mxu0 0.0
        %898 = vmatpush1.msra.mxu0 0.0
        %899 = vmatprep.subr.mxu0 0.0
        %900 = vmatpush1.msra.mxu0 0.0
        %901 = vmatprep.subr.mxu0 0.0
        %902 = vmatpush1.msra.mxu0 0.0
        %903 = vmatprep.subr.mxu0 0.0
        %904 = vmatpush1.msra.mxu0 0.0
        %905 = vmatprep.subr.mxu0 0.0
        %906 = vmatpush1.msra.mxu0 0.0
        %907 = vmatprep.subr.mxu0 0.0
        %908 = vmatpush1.msra.mxu0 0.0
        %909 = vmatprep.subr.mxu0 0.0
        %910 = vmatpush1.msra.mxu0 0.0
        %911 = vmatprep.subr.mxu0 0.0
        %912 = vmatpush1.msra.mxu0 0.0
        %913 = vmatprep.subr.mxu0 0.0
        %914 = vmatpush1.msra.mxu0 0.0
        %915 = vmatprep.subr.mxu0 0.0
        %916 = vmatpush1.msra.mxu0 0.0
        %917 = vmatprep.subr.mxu0 0.0
        %918 = vmatpush1.msra.mxu0 0.0
        %919 = vmatprep.subr.mxu0 0.0
        %920 = vmatpush1.msra.mxu0 0.0
        %921 = vmatprep.subr.mxu0 0.0
        %922 = vmatpush1.msra.mxu0 0.0
        %923 = vmatprep.subr.mxu0 0.0
        %924 = vmatpush1.msra.mxu0 0.0
        %925 = vmatprep.subr.mxu0 0.0
        %926 = vmatpush1.msra.mxu0 0.0
        %927 = vmatprep.subr.mxu0 0.0
        %928 = vmatpush1.msra.mxu0 0.0
        %929 = vmatprep.subr.mxu0 0.0
        %930 = vmatpush1.msra.mxu0 0.0
        %931 = vmatprep.subr.mxu0 0.0
        %932 = vmatpush1.msra.mxu0 0.0
        %933 = vmatprep.subr.mxu0 0.0
        %934 = vmatpush1.msra.mxu0 0.0
        %935 = vmatprep.subr.mxu0 0.0
        %936 = vmatpush1.msra.mxu0 0.0
        %937 = vmatprep.subr.mxu0 0.0
        %938 = vmatpush1.msra.mxu0 0.0
        %939 = vmatprep.subr.mxu0 0.0
        %940 = vmatpush1.msra.mxu0 0.0
        %941 = vmatprep.subr.mxu0 0.0
        %942 = vmatpush1.msra.mxu0 0.0
        %943 = vmatprep.subr.mxu0 0.0
        %944 = vmatpush1.msra.mxu0 0.0
        %945 = vmatprep.subr.mxu0 0.0
        %946 = vmatpush1.msra.mxu0 0.0
        %947 = vmatprep.subr.mxu0 0.0
        %948 = vmatpush1.msra.mxu0 0.0
        %949 = vmatprep.subr.mxu0 0.0
        %950 = vmatpush1.msra.mxu0 0.0
        %951 = vmatprep.mubr.f32.mxu0 0.0
        %952 = vmatmul.mubr.f32.gmra.mrb[0].mxu0 %v885
        %v953 = vpop.f32.mrb[0].mxu0
        %v954 = vadd.f32 0.0, %v953
        %v955 = vpop.f32.mrb[0].mxu0
        %956 = vdwg.mxu0
        %v957 = vmul.f32 %v954, %v306
        %958 = vmatprep.subr.mxu0 0.0
        %959 = vmatpush1.msra.mxu0 %v876
        %960 = vmatprep.subr.mxu0 0.0
        %961 = vmatpush1.msra.mxu0 %v877
        %962 = vmatprep.subr.mxu0 0.0
        %963 = vmatpush1.msra.mxu0 %v878
        %964 = vmatprep.subr.mxu0 0.0
        %965 = vmatpush1.msra.mxu0 %v879
        %966 = vmatprep.subr.mxu0 0.0
        %967 = vmatpush1.msra.mxu0 %v880
        %968 = vmatprep.subr.mxu0 0.0
        %969 = vmatpush1.msra.mxu0 %v881
        %970 = vmatprep.subr.mxu0 0.0
        %971 = vmatpush1.msra.mxu0 %v882
        %972 = vmatprep.subr.mxu0 0.0
        %973 = vmatpush1.msra.mxu0 %v883
        %974 = vmatprep.subr.mxu0 0.0
        %975 = vmatpush1.msra.mxu0 0.0
        %976 = vmatprep.subr.mxu0 0.0
        %977 = vmatpush1.msra.mxu0 0.0
        %978 = vmatprep.subr.mxu0 0.0
        %979 = vmatpush1.msra.mxu0 0.0
        %980 = vmatprep.subr.mxu0 0.0
        %981 = vmatpush1.msra.mxu0 0.0
        %982 = vmatprep.subr.mxu0 0.0
        %983 = vmatpush1.msra.mxu0 0.0
        %984 = vmatprep.subr.mxu0 0.0
        %985 = vmatpush1.msra.mxu0 0.0
        %986 = vmatprep.subr.mxu0 0.0
        %987 = vmatpush1.msra.mxu0 0.0
        %988 = vmatprep.subr.mxu0 0.0
        %989 = vmatpush1.msra.mxu0 0.0
        %990 = vmatprep.subr.mxu0 0.0
        %991 = vmatpush1.msra.mxu0 0.0
        %992 = vmatprep.subr.mxu0 0.0
        %993 = vmatpush1.msra.mxu0 0.0
        %994 = vmatprep.subr.mxu0 0.0
        %995 = vmatpush1.msra.mxu0 0.0
        %996 = vmatprep.subr.mxu0 0.0
        %997 = vmatpush1.msra.mxu0 0.0
        %998 = vmatprep.subr.mxu0 0.0
        %999 = vmatpush1.msra.mxu0 0.0
        %1000 = vmatprep.subr.mxu0 0.0
        %1001 = vmatpush1.msra.mxu0 0.0
        %1002 = vmatprep.subr.mxu0 0.0
        %1003 = vmatpush1.msra.mxu0 0.0
        %1004 = vmatprep.subr.mxu0 0.0
        %1005 = vmatpush1.msra.mxu0 0.0
        %1006 = vmatprep.subr.mxu0 0.0
        %1007 = vmatpush1.msra.mxu0 0.0
        %1008 = vmatprep.subr.mxu0 0.0
        %1009 = vmatpush1.msra.mxu0 0.0
        %1010 = vmatprep.subr.mxu0 0.0
        %1011 = vmatpush1.msra.mxu0 0.0
        %1012 = vmatprep.subr.mxu0 0.0
        %1013 = vmatpush1.msra.mxu0 0.0
        %1014 = vmatprep.subr.mxu0 0.0
        %1015 = vmatpush1.msra.mxu0 0.0
        %1016 = vmatprep.subr.mxu0 0.0
        %1017 = vmatpush1.msra.mxu0 0.0
        %1018 = vmatprep.subr.mxu0 0.0
        %1019 = vmatpush1.msra.mxu0 0.0
        %1020 = vmatprep.subr.mxu0 0.0
        %1021 = vmatpush1.msra.mxu0 0.0
        %1022 = vmatprep.mubr.f32.mxu0 0.0
        %1023 = vmatmul.mubr.f32.gmra.mrb[0].mxu0 %v674
        %v1024 = vpop.f32.mrb[0].mxu0
        %v1025 = vadd.f32 %v957, %v1024
        %v1026 = vpop.f32.mrb[0].mxu0
        %1027 = vdwg.mxu0
        %v1029 = vsel %vm600, %v746, 0
        %1031 = vmatprep.subr.mxu0 0.0
        %1032 = vmatpush1.msra.mxu0 %v671
        %1033 = vmatprep.subr.mxu0 0.0
        %1034 = vmatpush1.msra.mxu0 0.0
        %1035 = vmatprep.subr.mxu0 0.0
        %1036 = vmatpush1.msra.mxu0 0.0
        %1037 = vmatprep.subr.mxu0 0.0
        %1038 = vmatpush1.msra.mxu0 0.0
        %1039 = vmatprep.subr.mxu0 0.0
        %1040 = vmatpush1.msra.mxu0 0.0
        %1041 = vmatprep.subr.mxu0 0.0
        %1042 = vmatpush1.msra.mxu0 0.0
        %1043 = vmatprep.subr.mxu0 0.0
        %1044 = vmatpush1.msra.mxu0 0.0
        %1045 = vmatprep.subr.mxu0 0.0
        %1046 = vmatpush1.msra.mxu0 0.0
        %1047 = vmatprep.subr.mxu0 0.0
        %1048 = vmatpush1.msra.mxu0 0.0
        %1049 = vmatprep.subr.mxu0 0.0
        %1050 = vmatpush1.msra.mxu0 0.0
        %1051 = vmatprep.subr.mxu0 0.0
        %1052 = vmatpush1.msra.mxu0 0.0
        %1053 = vmatprep.subr.mxu0 0.0
        %1054 = vmatpush1.msra.mxu0 0.0
        %1055 = vmatprep.subr.mxu0 0.0
        %1056 = vmatpush1.msra.mxu0 0.0
        %1057 = vmatprep.subr.mxu0 0.0
        %1058 = vmatpush1.msra.mxu0 0.0
        %1059 = vmatprep.subr.mxu0 0.0
        %1060 = vmatpush1.msra.mxu0 0.0
        %1061 = vmatprep.subr.mxu0 0.0
        %1062 = vmatpush1.msra.mxu0 0.0
        %1063 = vmatprep.subr.mxu0 0.0
        %1064 = vmatpush1.msra.mxu0 0.0
        %1065 = vmatprep.subr.mxu0 0.0
        %1066 = vmatpush1.msra.mxu0 0.0
        %1067 = vmatprep.subr.mxu0 0.0
        %1068 = vmatpush1.msra.mxu0 0.0
        %1069 = vmatprep.subr.mxu0 0.0
        %1070 = vmatpush1.msra.mxu0 0.0
        %1071 = vmatprep.subr.mxu0 0.0
        %1072 = vmatpush1.msra.mxu0 0.0
        %1073 = vmatprep.subr.mxu0 0.0
        %1074 = vmatpush1.msra.mxu0 0.0
        %1075 = vmatprep.subr.mxu0 0.0
        %1076 = vmatpush1.msra.mxu0 0.0
        %1077 = vmatprep.subr.mxu0 0.0
        %1078 = vmatpush1.msra.mxu0 0.0
        %1079 = vmatprep.subr.mxu0 0.0
        %1080 = vmatpush1.msra.mxu0 0.0
        %1081 = vmatprep.subr.mxu0 0.0
        %1082 = vmatpush1.msra.mxu0 0.0
        %1083 = vmatprep.subr.mxu0 0.0
        %1084 = vmatpush1.msra.mxu0 0.0
        %1085 = vmatprep.subr.mxu0 0.0
        %1086 = vmatpush1.msra.mxu0 0.0
        %1087 = vmatprep.subr.mxu0 0.0
        %1088 = vmatpush1.msra.mxu0 0.0
        %1089 = vmatprep.subr.mxu0 0.0
        %1090 = vmatpush1.msra.mxu0 0.0
        %1091 = vmatprep.subr.mxu0 0.0
        %1092 = vmatpush1.msra.mxu0 0.0
        %1093 = vmatprep.subr.mxu0 0.0
        %1094 = vmatpush1.msra.mxu0 0.0
        %1095 = vmatprep.mubr.f32.mxu0 0.0
        %1096 = vmatmul.mubr.f32.gmra.mrb[0].mxu0 %v1029
        %v1097 = vpop.f32.mrb[0].mxu0
        %v1098 = vadd.f32 0.0, %v1097
        %v1099 = vpop.f32.mrb[0].mxu0
        %1100 = vdwg.mxu0
        %v1101 = vmul.f32 %v1025, %v1098
        %v1102 = vld [vmem:[%s4] sm:$0xff]
        %v1103 = vld [vmem:[%s4 + $0x8] sm:$0xff]
        %v1104 = vld [vmem:[%s4 + $0x10] sm:$0xff]
        %v1105 = vld [vmem:[%s4 + $0x18] sm:$0xff]
        %v1107 = vsel %vm357, %v1101, 0
        %1109 = vmatprep.subr.mxu0 0.0
        %1110 = vmatpush1.msra.mxu0 %v1102
        %1111 = vmatprep.subr.mxu0 0.0
        %1112 = vmatpush1.msra.mxu0 %v1103
        %1113 = vmatprep.subr.mxu0 0.0
        %1114 = vmatpush1.msra.mxu0 %v1104
        %1115 = vmatprep.subr.mxu0 0.0
        %1116 = vmatpush1.msra.mxu0 %v1105
        %1117 = vmatprep.subr.mxu0 0.0
        %1118 = vmatpush1.msra.mxu0 0.0
        %1119 = vmatprep.subr.mxu0 0.0
        %1120 = vmatpush1.msra.mxu0 0.0
        %1121 = vmatprep.subr.mxu0 0.0
        %1122 = vmatpush1.msra.mxu0 0.0
        %1123 = vmatprep.subr.mxu0 0.0
        %1124 = vmatpush1.msra.mxu0 0.0
        %1125 = vmatprep.subr.mxu0 0.0
        %1126 = vmatpush1.msra.mxu0 0.0
        %1127 = vmatprep.subr.mxu0 0.0
        %1128 = vmatpush1.msra.mxu0 0.0
        %1129 = vmatprep.subr.mxu0 0.0
        %1130 = vmatpush1.msra.mxu0 0.0
        %1131 = vmatprep.subr.mxu0 0.0
        %1132 = vmatpush1.msra.mxu0 0.0
        %1133 = vmatprep.subr.mxu0 0.0
        %1134 = vmatpush1.msra.mxu0 0.0
        %1135 = vmatprep.subr.mxu0 0.0
        %1136 = vmatpush1.msra.mxu0 0.0
        %1137 = vmatprep.subr.mxu0 0.0
        %1138 = vmatpush1.msra.mxu0 0.0
        %1139 = vmatprep.subr.mxu0 0.0
        %1140 = vmatpush1.msra.mxu0 0.0
        %1141 = vmatprep.subr.mxu0 0.0
        %1142 = vmatpush1.msra.mxu0 0.0
        %1143 = vmatprep.subr.mxu0 0.0
        %1144 = vmatpush1.msra.mxu0 0.0
        %1145 = vmatprep.subr.mxu0 0.0
        %1146 = vmatpush1.msra.mxu0 0.0
        %1147 = vmatprep.subr.mxu0 0.0
        %1148 = vmatpush1.msra.mxu0 0.0
        %1149 = vmatprep.subr.mxu0 0.0
        %1150 = vmatpush1.msra.mxu0 0.0
        %1151 = vmatprep.subr.mxu0 0.0
        %1152 = vmatpush1.msra.mxu0 0.0
        %1153 = vmatprep.subr.mxu0 0.0
        %1154 = vmatpush1.msra.mxu0 0.0
        %1155 = vmatprep.subr.mxu0 0.0
        %1156 = vmatpush1.msra.mxu0 0.0
        %1157 = vmatprep.subr.mxu0 0.0
        %1158 = vmatpush1.msra.mxu0 0.0
        %1159 = vmatprep.subr.mxu0 0.0
        %1160 = vmatpush1.msra.mxu0 0.0
        %1161 = vmatprep.subr.mxu0 0.0
        %1162 = vmatpush1.msra.mxu0 0.0
        %1163 = vmatprep.subr.mxu0 0.0
        %1164 = vmatpush1.msra.mxu0 0.0
        %1165 = vmatprep.subr.mxu0 0.0
        %1166 = vmatpush1.msra.mxu0 0.0
        %1167 = vmatprep.subr.mxu0 0.0
        %1168 = vmatpush1.msra.mxu0 0.0
        %1169 = vmatprep.subr.mxu0 0.0
        %1170 = vmatpush1.msra.mxu0 0.0
        %1171 = vmatprep.subr.mxu0 0.0
        %1172 = vmatpush1.msra.mxu0 0.0
        %1173 = vmatprep.mubr.f32.mxu0 0.0
        %1174 = vmatmul.mubr.f32.gmra.mrb[0].mxu0 %v1107
        %v1175 = vpop.f32.mrb[0].mxu0
        %v1176 = vadd.f32 %v307, %v1175
        %v1177 = vpop.f32.mrb[0].mxu0
        %1178 = vdwg.mxu0
        %vm1179 = vcmask 253952
        %v1180 = vsel %vm1179, %v1176, 0.0
        %1181 = vadd.xlane.f32.xlu0 %v1180
        %v1182 = vpop.xlane.xlu0 %1181
        %v1183 = vrcp.pop 32.0
        %v1184 = vmul.f32 %v1182, %v1183
        %v1185 = vsub.f32 %v1176, %v1184
        %v1186 = vmul.f32 %v1185, %v1185
        %v1187 = vsel %vm1179, %v1186, 0.0
        %1188 = vadd.xlane.f32.xlu0 %v1187
        %v1189 = vpop.xlane.xlu0 %1188
        %v1190 = vmul.f32 %v1189, %v1183
        %v1191 = vadd.f32 %v1190, 1e-05
        %v1192 = vrsqrt.pop %v1191
        %v1193 = vmul.f32 %v1185, %v1192
        %v1194 = vmul.f32 %v1193, %v308
        %v1195 = vadd.f32 %v1194, %v309
        %v1196 = vld [vmem:[%s5] sm:$0xff]
        %v1197 = vld [vmem:[%s5 + $0x8] sm:$0xff]
        %v1198 = vld [vmem:[%s5 + $0x10] sm:$0xff]
        %v1199 = vld [vmem:[%s5 + $0x18] sm:$0xff]
        %v1200 = vld [vmem:[%s5 + $0x20] sm:$0xff]
        %v1201 = vld [vmem:[%s5 + $0x28] sm:$0xff]
        %v1202 = vld [vmem:[%s5 + $0x30] sm:$0xff]
        %v1203 = vld [vmem:[%s5 + $0x38] sm:$0xff]
        %v1204 = vld [vmem:[%s5 + $0x40] sm:$0xff]
        %v1205 = vld [vmem:[%s5 + $0x48] sm:$0xff]
        %v1206 = vld [vmem:[%s5 + $0x50] sm:$0xff]
        %v1207 = vld [vmem:[%s5 + $0x58] sm:$0xff]
        %v1208 = vld [vmem:[%s5 + $0x60] sm:$0xff]
        %v1209 = vld [vmem:[%s5 + $0x68] sm:$0xff]
        %v1210 = vld [vmem:[%s5 + $0x70] sm:$0xff]
        %v1211 = vld [vmem:[%s5 + $0x78] sm:$0xff]
        %v1212 = vld [vmem:[%s5 + $0x80] sm:$0xff]
        %v1213 = vld [vmem:[%s5 + $0x88] sm:$0xff]
        %v1214 = vld [vmem:[%s5 + $0x90] sm:$0xff]
        %v1215 = vld [vmem:[%s5 + $0x98] sm:$0xff]
        %v1216 = vld [vmem:[%s5 + $0xa0] sm:$0xff]
        %v1217 = vld [vmem:[%s5 + $0xa8] sm:$0xff]
        %v1218 = vld [vmem:[%s5 + $0xb0] sm:$0xff]
        %v1219 = vld [vmem:[%s5 + $0xb8] sm:$0xff]
        %v1220 = vld [vmem:[%s5 + $0xc0] sm:$0xff]
        %v1221 = vld [vmem:[%s5 + $0xc8] sm:$0xff]
        %v1222 = vld [vmem:[%s5 + $0xd0] sm:$0xff]
        %v1223 = vld [vmem:[%s5 + $0xd8] sm:$0xff]
        %v1224 = vld [vmem:[%s5 + $0xe0] sm:$0xff]
        %v1225 = vld [vmem:[%s5 + $0xe8] sm:$0xff]
        %v1226 = vld [vmem:[%s5 + $0xf0] sm:$0xff]
        %v1227 = vld [vmem:[%s5 + $0xf8] sm:$0xff]
        %v1228 = vld [vmem:[%s5 + $0x100] sm:$0xff]
        %v1229 = vld [vmem:[%s5 + $0x108] sm:$0xff]
        %v1230 = vld [vmem:[%s5 + $0x110] sm:$0xff]
        %v1231 = vld [vmem:[%s5 + $0x118] sm:$0xff]
        %v1232 = vld [vmem:[%s5 + $0x120] sm:$0xff]
        %v1233 = vld [vmem:[%s5 + $0x128] sm:$0xff]
        %v1234 = vld [vmem:[%s5 + $0x130] sm:$0xff]
        %v1235 = vld [vmem:[%s5 + $0x138] sm:$0xff]
        %v1236 = vld [vmem:[%s5 + $0x140] sm:$0xff]
        %v1237 = vld [vmem:[%s5 + $0x148] sm:$0xff]
        %v1238 = vld [vmem:[%s5 + $0x150] sm:$0xff]
        %v1239 = vld [vmem:[%s5 + $0x158] sm:$0xff]
        %v1240 = vld [vmem:[%s5 + $0x160] sm:$0xff]
        %v1241 = vld [vmem:[%s5 + $0x168] sm:$0xff]
        %v1242 = vld [vmem:[%s5 + $0x170] sm:$0xff]
        %v1243 = vld [vmem:[%s5 + $0x178] sm:$0xff]
        %v1244 = vld [vmem:[%s5 + $0x180] sm:$0xff]
        %v1245 = vld [vmem:[%s5 + $0x188] sm:$0xff]
        %v1246 = vld [vmem:[%s5 + $0x190] sm:$0xff]
        %v1247 = vld [vmem:[%s5 + $0x198] sm:$0xff]
        %v1248 = vld [vmem:[%s5 + $0x1a0] sm:$0xff]
        %v1249 = vld [vmem:[%s5 + $0x1a8] sm:$0xff]
        %v1250 = vld [vmem:[%s5 + $0x1b0] sm:$0xff]
        %v1251 = vld [vmem:[%s5 + $0x1b8] sm:$0xff]
        %v1252 = vld [vmem:[%s5 + $0x1c0] sm:$0xff]
        %v1253 = vld [vmem:[%s5 + $0x1c8] sm:$0xff]
        %v1254 = vld [vmem:[%s5 + $0x1d0] sm:$0xff]
        %v1255 = vld [vmem:[%s5 + $0x1d8] sm:$0xff]
        %v1256 = vld [vmem:[%s5 + $0x1e0] sm:$0xff]
        %v1257 = vld [vmem:[%s5 + $0x1e8] sm:$0xff]
        %v1258 = vld [vmem:[%s5 + $0x1f0] sm:$0xff]
        %v1259 = vld [vmem:[%s5 + $0x1f8] sm:$0xff]
        %s1260 = scalar_lea.vmem %s5, 512
        %v1261 = vld [vmem:[%s1260] ss:$8 sm:$0xf]
        %v1262 = vld [vmem:[%s1260] ss:$8 sm:$0xf0]
        %v1263 = vor.u32 %v1261, %v1262
        %s1264 = scalar_lea.vmem %s5, 576
        %v1265 = vld [vmem:[%s1264] ss:$8 sm:$0xf]
        %v1266 = vld [vmem:[%s1264] ss:$8 sm:$0xf0]
        %v1267 = vor.u32 %v1265, %v1266
        %v1270 = vlaneseq
        %v1271 = vshrl.u32 %v1270, 7
        %v1272 = vsub.s32 0, %v1271
        %v1273 = vrot.slane %v1263, %v1272
        %v1274 = vlaneseq
        %v1275 = vshrl.u32 %v1274, 7
        %v1276 = vsub.s32 1, %v1275
        %v1277 = vrot.slane %v1263, %v1276
        %v1278 = vlaneseq
        %v1279 = vshrl.u32 %v1278, 7
        %v1280 = vsub.s32 2, %v1279
        %v1281 = vrot.slane %v1263, %v1280
        %v1282 = vlaneseq
        %v1283 = vshrl.u32 %v1282, 7
        %v1284 = vsub.s32 3, %v1283
        %v1285 = vrot.slane %v1263, %v1284
        %v1286 = vlaneseq
        %v1287 = vshrl.u32 %v1286, 7
        %v1288 = vsub.s32 4, %v1287
        %v1289 = vrot.slane %v1263, %v1288
        %v1290 = vlaneseq
        %v1291 = vshrl.u32 %v1290, 7
        %v1292 = vsub.s32 5, %v1291
        %v1293 = vrot.slane %v1263, %v1292
        %v1294 = vlaneseq
        %v1295 = vshrl.u32 %v1294, 7
        %v1296 = vsub.s32 6, %v1295
        %v1297 = vrot.slane %v1263, %v1296
        %v1298 = vlaneseq
        %v1299 = vshrl.u32 %v1298, 7
        %v1300 = vsub.s32 7, %v1299
        %v1301 = vrot.slane %v1263, %v1300
        %v1302 = vlaneseq
        %v1303 = vshrl.u32 %v1302, 7
        %v1304 = vsub.s32 0, %v1303
        %v1305 = vrot.slane %v1267, %v1304
        %v1306 = vlaneseq
        %v1307 = vshrl.u32 %v1306, 7
        %v1308 = vsub.s32 1, %v1307
        %v1309 = vrot.slane %v1267, %v1308
        %v1310 = vlaneseq
        %v1311 = vshrl.u32 %v1310, 7
        %v1312 = vsub.s32 2, %v1311
        %v1313 = vrot.slane %v1267, %v1312
        %v1314 = vlaneseq
        %v1315 = vshrl.u32 %v1314, 7
        %v1316 = vsub.s32 3, %v1315
        %v1317 = vrot.slane %v1267, %v1316
        %v1318 = vlaneseq
        %v1319 = vshrl.u32 %v1318, 7
        %v1320 = vsub.s32 4, %v1319
        %v1321 = vrot.slane %v1267, %v1320
        %v1322 = vlaneseq
        %v1323 = vshrl.u32 %v1322, 7
        %v1324 = vsub.s32 5, %v1323
        %v1325 = vrot.slane %v1267, %v1324
        %v1326 = vlaneseq
        %v1327 = vshrl.u32 %v1326, 7
        %v1328 = vsub.s32 6, %v1327
        %v1329 = vrot.slane %v1267, %v1328
        %v1330 = vlaneseq
        %v1331 = vshrl.u32 %v1330, 7
        %v1332 = vsub.s32 7, %v1331
        %v1333 = vrot.slane %v1267, %v1332
        %v1351 = vsel %vm357, %v1195, 0
        %1353 = vmatprep.subr.mxu0 %v1197
        %1354 = vmatpush1.msra.mxu0 %v1196
        %1355 = vmatprep.subr.mxu0 %v1213
        %1356 = vmatpush1.msra.mxu0 %v1212
        %1357 = vmatprep.subr.mxu0 %v1229
        %1358 = vmatpush1.msra.mxu0 %v1228
        %1359 = vmatprep.subr.mxu0 %v1245
        %1360 = vmatpush1.msra.mxu0 %v1244
        %1361 = vmatprep.subr.mxu0 0.0
        %1362 = vmatpush1.msra.mxu0 0.0
        %1363 = vmatprep.subr.mxu0 0.0
        %1364 = vmatpush1.msra.mxu0 0.0
        %1365 = vmatprep.subr.mxu0 0.0
        %1366 = vmatpush1.msra.mxu0 0.0
        %1367 = vmatprep.subr.mxu0 0.0
        %1368 = vmatpush1.msra.mxu0 0.0
        %1369 = vmatprep.subr.mxu0 0.0
        %1370 = vmatpush1.msra.mxu0 0.0
        %1371 = vmatprep.subr.mxu0 0.0
        %1372 = vmatpush1.msra.mxu0 0.0
        %1373 = vmatprep.subr.mxu0 0.0
        %1374 = vmatpush1.msra.mxu0 0.0
        %1375 = vmatprep.subr.mxu0 0.0
        %1376 = vmatpush1.msra.mxu0 0.0
        %1377 = vmatprep.subr.mxu0 0.0
        %1378 = vmatpush1.msra.mxu0 0.0
        %1379 = vmatprep.subr.mxu0 0.0
        %1380 = vmatpush1.msra.mxu0 0.0
        %1381 = vmatprep.subr.mxu0 0.0
        %1382 = vmatpush1.msra.mxu0 0.0
        %1383 = vmatprep.subr.mxu0 0.0
        %1384 = vmatpush1.msra.mxu0 0.0
        %1385 = vmatprep.subr.mxu0 0.0
        %1386 = vmatpush1.msra.mxu0 0.0
        %1387 = vmatprep.subr.mxu0 0.0
        %1388 = vmatpush1.msra.mxu0 0.0
        %1389 = vmatprep.subr.mxu0 0.0
        %1390 = vmatpush1.msra.mxu0 0.0
        %1391 = vmatprep.subr.mxu0 0.0
        %1392 = vmatpush1.msra.mxu0 0.0
        %1393 = vmatprep.subr.mxu0 0.0
        %1394 = vmatpush1.msra.mxu0 0.0
        %1395 = vmatprep.subr.mxu0 0.0
        %1396 = vmatpush1.msra.mxu0 0.0
        %1397 = vmatprep.subr.mxu0 0.0
        %1398 = vmatpush1.msra.mxu0 0.0
        %1399 = vmatprep.subr.mxu0 0.0
        %1400 = vmatpush1.msra.mxu0 0.0
        %1401 = vmatprep.subr.mxu0 0.0
        %1402 = vmatpush1.msra.mxu0 0.0
        %1403 = vmatprep.subr.mxu0 0.0
        %1404 = vmatpush1.msra.mxu0 0.0
        %1405 = vmatprep.subr.mxu0 0.0
        %1406 = vmatpush1.msra.mxu0 0.0
        %1407 = vmatprep.subr.mxu0 0.0
        %1408 = vmatpush1.msra.mxu0 0.0
        %1409 = vmatprep.subr.mxu0 0.0
        %1410 = vmatpush1.msra.mxu0 0.0
        %1411 = vmatprep.subr.mxu0 0.0
        %1412 = vmatpush1.msra.mxu0 0.0
        %1413 = vmatprep.subr.mxu0 0.0
        %1414 = vmatpush1.msra.mxu0 0.0
        %1415 = vmatprep.subr.mxu0 0.0
        %1416 = vmatpush1.msra.mxu0 0.0
        %1417 = vmatprep.mubr.f32.mxu0 0.0
        %1418 = vmatmul.mubr.f32.gmra.mrb[0].mxu0 %v1351
        %v1419 = vpop.f32.mrb[0].mxu0
        %v1420 = vadd.f32 %v1273, %v1419
        %v1421 = vpop.f32.mrb[0].mxu0
        %v1422 = vadd.f32 %v1277, %v1421
        %1423 = vdwg.mxu0
        %1424 = vmatprep.subr.mxu0 %v1199
        %1425 = vmatpush1.msra.mxu0 %v1198
        %1426 = vmatprep.subr.mxu0 %v1215
        %1427 = vmatpush1.msra.mxu0 %v1214
        %1428 = vmatprep.subr.mxu0 %v1231
        %1429 = vmatpush1.msra.mxu0 %v1230
        %1430 = vmatprep.subr.mxu0 %v1247
        %1431 = vmatpush1.msra.mxu0 %v1246
        %1432 = vmatprep.subr.mxu0 0.0
        %1433 = vmatpush1.msra.mxu0 0.0
        %1434 = vmatprep.subr.mxu0 0.0
        %1435 = vmatpush1.msra.mxu0 0.0
        %1436 = vmatprep.subr.mxu0 0.0
        %1437 = vmatpush1.msra.mxu0 0.0
        %1438 = vmatprep.subr.mxu0 0.0
        %1439 = vmatpush1.msra.mxu0 0.0
        %1440 = vmatprep.subr.mxu0 0.0
        %1441 = vmatpush1.msra.mxu0 0.0
        %1442 = vmatprep.subr.mxu0 0.0
        %1443 = vmatpush1.msra.mxu0 0.0
        %1444 = vmatprep.subr.mxu0 0.0
        %1445 = vmatpush1.msra.mxu0 0.0
        %1446 = vmatprep.subr.mxu0 0.0
        %1447 = vmatpush1.msra.mxu0 0.0
        %1448 = vmatprep.subr.mxu0 0.0
        %1449 = vmatpush1.msra.mxu0 0.0
        %1450 = vmatprep.subr.mxu0 0.0
        %1451 = vmatpush1.msra.mxu0 0.0
        %1452 = vmatprep.subr.mxu0 0.0
        %1453 = vmatpush1.msra.mxu0 0.0
        %1454 = vmatprep.subr.mxu0 0.0
        %1455 = vmatpush1.msra.mxu0 0.0
        %1456 = vmatprep.subr.mxu0 0.0
        %1457 = vmatpush1.msra.mxu0 0.0
        %1458 = vmatprep.subr.mxu0 0.0
        %1459 = vmatpush1.msra.mxu0 0.0
        %1460 = vmatprep.subr.mxu0 0.0
        %1461 = vmatpush1.msra.mxu0 0.0
        %1462 = vmatprep.subr.mxu0 0.0
        %1463 = vmatpush1.msra.mxu0 0.0
        %1464 = vmatprep.subr.mxu0 0.0
        %1465 = vmatpush1.msra.mxu0 0.0
        %1466 = vmatprep.subr.mxu0 0.0
        %1467 = vmatpush1.msra.mxu0 0.0
        %1468 = vmatprep.subr.mxu0 0.0
        %1469 = vmatpush1.msra.mxu0 0.0
        %1470 = vmatprep.subr.mxu0 0.0
        %1471 = vmatpush1.msra.mxu0 0.0
        %1472 = vmatprep.subr.mxu0 0.0
        %1473 = vmatpush1.msra.mxu0 0.0
        %1474 = vmatprep.subr.mxu0 0.0
        %1475 = vmatpush1.msra.mxu0 0.0
        %1476 = vmatprep.subr.mxu0 0.0
        %1477 = vmatpush1.msra.mxu0 0.0
        %1478 = vmatprep.subr.mxu0 0.0
        %1479 = vmatpush1.msra.mxu0 0.0
        %1480 = vmatprep.subr.mxu0 0.0
        %1481 = vmatpush1.msra.mxu0 0.0
        %1482 = vmatprep.subr.mxu0 0.0
        %1483 = vmatpush1.msra.mxu0 0.0
        %1484 = vmatprep.subr.mxu0 0.0
        %1485 = vmatpush1.msra.mxu0 0.0
        %1486 = vmatprep.subr.mxu0 0.0
        %1487 = vmatpush1.msra.mxu0 0.0
        %1488 = vmatprep.mubr.f32.mxu0 0.0
        %1489 = vmatmul.mubr.f32.gmra.mrb[0].mxu0 %v1351
        %v1490 = vpop.f32.mrb[0].mxu0
        %v1491 = vadd.f32 %v1281, %v1490
        %v1492 = vpop.f32.mrb[0].mxu0
        %v1493 = vadd.f32 %v1285, %v1492
        %1494 = vdwg.mxu0
        %1495 = vmatprep.subr.mxu0 %v1201
        %1496 = vmatpush1.msra.mxu0 %v1200
        %1497 = vmatprep.subr.mxu0 %v1217
        %1498 = vmatpush1.msra.mxu0 %v1216
        %1499 = vmatprep.subr.mxu0 %v1233
        %1500 = vmatpush1.msra.mxu0 %v1232
        %1501 = vmatprep.subr.mxu0 %v1249
        %1502 = vmatpush1.msra.mxu0 %v1248
        %1503 = vmatprep.subr.mxu0 0.0
        %1504 = vmatpush1.msra.mxu0 0.0
        %1505 = vmatprep.subr.mxu0 0.0
        %1506 = vmatpush1.msra.mxu0 0.0
        %1507 = vmatprep.subr.mxu0 0.0
        %1508 = vmatpush1.msra.mxu0 0.0
        %1509 = vmatprep.subr.mxu0 0.0
        %1510 = vmatpush1.msra.mxu0 0.0
        %1511 = vmatprep.subr.mxu0 0.0
        %1512 = vmatpush1.msra.mxu0 0.0
        %1513 = vmatprep.subr.mxu0 0.0
        %1514 = vmatpush1.msra.mxu0 0.0
        %1515 = vmatprep.subr.mxu0 0.0
        %1516 = vmatpush1.msra.mxu0 0.0
        %1517 = vmatprep.subr.mxu0 0.0
        %1518 = vmatpush1.msra.mxu0 0.0
        %1519 = vmatprep.subr.mxu0 0.0
        %1520 = vmatpush1.msra.mxu0 0.0
        %1521 = vmatprep.subr.mxu0 0.0
        %1522 = vmatpush1.msra.mxu0 0.0
        %1523 = vmatprep.subr.mxu0 0.0
        %1524 = vmatpush1.msra.mxu0 0.0
        %1525 = vmatprep.subr.mxu0 0.0
        %1526 = vmatpush1.msra.mxu0 0.0
        %1527 = vmatprep.subr.mxu0 0.0
        %1528 = vmatpush1.msra.mxu0 0.0
        %1529 = vmatprep.subr.mxu0 0.0
        %1530 = vmatpush1.msra.mxu0 0.0
        %1531 = vmatprep.subr.mxu0 0.0
        %1532 = vmatpush1.msra.mxu0 0.0
        %1533 = vmatprep.subr.mxu0 0.0
        %1534 = vmatpush1.msra.mxu0 0.0
        %1535 = vmatprep.subr.mxu0 0.0
        %1536 = vmatpush1.msra.mxu0 0.0
        %1537 = vmatprep.subr.mxu0 0.0
        %1538 = vmatpush1.msra.mxu0 0.0
        %1539 = vmatprep.subr.mxu0 0.0
        %1540 = vmatpush1.msra.mxu0 0.0
        %1541 = vmatprep.subr.mxu0 0.0
        %1542 = vmatpush1.msra.mxu0 0.0
        %1543 = vmatprep.subr.mxu0 0.0
        %1544 = vmatpush1.msra.mxu0 0.0
        %1545 = vmatprep.subr.mxu0 0.0
        %1546 = vmatpush1.msra.mxu0 0.0
        %1547 = vmatprep.subr.mxu0 0.0
        %1548 = vmatpush1.msra.mxu0 0.0
        %1549 = vmatprep.subr.mxu0 0.0
        %1550 = vmatpush1.msra.mxu0 0.0
        %1551 = vmatprep.subr.mxu0 0.0
        %1552 = vmatpush1.msra.mxu0 0.0
        %1553 = vmatprep.subr.mxu0 0.0
        %1554 = vmatpush1.msra.mxu0 0.0
        %1555 = vmatprep.subr.mxu0 0.0
        %1556 = vmatpush1.msra.mxu0 0.0
        %1557 = vmatprep.subr.mxu0 0.0
        %1558 = vmatpush1.msra.mxu0 0.0
        %1559 = vmatprep.mubr.f32.mxu0 0.0
        %1560 = vmatmul.mubr.f32.gmra.mrb[0].mxu0 %v1351
        %v1561 = vpop.f32.mrb[0].mxu0
        %v1562 = vadd.f32 %v1289, %v1561
        %v1563 = vpop.f32.mrb[0].mxu0
        %v1564 = vadd.f32 %v1293, %v1563
        %1565 = vdwg.mxu0
        %1566 = vmatprep.subr.mxu0 %v1203
        %1567 = vmatpush1.msra.mxu0 %v1202
        %1568 = vmatprep.subr.mxu0 %v1219
        %1569 = vmatpush1.msra.mxu0 %v1218
        %1570 = vmatprep.subr.mxu0 %v1235
        %1571 = vmatpush1.msra.mxu0 %v1234
        %1572 = vmatprep.subr.mxu0 %v1251
        %1573 = vmatpush1.msra.mxu0 %v1250
        %1574 = vmatprep.subr.mxu0 0.0
        %1575 = vmatpush1.msra.mxu0 0.0
        %1576 = vmatprep.subr.mxu0 0.0
        %1577 = vmatpush1.msra.mxu0 0.0
        %1578 = vmatprep.subr.mxu0 0.0
        %1579 = vmatpush1.msra.mxu0 0.0
        %1580 = vmatprep.subr.mxu0 0.0
        %1581 = vmatpush1.msra.mxu0 0.0
        %1582 = vmatprep.subr.mxu0 0.0
        %1583 = vmatpush1.msra.mxu0 0.0
        %1584 = vmatprep.subr.mxu0 0.0
        %1585 = vmatpush1.msra.mxu0 0.0
        %1586 = vmatprep.subr.mxu0 0.0
        %1587 = vmatpush1.msra.mxu0 0.0
        %1588 = vmatprep.subr.mxu0 0.0
        %1589 = vmatpush1.msra.mxu0 0.0
        %1590 = vmatprep.subr.mxu0 0.0
        %1591 = vmatpush1.msra.mxu0 0.0
        %1592 = vmatprep.subr.mxu0 0.0
        %1593 = vmatpush1.msra.mxu0 0.0
        %1594 = vmatprep.subr.mxu0 0.0
        %1595 = vmatpush1.msra.mxu0 0.0
        %1596 = vmatprep.subr.mxu0 0.0
        %1597 = vmatpush1.msra.mxu0 0.0
        %1598 = vmatprep.subr.mxu0 0.0
        %1599 = vmatpush1.msra.mxu0 0.0
        %1600 = vmatprep.subr.mxu0 0.0
        %1601 = vmatpush1.msra.mxu0 0.0
        %1602 = vmatprep.subr.mxu0 0.0
        %1603 = vmatpush1.msra.mxu0 0.0
        %1604 = vmatprep.subr.mxu0 0.0
        %1605 = vmatpush1.msra.mxu0 0.0
        %1606 = vmatprep.subr.mxu0 0.0
        %1607 = vmatpush1.msra.mxu0 0.0
        %1608 = vmatprep.subr.mxu0 0.0
        %1609 = vmatpush1.msra.mxu0 0.0
        %1610 = vmatprep.subr.mxu0 0.0
        %1611 = vmatpush1.msra.mxu0 0.0
        %1612 = vmatprep.subr.mxu0 0.0
        %1613 = vmatpush1.msra.mxu0 0.0
        %1614 = vmatprep.subr.mxu0 0.0
        %1615 = vmatpush1.msra.mxu0 0.0
        %1616 = vmatprep.subr.mxu0 0.0
        %1617 = vmatpush1.msra.mxu0 0.0
        %1618 = vmatprep.subr.mxu0 0.0
        %1619 = vmatpush1.msra.mxu0 0.0
        %1620 = vmatprep.subr.mxu0 0.0
        %1621 = vmatpush1.msra.mxu0 0.0
        %1622 = vmatprep.subr.mxu0 0.0
        %1623 = vmatpush1.msra.mxu0 0.0
        %1624 = vmatprep.subr.mxu0 0.0
        %1625 = vmatpush1.msra.mxu0 0.0
        %1626 = vmatprep.subr.mxu0 0.0
        %1627 = vmatpush1.msra.mxu0 0.0
        %1628 = vmatprep.subr.mxu0 0.0
        %1629 = vmatpush1.msra.mxu0 0.0
        %1630 = vmatprep.mubr.f32.mxu0 0.0
        %1631 = vmatmul.mubr.f32.gmra.mrb[0].mxu0 %v1351
        %v1632 = vpop.f32.mrb[0].mxu0
        %v1633 = vadd.f32 %v1297, %v1632
        %v1634 = vpop.f32.mrb[0].mxu0
        %v1635 = vadd.f32 %v1301, %v1634
        %1636 = vdwg.mxu0
        %1637 = vmatprep.subr.mxu0 %v1205
        %1638 = vmatpush1.msra.mxu0 %v1204
        %1639 = vmatprep.subr.mxu0 %v1221
        %1640 = vmatpush1.msra.mxu0 %v1220
        %1641 = vmatprep.subr.mxu0 %v1237
        %1642 = vmatpush1.msra.mxu0 %v1236
        %1643 = vmatprep.subr.mxu0 %v1253
        %1644 = vmatpush1.msra.mxu0 %v1252
        %1645 = vmatprep.subr.mxu0 0.0
        %1646 = vmatpush1.msra.mxu0 0.0
        %1647 = vmatprep.subr.mxu0 0.0
        %1648 = vmatpush1.msra.mxu0 0.0
        %1649 = vmatprep.subr.mxu0 0.0
        %1650 = vmatpush1.msra.mxu0 0.0
        %1651 = vmatprep.subr.mxu0 0.0
        %1652 = vmatpush1.msra.mxu0 0.0
        %1653 = vmatprep.subr.mxu0 0.0
        %1654 = vmatpush1.msra.mxu0 0.0
        %1655 = vmatprep.subr.mxu0 0.0
        %1656 = vmatpush1.msra.mxu0 0.0
        %1657 = vmatprep.subr.mxu0 0.0
        %1658 = vmatpush1.msra.mxu0 0.0
        %1659 = vmatprep.subr.mxu0 0.0
        %1660 = vmatpush1.msra.mxu0 0.0
        %1661 = vmatprep.subr.mxu0 0.0
        %1662 = vmatpush1.msra.mxu0 0.0
        %1663 = vmatprep.subr.mxu0 0.0
        %1664 = vmatpush1.msra.mxu0 0.0
        %1665 = vmatprep.subr.mxu0 0.0
        %1666 = vmatpush1.msra.mxu0 0.0
        %1667 = vmatprep.subr.mxu0 0.0
        %1668 = vmatpush1.msra.mxu0 0.0
        %1669 = vmatprep.subr.mxu0 0.0
        %1670 = vmatpush1.msra.mxu0 0.0
        %1671 = vmatprep.subr.mxu0 0.0
        %1672 = vmatpush1.msra.mxu0 0.0
        %1673 = vmatprep.subr.mxu0 0.0
        %1674 = vmatpush1.msra.mxu0 0.0
        %1675 = vmatprep.subr.mxu0 0.0
        %1676 = vmatpush1.msra.mxu0 0.0
        %1677 = vmatprep.subr.mxu0 0.0
        %1678 = vmatpush1.msra.mxu0 0.0
        %1679 = vmatprep.subr.mxu0 0.0
        %1680 = vmatpush1.msra.mxu0 0.0
        %1681 = vmatprep.subr.mxu0 0.0
        %1682 = vmatpush1.msra.mxu0 0.0
        %1683 = vmatprep.subr.mxu0 0.0
        %1684 = vmatpush1.msra.mxu0 0.0
        %1685 = vmatprep.subr.mxu0 0.0
        %1686 = vmatpush1.msra.mxu0 0.0
        %1687 = vmatprep.subr.mxu0 0.0
        %1688 = vmatpush1.msra.mxu0 0.0
        %1689 = vmatprep.subr.mxu0 0.0
        %1690 = vmatpush1.msra.mxu0 0.0
        %1691 = vmatprep.subr.mxu0 0.0
        %1692 = vmatpush1.msra.mxu0 0.0
        %1693 = vmatprep.subr.mxu0 0.0
        %1694 = vmatpush1.msra.mxu0 0.0
        %1695 = vmatprep.subr.mxu0 0.0
        %1696 = vmatpush1.msra.mxu0 0.0
        %1697 = vmatprep.subr.mxu0 0.0
        %1698 = vmatpush1.msra.mxu0 0.0
        %1699 = vmatprep.subr.mxu0 0.0
        %1700 = vmatpush1.msra.mxu0 0.0
        %1701 = vmatprep.mubr.f32.mxu0 0.0
        %1702 = vmatmul.mubr.f32.gmra.mrb[0].mxu0 %v1351
        %v1703 = vpop.f32.mrb[0].mxu0
        %v1704 = vadd.f32 %v1305, %v1703
        %v1705 = vpop.f32.mrb[0].mxu0
        %v1706 = vadd.f32 %v1309, %v1705
        %1707 = vdwg.mxu0
        %1708 = vmatprep.subr.mxu0 %v1207
        %1709 = vmatpush1.msra.mxu0 %v1206
        %1710 = vmatprep.subr.mxu0 %v1223
        %1711 = vmatpush1.msra.mxu0 %v1222
        %1712 = vmatprep.subr.mxu0 %v1239
        %1713 = vmatpush1.msra.mxu0 %v1238
        %1714 = vmatprep.subr.mxu0 %v1255
        %1715 = vmatpush1.msra.mxu0 %v1254
        %1716 = vmatprep.subr.mxu0 0.0
        %1717 = vmatpush1.msra.mxu0 0.0
        %1718 = vmatprep.subr.mxu0 0.0
        %1719 = vmatpush1.msra.mxu0 0.0
        %1720 = vmatprep.subr.mxu0 0.0
        %1721 = vmatpush1.msra.mxu0 0.0
        %1722 = vmatprep.subr.mxu0 0.0
        %1723 = vmatpush1.msra.mxu0 0.0
        %1724 = vmatprep.subr.mxu0 0.0
        %1725 = vmatpush1.msra.mxu0 0.0
        %1726 = vmatprep.subr.mxu0 0.0
        %1727 = vmatpush1.msra.mxu0 0.0
        %1728 = vmatprep.subr.mxu0 0.0
        %1729 = vmatpush1.msra.mxu0 0.0
        %1730 = vmatprep.subr.mxu0 0.0
        %1731 = vmatpush1.msra.mxu0 0.0
        %1732 = vmatprep.subr.mxu0 0.0
        %1733 = vmatpush1.msra.mxu0 0.0
        %1734 = vmatprep.subr.mxu0 0.0
        %1735 = vmatpush1.msra.mxu0 0.0
        %1736 = vmatprep.subr.mxu0 0.0
        %1737 = vmatpush1.msra.mxu0 0.0
        %1738 = vmatprep.subr.mxu0 0.0
        %1739 = vmatpush1.msra.mxu0 0.0
        %1740 = vmatprep.subr.mxu0 0.0
        %1741 = vmatpush1.msra.mxu0 0.0
        %1742 = vmatprep.subr.mxu0 0.0
        %1743 = vmatpush1.msra.mxu0 0.0
        %1744 = vmatprep.subr.mxu0 0.0
        %1745 = vmatpush1.msra.mxu0 0.0
        %1746 = vmatprep.subr.mxu0 0.0
        %1747 = vmatpush1.msra.mxu0 0.0
        %1748 = vmatprep.subr.mxu0 0.0
        %1749 = vmatpush1.msra.mxu0 0.0
        %1750 = vmatprep.subr.mxu0 0.0
        %1751 = vmatpush1.msra.mxu0 0.0
        %1752 = vmatprep.subr.mxu0 0.0
        %1753 = vmatpush1.msra.mxu0 0.0
        %1754 = vmatprep.subr.mxu0 0.0
        %1755 = vmatpush1.msra.mxu0 0.0
        %1756 = vmatprep.subr.mxu0 0.0
        %1757 = vmatpush1.msra.mxu0 0.0
        %1758 = vmatprep.subr.mxu0 0.0
        %1759 = vmatpush1.msra.mxu0 0.0
        %1760 = vmatprep.subr.mxu0 0.0
        %1761 = vmatpush1.msra.mxu0 0.0
        %1762 = vmatprep.subr.mxu0 0.0
        %1763 = vmatpush1.msra.mxu0 0.0
        %1764 = vmatprep.subr.mxu0 0.0
        %1765 = vmatpush1.msra.mxu0 0.0
        %1766 = vmatprep.subr.mxu0 0.0
        %1767 = vmatpush1.msra.mxu0 0.0
        %1768 = vmatprep.subr.mxu0 0.0
        %1769 = vmatpush1.msra.mxu0 0.0
        %1770 = vmatprep.subr.mxu0 0.0
        %1771 = vmatpush1.msra.mxu0 0.0
        %1772 = vmatprep.mubr.f32.mxu0 0.0
        %1773 = vmatmul.mubr.f32.gmra.mrb[0].mxu0 %v1351
        %v1774 = vpop.f32.mrb[0].mxu0
        %v1775 = vadd.f32 %v1313, %v1774
        %v1776 = vpop.f32.mrb[0].mxu0
        %v1777 = vadd.f32 %v1317, %v1776
        %1778 = vdwg.mxu0
        %1779 = vmatprep.subr.mxu0 %v1209
        %1780 = vmatpush1.msra.mxu0 %v1208
        %1781 = vmatprep.subr.mxu0 %v1225
        %1782 = vmatpush1.msra.mxu0 %v1224
        %1783 = vmatprep.subr.mxu0 %v1241
        %1784 = vmatpush1.msra.mxu0 %v1240
        %1785 = vmatprep.subr.mxu0 %v1257
        %1786 = vmatpush1.msra.mxu0 %v1256
        %1787 = vmatprep.subr.mxu0 0.0
        %1788 = vmatpush1.msra.mxu0 0.0
        %1789 = vmatprep.subr.mxu0 0.0
        %1790 = vmatpush1.msra.mxu0 0.0
        %1791 = vmatprep.subr.mxu0 0.0
        %1792 = vmatpush1.msra.mxu0 0.0
        %1793 = vmatprep.subr.mxu0 0.0
        %1794 = vmatpush1.msra.mxu0 0.0
        %1795 = vmatprep.subr.mxu0 0.0
        %1796 = vmatpush1.msra.mxu0 0.0
        %1797 = vmatprep.subr.mxu0 0.0
        %1798 = vmatpush1.msra.mxu0 0.0
        %1799 = vmatprep.subr.mxu0 0.0
        %1800 = vmatpush1.msra.mxu0 0.0
        %1801 = vmatprep.subr.mxu0 0.0
        %1802 = vmatpush1.msra.mxu0 0.0
        %1803 = vmatprep.subr.mxu0 0.0
        %1804 = vmatpush1.msra.mxu0 0.0
        %1805 = vmatprep.subr.mxu0 0.0
        %1806 = vmatpush1.msra.mxu0 0.0
        %1807 = vmatprep.subr.mxu0 0.0
        %1808 = vmatpush1.msra.mxu0 0.0
        %1809 = vmatprep.subr.mxu0 0.0
        %1810 = vmatpush1.msra.mxu0 0.0
        %1811 = vmatprep.subr.mxu0 0.0
        %1812 = vmatpush1.msra.mxu0 0.0
        %1813 = vmatprep.subr.mxu0 0.0
        %1814 = vmatpush1.msra.mxu0 0.0
        %1815 = vmatprep.subr.mxu0 0.0
        %1816 = vmatpush1.msra.mxu0 0.0
        %1817 = vmatprep.subr.mxu0 0.0
        %1818 = vmatpush1.msra.mxu0 0.0
        %1819 = vmatprep.subr.mxu0 0.0
        %1820 = vmatpush1.msra.mxu0 0.0
        %1821 = vmatprep.subr.mxu0 0.0
        %1822 = vmatpush1.msra.mxu0 0.0
        %1823 = vmatprep.subr.mxu0 0.0
        %1824 = vmatpush1.msra.mxu0 0.0
        %1825 = vmatprep.subr.mxu0 0.0
        %1826 = vmatpush1.msra.mxu0 0.0
        %1827 = vmatprep.subr.mxu0 0.0
        %1828 = vmatpush1.msra.mxu0 0.0
        %1829 = vmatprep.subr.mxu0 0.0
        %1830 = vmatpush1.msra.mxu0 0.0
        %1831 = vmatprep.subr.mxu0 0.0
        %1832 = vmatpush1.msra.mxu0 0.0
        %1833 = vmatprep.subr.mxu0 0.0
        %1834 = vmatpush1.msra.mxu0 0.0
        %1835 = vmatprep.subr.mxu0 0.0
        %1836 = vmatpush1.msra.mxu0 0.0
        %1837 = vmatprep.subr.mxu0 0.0
        %1838 = vmatpush1.msra.mxu0 0.0
        %1839 = vmatprep.subr.mxu0 0.0
        %1840 = vmatpush1.msra.mxu0 0.0
        %1841 = vmatprep.subr.mxu0 0.0
        %1842 = vmatpush1.msra.mxu0 0.0
        %1843 = vmatprep.mubr.f32.mxu0 0.0
        %1844 = vmatmul.mubr.f32.gmra.mrb[0].mxu0 %v1351
        %v1845 = vpop.f32.mrb[0].mxu0
        %v1846 = vadd.f32 %v1321, %v1845
        %v1847 = vpop.f32.mrb[0].mxu0
        %v1848 = vadd.f32 %v1325, %v1847
        %1849 = vdwg.mxu0
        %1850 = vmatprep.subr.mxu0 %v1211
        %1851 = vmatpush1.msra.mxu0 %v1210
        %1852 = vmatprep.subr.mxu0 %v1227
        %1853 = vmatpush1.msra.mxu0 %v1226
        %1854 = vmatprep.subr.mxu0 %v1243
        %1855 = vmatpush1.msra.mxu0 %v1242
        %1856 = vmatprep.subr.mxu0 %v1259
        %1857 = vmatpush1.msra.mxu0 %v1258
        %1858 = vmatprep.subr.mxu0 0.0
        %1859 = vmatpush1.msra.mxu0 0.0
        %1860 = vmatprep.subr.mxu0 0.0
        %1861 = vmatpush1.msra.mxu0 0.0
        %1862 = vmatprep.subr.mxu0 0.0
        %1863 = vmatpush1.msra.mxu0 0.0
        %1864 = vmatprep.subr.mxu0 0.0
        %1865 = vmatpush1.msra.mxu0 0.0
        %1866 = vmatprep.subr.mxu0 0.0
        %1867 = vmatpush1.msra.mxu0 0.0
        %1868 = vmatprep.subr.mxu0 0.0
        %1869 = vmatpush1.msra.mxu0 0.0
        %1870 = vmatprep.subr.mxu0 0.0
        %1871 = vmatpush1.msra.mxu0 0.0
        %1872 = vmatprep.subr.mxu0 0.0
        %1873 = vmatpush1.msra.mxu0 0.0
        %1874 = vmatprep.subr.mxu0 0.0
        %1875 = vmatpush1.msra.mxu0 0.0
        %1876 = vmatprep.subr.mxu0 0.0
        %1877 = vmatpush1.msra.mxu0 0.0
        %1878 = vmatprep.subr.mxu0 0.0
        %1879 = vmatpush1.msra.mxu0 0.0
        %1880 = vmatprep.subr.mxu0 0.0
        %1881 = vmatpush1.msra.mxu0 0.0
        %1882 = vmatprep.subr.mxu0 0.0
        %1883 = vmatpush1.msra.mxu0 0.0
        %1884 = vmatprep.subr.mxu0 0.0
        %1885 = vmatpush1.msra.mxu0 0.0
        %1886 = vmatprep.subr.mxu0 0.0
        %1887 = vmatpush1.msra.mxu0 0.0
        %1888 = vmatprep.subr.mxu0 0.0
        %1889 = vmatpush1.msra.mxu0 0.0
        %1890 = vmatprep.subr.mxu0 0.0
        %1891 = vmatpush1.msra.mxu0 0.0
        %1892 = vmatprep.subr.mxu0 0.0
        %1893 = vmatpush1.msra.mxu0 0.0
        %1894 = vmatprep.subr.mxu0 0.0
        %1895 = vmatpush1.msra.mxu0 0.0
        %1896 = vmatprep.subr.mxu0 0.0
        %1897 = vmatpush1.msra.mxu0 0.0
        %1898 = vmatprep.subr.mxu0 0.0
        %1899 = vmatpush1.msra.mxu0 0.0
        %1900 = vmatprep.subr.mxu0 0.0
        %1901 = vmatpush1.msra.mxu0 0.0
        %1902 = vmatprep.subr.mxu0 0.0
        %1903 = vmatpush1.msra.mxu0 0.0
        %1904 = vmatprep.subr.mxu0 0.0
        %1905 = vmatpush1.msra.mxu0 0.0
        %1906 = vmatprep.subr.mxu0 0.0
        %1907 = vmatpush1.msra.mxu0 0.0
        %1908 = vmatprep.subr.mxu0 0.0
        %1909 = vmatpush1.msra.mxu0 0.0
        %1910 = vmatprep.subr.mxu0 0.0
        %1911 = vmatpush1.msra.mxu0 0.0
        %1912 = vmatprep.subr.mxu0 0.0
        %1913 = vmatpush1.msra.mxu0 0.0
        %1914 = vmatprep.mubr.f32.mxu0 0.0
        %1915 = vmatmul.mubr.f32.gmra.mrb[0].mxu0 %v1351
        %v1916 = vpop.f32.mrb[0].mxu0
        %v1917 = vadd.f32 %v1329, %v1916
        %v1918 = vpop.f32.mrb[0].mxu0
        %v1919 = vadd.f32 %v1333, %v1918
        %1920 = vdwg.mxu0
        %v1921 = vmax.f32 %v1420, 0.0
        %v1922 = vmax.f32 %v1422, 0.0
        %v1923 = vmax.f32 %v1491, 0.0
        %v1924 = vmax.f32 %v1493, 0.0
        %v1925 = vmax.f32 %v1562, 0.0
        %v1926 = vmax.f32 %v1564, 0.0
        %v1927 = vmax.f32 %v1633, 0.0
        %v1928 = vmax.f32 %v1635, 0.0
        %v1929 = vmax.f32 %v1704, 0.0
        %v1930 = vmax.f32 %v1706, 0.0
        %v1931 = vmax.f32 %v1775, 0.0
        %v1932 = vmax.f32 %v1777, 0.0
        %v1933 = vmax.f32 %v1846, 0.0
        %v1934 = vmax.f32 %v1848, 0.0
        %v1935 = vmax.f32 %v1917, 0.0
        %v1936 = vmax.f32 %v1919, 0.0
        %v1937 = vld [vmem:[%s6] sm:$0xff]
        %v1938 = vld [vmem:[%s6 + $0x8] sm:$0xff]
        %v1939 = vld [vmem:[%s6 + $0x10] sm:$0xff]
        %v1940 = vld [vmem:[%s6 + $0x18] sm:$0xff]
        %v1941 = vld [vmem:[%s6 + $0x20] sm:$0xff]
        %v1942 = vld [vmem:[%s6 + $0x28] sm:$0xff]
        %v1943 = vld [vmem:[%s6 + $0x30] sm:$0xff]
        %v1944 = vld [vmem:[%s6 + $0x38] sm:$0xff]
        %v1945 = vld [vmem:[%s6 + $0x40] sm:$0xff]
        %v1946 = vld [vmem:[%s6 + $0x48] sm:$0xff]
        %v1947 = vld [vmem:[%s6 + $0x50] sm:$0xff]
        %v1948 = vld [vmem:[%s6 + $0x58] sm:$0xff]
        %v1949 = vld [vmem:[%s6 + $0x60] sm:$0xff]
        %v1950 = vld [vmem:[%s6 + $0x68] sm:$0xff]
        %v1951 = vld [vmem:[%s6 + $0x70] sm:$0xff]
        %v1952 = vld [vmem:[%s6 + $0x78] sm:$0xff]
        %v1953 = vld [vmem:[%s6 + $0x80] sm:$0xff]
        %v1954 = vld [vmem:[%s6 + $0x88] sm:$0xff]
        %v1955 = vld [vmem:[%s6 + $0x90] sm:$0xff]
        %v1956 = vld [vmem:[%s6 + $0x98] sm:$0xff]
        %v1957 = vld [vmem:[%s6 + $0xa0] sm:$0xff]
        %v1958 = vld [vmem:[%s6 + $0xa8] sm:$0xff]
        %v1959 = vld [vmem:[%s6 + $0xb0] sm:$0xff]
        %v1960 = vld [vmem:[%s6 + $0xb8] sm:$0xff]
        %v1961 = vld [vmem:[%s6 + $0xc0] sm:$0xff]
        %v1962 = vld [vmem:[%s6 + $0xc8] sm:$0xff]
        %v1963 = vld [vmem:[%s6 + $0xd0] sm:$0xff]
        %v1964 = vld [vmem:[%s6 + $0xd8] sm:$0xff]
        %v1965 = vld [vmem:[%s6 + $0xe0] sm:$0xff]
        %v1966 = vld [vmem:[%s6 + $0xe8] sm:$0xff]
        %v1967 = vld [vmem:[%s6 + $0xf0] sm:$0xff]
        %v1968 = vld [vmem:[%s6 + $0xf8] sm:$0xff]
        %v1969 = vld [vmem:[%s6 + $0x100] sm:$0xff]
        %v1970 = vld [vmem:[%s6 + $0x108] sm:$0xff]
        %v1971 = vld [vmem:[%s6 + $0x110] sm:$0xff]
        %v1972 = vld [vmem:[%s6 + $0x118] sm:$0xff]
        %v1973 = vld [vmem:[%s6 + $0x120] sm:$0xff]
        %v1974 = vld [vmem:[%s6 + $0x128] sm:$0xff]
        %v1975 = vld [vmem:[%s6 + $0x130] sm:$0xff]
        %v1976 = vld [vmem:[%s6 + $0x138] sm:$0xff]
        %v1977 = vld [vmem:[%s6 + $0x140] sm:$0xff]
        %v1978 = vld [vmem:[%s6 + $0x148] sm:$0xff]
        %v1979 = vld [vmem:[%s6 + $0x150] sm:$0xff]
        %v1980 = vld [vmem:[%s6 + $0x158] sm:$0xff]
        %v1981 = vld [vmem:[%s6 + $0x160] sm:$0xff]
        %v1982 = vld [vmem:[%s6 + $0x168] sm:$0xff]
        %v1983 = vld [vmem:[%s6 + $0x170] sm:$0xff]
        %v1984 = vld [vmem:[%s6 + $0x178] sm:$0xff]
        %v1985 = vld [vmem:[%s6 + $0x180] sm:$0xff]
        %v1986 = vld [vmem:[%s6 + $0x188] sm:$0xff]
        %v1987 = vld [vmem:[%s6 + $0x190] sm:$0xff]
        %v1988 = vld [vmem:[%s6 + $0x198] sm:$0xff]
        %v1989 = vld [vmem:[%s6 + $0x1a0] sm:$0xff]
        %v1990 = vld [vmem:[%s6 + $0x1a8] sm:$0xff]
        %v1991 = vld [vmem:[%s6 + $0x1b0] sm:$0xff]
        %v1992 = vld [vmem:[%s6 + $0x1b8] sm:$0xff]
        %v1993 = vld [vmem:[%s6 + $0x1c0] sm:$0xff]
        %v1994 = vld [vmem:[%s6 + $0x1c8] sm:$0xff]
        %v1995 = vld [vmem:[%s6 + $0x1d0] sm:$0xff]
        %v1996 = vld [vmem:[%s6 + $0x1d8] sm:$0xff]
        %v1997 = vld [vmem:[%s6 + $0x1e0] sm:$0xff]
        %v1998 = vld [vmem:[%s6 + $0x1e8] sm:$0xff]
        %v1999 = vld [vmem:[%s6 + $0x1f0] sm:$0xff]
        %v2000 = vld [vmem:[%s6 + $0x1f8] sm:$0xff]
        %v2001 = vld [vmem:[%s6 + $0x200] sm:$0xff]
        %v2002 = vld [vmem:[%s6 + $0x208] sm:$0xff]
        %v2003 = vld [vmem:[%s6 + $0x210] sm:$0xff]
        %v2004 = vld [vmem:[%s6 + $0x218] sm:$0xff]
        %v2005 = vld [vmem:[%s6 + $0x220] sm:$0xff]
        %v2006 = vld [vmem:[%s6 + $0x228] sm:$0xff]
        %v2007 = vld [vmem:[%s6 + $0x230] sm:$0xff]
        %v2008 = vld [vmem:[%s6 + $0x238] sm:$0xff]
        %v2009 = vld [vmem:[%s6 + $0x240] sm:$0xff]
        %v2010 = vld [vmem:[%s6 + $0x248] sm:$0xff]
        %v2011 = vld [vmem:[%s6 + $0x250] sm:$0xff]
        %v2012 = vld [vmem:[%s6 + $0x258] sm:$0xff]
        %v2013 = vld [vmem:[%s6 + $0x260] sm:$0xff]
        %v2014 = vld [vmem:[%s6 + $0x268] sm:$0xff]
        %v2015 = vld [vmem:[%s6 + $0x270] sm:$0xff]
        %v2016 = vld [vmem:[%s6 + $0x278] sm:$0xff]
        %v2017 = vld [vmem:[%s6 + $0x280] sm:$0xff]
        %v2018 = vld [vmem:[%s6 + $0x288] sm:$0xff]
        %v2019 = vld [vmem:[%s6 + $0x290] sm:$0xff]
        %v2020 = vld [vmem:[%s6 + $0x298] sm:$0xff]
        %v2021 = vld [vmem:[%s6 + $0x2a0] sm:$0xff]
        %v2022 = vld [vmem:[%s6 + $0x2a8] sm:$0xff]
        %v2023 = vld [vmem:[%s6 + $0x2b0] sm:$0xff]
        %v2024 = vld [vmem:[%s6 + $0x2b8] sm:$0xff]
        %v2025 = vld [vmem:[%s6 + $0x2c0] sm:$0xff]
        %v2026 = vld [vmem:[%s6 + $0x2c8] sm:$0xff]
        %v2027 = vld [vmem:[%s6 + $0x2d0] sm:$0xff]
        %v2028 = vld [vmem:[%s6 + $0x2d8] sm:$0xff]
        %v2029 = vld [vmem:[%s6 + $0x2e0] sm:$0xff]
        %v2030 = vld [vmem:[%s6 + $0x2e8] sm:$0xff]
        %v2031 = vld [vmem:[%s6 + $0x2f0] sm:$0xff]
        %v2032 = vld [vmem:[%s6 + $0x2f8] sm:$0xff]
        %v2033 = vld [vmem:[%s6 + $0x300] sm:$0xff]
        %v2034 = vld [vmem:[%s6 + $0x308] sm:$0xff]
        %v2035 = vld [vmem:[%s6 + $0x310] sm:$0xff]
        %v2036 = vld [vmem:[%s6 + $0x318] sm:$0xff]
        %v2037 = vld [vmem:[%s6 + $0x320] sm:$0xff]
        %v2038 = vld [vmem:[%s6 + $0x328] sm:$0xff]
        %v2039 = vld [vmem:[%s6 + $0x330] sm:$0xff]
        %v2040 = vld [vmem:[%s6 + $0x338] sm:$0xff]
        %v2041 = vld [vmem:[%s6 + $0x340] sm:$0xff]
        %v2042 = vld [vmem:[%s6 + $0x348] sm:$0xff]
        %v2043 = vld [vmem:[%s6 + $0x350] sm:$0xff]
        %v2044 = vld [vmem:[%s6 + $0x358] sm:$0xff]
        %v2045 = vld [vmem:[%s6 + $0x360] sm:$0xff]
        %v2046 = vld [vmem:[%s6 + $0x368] sm:$0xff]
        %v2047 = vld [vmem:[%s6 + $0x370] sm:$0xff]
        %v2048 = vld [vmem:[%s6 + $0x378] sm:$0xff]
        %v2049 = vld [vmem:[%s6 + $0x380] sm:$0xff]
        %v2050 = vld [vmem:[%s6 + $0x388] sm:$0xff]
        %v2051 = vld [vmem:[%s6 + $0x390] sm:$0xff]
        %v2052 = vld [vmem:[%s6 + $0x398] sm:$0xff]
        %v2053 = vld [vmem:[%s6 + $0x3a0] sm:$0xff]
        %v2054 = vld [vmem:[%s6 + $0x3a8] sm:$0xff]
        %v2055 = vld [vmem:[%s6 + $0x3b0] sm:$0xff]
        %v2056 = vld [vmem:[%s6 + $0x3b8] sm:$0xff]
        %v2057 = vld [vmem:[%s6 + $0x3c0] sm:$0xff]
        %v2058 = vld [vmem:[%s6 + $0x3c8] sm:$0xff]
        %v2059 = vld [vmem:[%s6 + $0x3d0] sm:$0xff]
        %v2060 = vld [vmem:[%s6 + $0x3d8] sm:$0xff]
        %v2061 = vld [vmem:[%s6 + $0x3e0] sm:$0xff]
        %v2062 = vld [vmem:[%s6 + $0x3e8] sm:$0xff]
        %v2063 = vld [vmem:[%s6 + $0x3f0] sm:$0xff]
        %v2064 = vld [vmem:[%s6 + $0x3f8] sm:$0xff]
        %v2065 = vld [vmem:[%s6 + $0x400] sm:$0xff]
        %v2066 = vld [vmem:[%s6 + $0x408] sm:$0xff]
        %v2067 = vld [vmem:[%s6 + $0x410] sm:$0xff]
        %v2068 = vld [vmem:[%s6 + $0x418] sm:$0xff]
        %v2069 = vld [vmem:[%s6 + $0x420] sm:$0xff]
        %v2070 = vld [vmem:[%s6 + $0x428] sm:$0xff]
        %v2071 = vld [vmem:[%s6 + $0x430] sm:$0xff]
        %v2072 = vld [vmem:[%s6 + $0x438] sm:$0xff]
        %v2073 = vld [vmem:[%s6 + $0x440] sm:$0xff]
        %v2074 = vld [vmem:[%s6 + $0x448] sm:$0xff]
        %v2075 = vld [vmem:[%s6 + $0x450] sm:$0xff]
        %v2076 = vld [vmem:[%s6 + $0x458] sm:$0xff]
        %v2077 = vld [vmem:[%s6 + $0x460] sm:$0xff]
        %v2078 = vld [vmem:[%s6 + $0x468] sm:$0xff]
        %v2079 = vld [vmem:[%s6 + $0x470] sm:$0xff]
        %v2080 = vld [vmem:[%s6 + $0x478] sm:$0xff]
        %v2081 = vld [vmem:[%s6 + $0x480] sm:$0xff]
        %v2082 = vld [vmem:[%s6 + $0x488] sm:$0xff]
        %v2083 = vld [vmem:[%s6 + $0x490] sm:$0xff]
        %v2084 = vld [vmem:[%s6 + $0x498] sm:$0xff]
        %v2085 = vld [vmem:[%s6 + $0x4a0] sm:$0xff]
        %v2086 = vld [vmem:[%s6 + $0x4a8] sm:$0xff]
        %v2087 = vld [vmem:[%s6 + $0x4b0] sm:$0xff]
        %v2088 = vld [vmem:[%s6 + $0x4b8] sm:$0xff]
        %v2089 = vld [vmem:[%s6 + $0x4c0] sm:$0xff]
        %v2090 = vld [vmem:[%s6 + $0x4c8] sm:$0xff]
        %v2091 = vld [vmem:[%s6 + $0x4d0] sm:$0xff]
        %v2092 = vld [vmem:[%s6 + $0x4d8] sm:$0xff]
        %v2093 = vld [vmem:[%s6 + $0x4e0] sm:$0xff]
        %v2094 = vld [vmem:[%s6 + $0x4e8] sm:$0xff]
        %v2095 = vld [vmem:[%s6 + $0x4f0] sm:$0xff]
        %v2096 = vld [vmem:[%s6 + $0x4f8] sm:$0xff]
        %v2097 = vld [vmem:[%s6 + $0x500] sm:$0xff]
        %v2098 = vld [vmem:[%s6 + $0x508] sm:$0xff]
        %v2099 = vld [vmem:[%s6 + $0x510] sm:$0xff]
        %v2100 = vld [vmem:[%s6 + $0x518] sm:$0xff]
        %v2101 = vld [vmem:[%s6 + $0x520] sm:$0xff]
        %v2102 = vld [vmem:[%s6 + $0x528] sm:$0xff]
        %v2103 = vld [vmem:[%s6 + $0x530] sm:$0xff]
        %v2104 = vld [vmem:[%s6 + $0x538] sm:$0xff]
        %v2105 = vld [vmem:[%s6 + $0x540] sm:$0xff]
        %v2106 = vld [vmem:[%s6 + $0x548] sm:$0xff]
        %v2107 = vld [vmem:[%s6 + $0x550] sm:$0xff]
        %v2108 = vld [vmem:[%s6 + $0x558] sm:$0xff]
        %v2109 = vld [vmem:[%s6 + $0x560] sm:$0xff]
        %v2110 = vld [vmem:[%s6 + $0x568] sm:$0xff]
        %v2111 = vld [vmem:[%s6 + $0x570] sm:$0xff]
        %v2112 = vld [vmem:[%s6 + $0x578] sm:$0xff]
        %v2113 = vld [vmem:[%s6 + $0x580] sm:$0xff]
        %v2114 = vld [vmem:[%s6 + $0x588] sm:$0xff]
        %v2115 = vld [vmem:[%s6 + $0x590] sm:$0xff]
        %v2116 = vld [vmem:[%s6 + $0x598] sm:$0xff]
        %v2117 = vld [vmem:[%s6 + $0x5a0] sm:$0xff]
        %v2118 = vld [vmem:[%s6 + $0x5a8] sm:$0xff]
        %v2119 = vld [vmem:[%s6 + $0x5b0] sm:$0xff]
        %v2120 = vld [vmem:[%s6 + $0x5b8] sm:$0xff]
        %v2121 = vld [vmem:[%s6 + $0x5c0] sm:$0xff]
        %v2122 = vld [vmem:[%s6 + $0x5c8] sm:$0xff]
        %v2123 = vld [vmem:[%s6 + $0x5d0] sm:$0xff]
        %v2124 = vld [vmem:[%s6 + $0x5d8] sm:$0xff]
        %v2125 = vld [vmem:[%s6 + $0x5e0] sm:$0xff]
        %v2126 = vld [vmem:[%s6 + $0x5e8] sm:$0xff]
        %v2127 = vld [vmem:[%s6 + $0x5f0] sm:$0xff]
        %v2128 = vld [vmem:[%s6 + $0x5f8] sm:$0xff]
        %v2129 = vld [vmem:[%s6 + $0x600] sm:$0xff]
        %v2130 = vld [vmem:[%s6 + $0x608] sm:$0xff]
        %v2131 = vld [vmem:[%s6 + $0x610] sm:$0xff]
        %v2132 = vld [vmem:[%s6 + $0x618] sm:$0xff]
        %v2133 = vld [vmem:[%s6 + $0x620] sm:$0xff]
        %v2134 = vld [vmem:[%s6 + $0x628] sm:$0xff]
        %v2135 = vld [vmem:[%s6 + $0x630] sm:$0xff]
        %v2136 = vld [vmem:[%s6 + $0x638] sm:$0xff]
        %v2137 = vld [vmem:[%s6 + $0x640] sm:$0xff]
        %v2138 = vld [vmem:[%s6 + $0x648] sm:$0xff]
        %v2139 = vld [vmem:[%s6 + $0x650] sm:$0xff]
        %v2140 = vld [vmem:[%s6 + $0x658] sm:$0xff]
        %v2141 = vld [vmem:[%s6 + $0x660] sm:$0xff]
        %v2142 = vld [vmem:[%s6 + $0x668] sm:$0xff]
        %v2143 = vld [vmem:[%s6 + $0x670] sm:$0xff]
        %v2144 = vld [vmem:[%s6 + $0x678] sm:$0xff]
        %v2145 = vld [vmem:[%s6 + $0x680] sm:$0xff]
        %v2146 = vld [vmem:[%s6 + $0x688] sm:$0xff]
        %v2147 = vld [vmem:[%s6 + $0x690] sm:$0xff]
        %v2148 = vld [vmem:[%s6 + $0x698] sm:$0xff]
        %v2149 = vld [vmem:[%s6 + $0x6a0] sm:$0xff]
        %v2150 = vld [vmem:[%s6 + $0x6a8] sm:$0xff]
        %v2151 = vld [vmem:[%s6 + $0x6b0] sm:$0xff]
        %v2152 = vld [vmem:[%s6 + $0x6b8] sm:$0xff]
        %v2153 = vld [vmem:[%s6 + $0x6c0] sm:$0xff]
        %v2154 = vld [vmem:[%s6 + $0x6c8] sm:$0xff]
        %v2155 = vld [vmem:[%s6 + $0x6d0] sm:$0xff]
        %v2156 = vld [vmem:[%s6 + $0x6d8] sm:$0xff]
        %v2157 = vld [vmem:[%s6 + $0x6e0] sm:$0xff]
        %v2158 = vld [vmem:[%s6 + $0x6e8] sm:$0xff]
        %v2159 = vld [vmem:[%s6 + $0x6f0] sm:$0xff]
        %v2160 = vld [vmem:[%s6 + $0x6f8] sm:$0xff]
        %v2161 = vld [vmem:[%s6 + $0x700] sm:$0xff]
        %v2162 = vld [vmem:[%s6 + $0x708] sm:$0xff]
        %v2163 = vld [vmem:[%s6 + $0x710] sm:$0xff]
        %v2164 = vld [vmem:[%s6 + $0x718] sm:$0xff]
        %v2165 = vld [vmem:[%s6 + $0x720] sm:$0xff]
        %v2166 = vld [vmem:[%s6 + $0x728] sm:$0xff]
        %v2167 = vld [vmem:[%s6 + $0x730] sm:$0xff]
        %v2168 = vld [vmem:[%s6 + $0x738] sm:$0xff]
        %v2169 = vld [vmem:[%s6 + $0x740] sm:$0xff]
        %v2170 = vld [vmem:[%s6 + $0x748] sm:$0xff]
        %v2171 = vld [vmem:[%s6 + $0x750] sm:$0xff]
        %v2172 = vld [vmem:[%s6 + $0x758] sm:$0xff]
        %v2173 = vld [vmem:[%s6 + $0x760] sm:$0xff]
        %v2174 = vld [vmem:[%s6 + $0x768] sm:$0xff]
        %v2175 = vld [vmem:[%s6 + $0x770] sm:$0xff]
        %v2176 = vld [vmem:[%s6 + $0x778] sm:$0xff]
        %v2177 = vld [vmem:[%s6 + $0x780] sm:$0xff]
        %v2178 = vld [vmem:[%s6 + $0x788] sm:$0xff]
        %v2179 = vld [vmem:[%s6 + $0x790] sm:$0xff]
        %v2180 = vld [vmem:[%s6 + $0x798] sm:$0xff]
        %v2181 = vld [vmem:[%s6 + $0x7a0] sm:$0xff]
        %v2182 = vld [vmem:[%s6 + $0x7a8] sm:$0xff]
        %v2183 = vld [vmem:[%s6 + $0x7b0] sm:$0xff]
        %v2184 = vld [vmem:[%s6 + $0x7b8] sm:$0xff]
        %v2185 = vld [vmem:[%s6 + $0x7c0] sm:$0xff]
        %v2186 = vld [vmem:[%s6 + $0x7c8] sm:$0xff]
        %v2187 = vld [vmem:[%s6 + $0x7d0] sm:$0xff]
        %v2188 = vld [vmem:[%s6 + $0x7d8] sm:$0xff]
        %v2189 = vld [vmem:[%s6 + $0x7e0] sm:$0xff]
        %v2190 = vld [vmem:[%s6 + $0x7e8] sm:$0xff]
        %v2191 = vld [vmem:[%s6 + $0x7f0] sm:$0xff]
        %v2192 = vld [vmem:[%s6 + $0x7f8] sm:$0xff]
        %2193 = vmatprep.subr.mxu0 0.0
        %2194 = vmatpush1.msra.mxu0 %v1937
        %2195 = vmatprep.subr.mxu0 0.0
        %2196 = vmatpush1.msra.mxu0 %v1938
        %2197 = vmatprep.subr.mxu0 0.0
        %2198 = vmatpush1.msra.mxu0 %v1939
        %2199 = vmatprep.subr.mxu0 0.0
        %2200 = vmatpush1.msra.mxu0 %v1940
        %2201 = vmatprep.subr.mxu0 0.0
        %2202 = vmatpush1.msra.mxu0 %v1941
        %2203 = vmatprep.subr.mxu0 0.0
        %2204 = vmatpush1.msra.mxu0 %v1942
        %2205 = vmatprep.subr.mxu0 0.0
        %2206 = vmatpush1.msra.mxu0 %v1943
        %2207 = vmatprep.subr.mxu0 0.0
        %2208 = vmatpush1.msra.mxu0 %v1944
        %2209 = vmatprep.subr.mxu0 0.0
        %2210 = vmatpush1.msra.mxu0 %v1945
        %2211 = vmatprep.subr.mxu0 0.0
        %2212 = vmatpush1.msra.mxu0 %v1946
        %2213 = vmatprep.subr.mxu0 0.0
        %2214 = vmatpush1.msra.mxu0 %v1947
        %2215 = vmatprep.subr.mxu0 0.0
        %2216 = vmatpush1.msra.mxu0 %v1948
        %2217 = vmatprep.subr.mxu0 0.0
        %2218 = vmatpush1.msra.mxu0 %v1949
        %2219 = vmatprep.subr.mxu0 0.0
        %2220 = vmatpush1.msra.mxu0 %v1950
        %2221 = vmatprep.subr.mxu0 0.0
        %2222 = vmatpush1.msra.mxu0 %v1951
        %2223 = vmatprep.subr.mxu0 0.0
        %2224 = vmatpush1.msra.mxu0 %v1952
        %2225 = vmatprep.subr.mxu0 0.0
        %2226 = vmatpush1.msra.mxu0 %v1953
        %2227 = vmatprep.subr.mxu0 0.0
        %2228 = vmatpush1.msra.mxu0 %v1954
        %2229 = vmatprep.subr.mxu0 0.0
        %2230 = vmatpush1.msra.mxu0 %v1955
        %2231 = vmatprep.subr.mxu0 0.0
        %2232 = vmatpush1.msra.mxu0 %v1956
        %2233 = vmatprep.subr.mxu0 0.0
        %2234 = vmatpush1.msra.mxu0 %v1957
        %2235 = vmatprep.subr.mxu0 0.0
        %2236 = vmatpush1.msra.mxu0 %v1958
        %2237 = vmatprep.subr.mxu0 0.0
        %2238 = vmatpush1.msra.mxu0 %v1959
        %2239 = vmatprep.subr.mxu0 0.0
        %2240 = vmatpush1.msra.mxu0 %v1960
        %2241 = vmatprep.subr.mxu0 0.0
        %2242 = vmatpush1.msra.mxu0 %v1961
        %2243 = vmatprep.subr.mxu0 0.0
        %2244 = vmatpush1.msra.mxu0 %v1962
        %2245 = vmatprep.subr.mxu0 0.0
        %2246 = vmatpush1.msra.mxu0 %v1963
        %2247 = vmatprep.subr.mxu0 0.0
        %2248 = vmatpush1.msra.mxu0 %v1964
        %2249 = vmatprep.subr.mxu0 0.0
        %2250 = vmatpush1.msra.mxu0 %v1965
        %2251 = vmatprep.subr.mxu0 0.0
        %2252 = vmatpush1.msra.mxu0 %v1966
        %2253 = vmatprep.subr.mxu0 0.0
        %2254 = vmatpush1.msra.mxu0 %v1967
        %2255 = vmatprep.subr.mxu0 0.0
        %2256 = vmatpush1.msra.mxu0 %v1968
        %2257 = vmatprep.mubr.f32.mxu0 %v1922
        %2258 = vmatmul.mubr.f32.gmra.mrb[0].mxu0 %v1921
        %v2259 = vpop.f32.mrb[0].mxu0
        %v2260 = vadd.f32 %v310, %v2259
        %v2261 = vpop.f32.mrb[0].mxu0
        %2262 = vdwg.mxu0
        %2263 = vmatprep.subr.mxu0 0.0
        %2264 = vmatpush1.msra.mxu0 %v1969
        %2265 = vmatprep.subr.mxu0 0.0
        %2266 = vmatpush1.msra.mxu0 %v1970
        %2267 = vmatprep.subr.mxu0 0.0
        %2268 = vmatpush1.msra.mxu0 %v1971
        %2269 = vmatprep.subr.mxu0 0.0
        %2270 = vmatpush1.msra.mxu0 %v1972
        %2271 = vmatprep.subr.mxu0 0.0
        %2272 = vmatpush1.msra.mxu0 %v1973
        %2273 = vmatprep.subr.mxu0 0.0
        %2274 = vmatpush1.msra.mxu0 %v1974
        %2275 = vmatprep.subr.mxu0 0.0
        %2276 = vmatpush1.msra.mxu0 %v1975
        %2277 = vmatprep.subr.mxu0 0.0
        %2278 = vmatpush1.msra.mxu0 %v1976
        %2279 = vmatprep.subr.mxu0 0.0
        %2280 = vmatpush1.msra.mxu0 %v1977
        %2281 = vmatprep.subr.mxu0 0.0
        %2282 = vmatpush1.msra.mxu0 %v1978
        %2283 = vmatprep.subr.mxu0 0.0
        %2284 = vmatpush1.msra.mxu0 %v1979
        %2285 = vmatprep.subr.mxu0 0.0
        %2286 = vmatpush1.msra.mxu0 %v1980
        %2287 = vmatprep.subr.mxu0 0.0
        %2288 = vmatpush1.msra.mxu0 %v1981
        %2289 = vmatprep.subr.mxu0 0.0
        %2290 = vmatpush1.msra.mxu0 %v1982
        %2291 = vmatprep.subr.mxu0 0.0
        %2292 = vmatpush1.msra.mxu0 %v1983
        %2293 = vmatprep.subr.mxu0 0.0
        %2294 = vmatpush1.msra.mxu0 %v1984
        %2295 = vmatprep.subr.mxu0 0.0
        %2296 = vmatpush1.msra.mxu0 %v1985
        %2297 = vmatprep.subr.mxu0 0.0
        %2298 = vmatpush1.msra.mxu0 %v1986
        %2299 = vmatprep.subr.mxu0 0.0
        %2300 = vmatpush1.msra.mxu0 %v1987
        %2301 = vmatprep.subr.mxu0 0.0
        %2302 = vmatpush1.msra.mxu0 %v1988
        %2303 = vmatprep.subr.mxu0 0.0
        %2304 = vmatpush1.msra.mxu0 %v1989
        %2305 = vmatprep.subr.mxu0 0.0
        %2306 = vmatpush1.msra.mxu0 %v1990
        %2307 = vmatprep.subr.mxu0 0.0
        %2308 = vmatpush1.msra.mxu0 %v1991
        %2309 = vmatprep.subr.mxu0 0.0
        %2310 = vmatpush1.msra.mxu0 %v1992
        %2311 = vmatprep.subr.mxu0 0.0
        %2312 = vmatpush1.msra.mxu0 %v1993
        %2313 = vmatprep.subr.mxu0 0.0
        %2314 = vmatpush1.msra.mxu0 %v1994
        %2315 = vmatprep.subr.mxu0 0.0
        %2316 = vmatpush1.msra.mxu0 %v1995
        %2317 = vmatprep.subr.mxu0 0.0
        %2318 = vmatpush1.msra.mxu0 %v1996
        %2319 = vmatprep.subr.mxu0 0.0
        %2320 = vmatpush1.msra.mxu0 %v1997
        %2321 = vmatprep.subr.mxu0 0.0
        %2322 = vmatpush1.msra.mxu0 %v1998
        %2323 = vmatprep.subr.mxu0 0.0
        %2324 = vmatpush1.msra.mxu0 %v1999
        %2325 = vmatprep.subr.mxu0 0.0
        %2326 = vmatpush1.msra.mxu0 %v2000
        %2327 = vmatprep.mubr.f32.mxu0 %v1924
        %2328 = vmatmul.mubr.f32.gmra.mrb[0].mxu0 %v1923
        %v2329 = vpop.f32.mrb[0].mxu0
        %v2330 = vadd.f32 %v2260, %v2329
        %v2331 = vpop.f32.mrb[0].mxu0
        %2332 = vdwg.mxu0
        %2333 = vmatprep.subr.mxu0 0.0
        %2334 = vmatpush1.msra.mxu0 %v2001
        %2335 = vmatprep.subr.mxu0 0.0
        %2336 = vmatpush1.msra.mxu0 %v2002
        %2337 = vmatprep.subr.mxu0 0.0
        %2338 = vmatpush1.msra.mxu0 %v2003
        %2339 = vmatprep.subr.mxu0 0.0
        %2340 = vmatpush1.msra.mxu0 %v2004
        %2341 = vmatprep.subr.mxu0 0.0
        %2342 = vmatpush1.msra.mxu0 %v2005
        %2343 = vmatprep.subr.mxu0 0.0
        %2344 = vmatpush1.msra.mxu0 %v2006
        %2345 = vmatprep.subr.mxu0 0.0
        %2346 = vmatpush1.msra.mxu0 %v2007
        %2347 = vmatprep.subr.mxu0 0.0
        %2348 = vmatpush1.msra.mxu0 %v2008
        %2349 = vmatprep.subr.mxu0 0.0
        %2350 = vmatpush1.msra.mxu0 %v2009
        %2351 = vmatprep.subr.mxu0 0.0
        %2352 = vmatpush1.msra.mxu0 %v2010
        %2353 = vmatprep.subr.mxu0 0.0
        %2354 = vmatpush1.msra.mxu0 %v2011
        %2355 = vmatprep.subr.mxu0 0.0
        %2356 = vmatpush1.msra.mxu0 %v2012
        %2357 = vmatprep.subr.mxu0 0.0
        %2358 = vmatpush1.msra.mxu0 %v2013
        %2359 = vmatprep.subr.mxu0 0.0
        %2360 = vmatpush1.msra.mxu0 %v2014
        %2361 = vmatprep.subr.mxu0 0.0
        %2362 = vmatpush1.msra.mxu0 %v2015
        %2363 = vmatprep.subr.mxu0 0.0
        %2364 = vmatpush1.msra.mxu0 %v2016
        %2365 = vmatprep.subr.mxu0 0.0
        %2366 = vmatpush1.msra.mxu0 %v2017
        %2367 = vmatprep.subr.mxu0 0.0
        %2368 = vmatpush1.msra.mxu0 %v2018
        %2369 = vmatprep.subr.mxu0 0.0
        %2370 = vmatpush1.msra.mxu0 %v2019
        %2371 = vmatprep.subr.mxu0 0.0
        %2372 = vmatpush1.msra.mxu0 %v2020
        %2373 = vmatprep.subr.mxu0 0.0
        %2374 = vmatpush1.msra.mxu0 %v2021
        %2375 = vmatprep.subr.mxu0 0.0
        %2376 = vmatpush1.msra.mxu0 %v2022
        %2377 = vmatprep.subr.mxu0 0.0
        %2378 = vmatpush1.msra.mxu0 %v2023
        %2379 = vmatprep.subr.mxu0 0.0
        %2380 = vmatpush1.msra.mxu0 %v2024
        %2381 = vmatprep.subr.mxu0 0.0
        %2382 = vmatpush1.msra.mxu0 %v2025
        %2383 = vmatprep.subr.mxu0 0.0
        %2384 = vmatpush1.msra.mxu0 %v2026
        %2385 = vmatprep.subr.mxu0 0.0
        %2386 = vmatpush1.msra.mxu0 %v2027
        %2387 = vmatprep.subr.mxu0 0.0
        %2388 = vmatpush1.msra.mxu0 %v2028
        %2389 = vmatprep.subr.mxu0 0.0
        %2390 = vmatpush1.msra.mxu0 %v2029
        %2391 = vmatprep.subr.mxu0 0.0
        %2392 = vmatpush1.msra.mxu0 %v2030
        %2393 = vmatprep.subr.mxu0 0.0
        %2394 = vmatpush1.msra.mxu0 %v2031
        %2395 = vmatprep.subr.mxu0 0.0
        %2396 = vmatpush1.msra.mxu0 %v2032
        %2397 = vmatprep.mubr.f32.mxu0 %v1926
        %2398 = vmatmul.mubr.f32.gmra.mrb[0].mxu0 %v1925
        %v2399 = vpop.f32.mrb[0].mxu0
        %v2400 = vadd.f32 %v2330, %v2399
        %v2401 = vpop.f32.mrb[0].mxu0
        %2402 = vdwg.mxu0
        %2403 = vmatprep.subr.mxu0 0.0
        %2404 = vmatpush1.msra.mxu0 %v2033
        %2405 = vmatprep.subr.mxu0 0.0
        %2406 = vmatpush1.msra.mxu0 %v2034
        %2407 = vmatprep.subr.mxu0 0.0
        %2408 = vmatpush1.msra.mxu0 %v2035
        %2409 = vmatprep.subr.mxu0 0.0
        %2410 = vmatpush1.msra.mxu0 %v2036
        %2411 = vmatprep.subr.mxu0 0.0
        %2412 = vmatpush1.msra.mxu0 %v2037
        %2413 = vmatprep.subr.mxu0 0.0
        %2414 = vmatpush1.msra.mxu0 %v2038
        %2415 = vmatprep.subr.mxu0 0.0
        %2416 = vmatpush1.msra.mxu0 %v2039
        %2417 = vmatprep.subr.mxu0 0.0
        %2418 = vmatpush1.msra.mxu0 %v2040
        %2419 = vmatprep.subr.mxu0 0.0
        %2420 = vmatpush1.msra.mxu0 %v2041
        %2421 = vmatprep.subr.mxu0 0.0
        %2422 = vmatpush1.msra.mxu0 %v2042
        %2423 = vmatprep.subr.mxu0 0.0
        %2424 = vmatpush1.msra.mxu0 %v2043
        %2425 = vmatprep.subr.mxu0 0.0
        %2426 = vmatpush1.msra.mxu0 %v2044
        %2427 = vmatprep.subr.mxu0 0.0
        %2428 = vmatpush1.msra.mxu0 %v2045
        %2429 = vmatprep.subr.mxu0 0.0
        %2430 = vmatpush1.msra.mxu0 %v2046
        %2431 = vmatprep.subr.mxu0 0.0
        %2432 = vmatpush1.msra.mxu0 %v2047
        %2433 = vmatprep.subr.mxu0 0.0
        %2434 = vmatpush1.msra.mxu0 %v2048
        %2435 = vmatprep.subr.mxu0 0.0
        %2436 = vmatpush1.msra.mxu0 %v2049
        %2437 = vmatprep.subr.mxu0 0.0
        %2438 = vmatpush1.msra.mxu0 %v2050
        %2439 = vmatprep.subr.mxu0 0.0
        %2440 = vmatpush1.msra.mxu0 %v2051
        %2441 = vmatprep.subr.mxu0 0.0
        %2442 = vmatpush1.msra.mxu0 %v2052
        %2443 = vmatprep.subr.mxu0 0.0
        %2444 = vmatpush1.msra.mxu0 %v2053
        %2445 = vmatprep.subr.mxu0 0.0
        %2446 = vmatpush1.msra.mxu0 %v2054
        %2447 = vmatprep.subr.mxu0 0.0
        %2448 = vmatpush1.msra.mxu0 %v2055
        %2449 = vmatprep.subr.mxu0 0.0
        %2450 = vmatpush1.msra.mxu0 %v2056
        %2451 = vmatprep.subr.mxu0 0.0
        %2452 = vmatpush1.msra.mxu0 %v2057
        %2453 = vmatprep.subr.mxu0 0.0
        %2454 = vmatpush1.msra.mxu0 %v2058
        %2455 = vmatprep.subr.mxu0 0.0
        %2456 = vmatpush1.msra.mxu0 %v2059
        %2457 = vmatprep.subr.mxu0 0.0
        %2458 = vmatpush1.msra.mxu0 %v2060
        %2459 = vmatprep.subr.mxu0 0.0
        %2460 = vmatpush1.msra.mxu0 %v2061
        %2461 = vmatprep.subr.mxu0 0.0
        %2462 = vmatpush1.msra.mxu0 %v2062
        %2463 = vmatprep.subr.mxu0 0.0
        %2464 = vmatpush1.msra.mxu0 %v2063
        %2465 = vmatprep.subr.mxu0 0.0
        %2466 = vmatpush1.msra.mxu0 %v2064
        %2467 = vmatprep.mubr.f32.mxu0 %v1928
        %2468 = vmatmul.mubr.f32.gmra.mrb[0].mxu0 %v1927
        %v2469 = vpop.f32.mrb[0].mxu0
        %v2470 = vadd.f32 %v2400, %v2469
        %v2471 = vpop.f32.mrb[0].mxu0
        %2472 = vdwg.mxu0
        %2473 = vmatprep.subr.mxu0 0.0
        %2474 = vmatpush1.msra.mxu0 %v2065
        %2475 = vmatprep.subr.mxu0 0.0
        %2476 = vmatpush1.msra.mxu0 %v2066
        %2477 = vmatprep.subr.mxu0 0.0
        %2478 = vmatpush1.msra.mxu0 %v2067
        %2479 = vmatprep.subr.mxu0 0.0
        %2480 = vmatpush1.msra.mxu0 %v2068
        %2481 = vmatprep.subr.mxu0 0.0
        %2482 = vmatpush1.msra.mxu0 %v2069
        %2483 = vmatprep.subr.mxu0 0.0
        %2484 = vmatpush1.msra.mxu0 %v2070
        %2485 = vmatprep.subr.mxu0 0.0
        %2486 = vmatpush1.msra.mxu0 %v2071
        %2487 = vmatprep.subr.mxu0 0.0
        %2488 = vmatpush1.msra.mxu0 %v2072
        %2489 = vmatprep.subr.mxu0 0.0
        %2490 = vmatpush1.msra.mxu0 %v2073
        %2491 = vmatprep.subr.mxu0 0.0
        %2492 = vmatpush1.msra.mxu0 %v2074
        %2493 = vmatprep.subr.mxu0 0.0
        %2494 = vmatpush1.msra.mxu0 %v2075
        %2495 = vmatprep.subr.mxu0 0.0
        %2496 = vmatpush1.msra.mxu0 %v2076
        %2497 = vmatprep.subr.mxu0 0.0
        %2498 = vmatpush1.msra.mxu0 %v2077
        %2499 = vmatprep.subr.mxu0 0.0
        %2500 = vmatpush1.msra.mxu0 %v2078
        %2501 = vmatprep.subr.mxu0 0.0
        %2502 = vmatpush1.msra.mxu0 %v2079
        %2503 = vmatprep.subr.mxu0 0.0
        %2504 = vmatpush1.msra.mxu0 %v2080
        %2505 = vmatprep.subr.mxu0 0.0
        %2506 = vmatpush1.msra.mxu0 %v2081
        %2507 = vmatprep.subr.mxu0 0.0
        %2508 = vmatpush1.msra.mxu0 %v2082
        %2509 = vmatprep.subr.mxu0 0.0
        %2510 = vmatpush1.msra.mxu0 %v2083
        %2511 = vmatprep.subr.mxu0 0.0
        %2512 = vmatpush1.msra.mxu0 %v2084
        %2513 = vmatprep.subr.mxu0 0.0
        %2514 = vmatpush1.msra.mxu0 %v2085
        %2515 = vmatprep.subr.mxu0 0.0
        %2516 = vmatpush1.msra.mxu0 %v2086
        %2517 = vmatprep.subr.mxu0 0.0
        %2518 = vmatpush1.msra.mxu0 %v2087
        %2519 = vmatprep.subr.mxu0 0.0
        %2520 = vmatpush1.msra.mxu0 %v2088
        %2521 = vmatprep.subr.mxu0 0.0
        %2522 = vmatpush1.msra.mxu0 %v2089
        %2523 = vmatprep.subr.mxu0 0.0
        %2524 = vmatpush1.msra.mxu0 %v2090
        %2525 = vmatprep.subr.mxu0 0.0
        %2526 = vmatpush1.msra.mxu0 %v2091
        %2527 = vmatprep.subr.mxu0 0.0
        %2528 = vmatpush1.msra.mxu0 %v2092
        %2529 = vmatprep.subr.mxu0 0.0
        %2530 = vmatpush1.msra.mxu0 %v2093
        %2531 = vmatprep.subr.mxu0 0.0
        %2532 = vmatpush1.msra.mxu0 %v2094
        %2533 = vmatprep.subr.mxu0 0.0
        %2534 = vmatpush1.msra.mxu0 %v2095
        %2535 = vmatprep.subr.mxu0 0.0
        %2536 = vmatpush1.msra.mxu0 %v2096
        %2537 = vmatprep.mubr.f32.mxu0 %v1930
        %2538 = vmatmul.mubr.f32.gmra.mrb[0].mxu0 %v1929
        %v2539 = vpop.f32.mrb[0].mxu0
        %v2540 = vadd.f32 %v2470, %v2539
        %v2541 = vpop.f32.mrb[0].mxu0
        %2542 = vdwg.mxu0
        %2543 = vmatprep.subr.mxu0 0.0
        %2544 = vmatpush1.msra.mxu0 %v2097
        %2545 = vmatprep.subr.mxu0 0.0
        %2546 = vmatpush1.msra.mxu0 %v2098
        %2547 = vmatprep.subr.mxu0 0.0
        %2548 = vmatpush1.msra.mxu0 %v2099
        %2549 = vmatprep.subr.mxu0 0.0
        %2550 = vmatpush1.msra.mxu0 %v2100
        %2551 = vmatprep.subr.mxu0 0.0
        %2552 = vmatpush1.msra.mxu0 %v2101
        %2553 = vmatprep.subr.mxu0 0.0
        %2554 = vmatpush1.msra.mxu0 %v2102
        %2555 = vmatprep.subr.mxu0 0.0
        %2556 = vmatpush1.msra.mxu0 %v2103
        %2557 = vmatprep.subr.mxu0 0.0
        %2558 = vmatpush1.msra.mxu0 %v2104
        %2559 = vmatprep.subr.mxu0 0.0
        %2560 = vmatpush1.msra.mxu0 %v2105
        %2561 = vmatprep.subr.mxu0 0.0
        %2562 = vmatpush1.msra.mxu0 %v2106
        %2563 = vmatprep.subr.mxu0 0.0
        %2564 = vmatpush1.msra.mxu0 %v2107
        %2565 = vmatprep.subr.mxu0 0.0
        %2566 = vmatpush1.msra.mxu0 %v2108
        %2567 = vmatprep.subr.mxu0 0.0
        %2568 = vmatpush1.msra.mxu0 %v2109
        %2569 = vmatprep.subr.mxu0 0.0
        %2570 = vmatpush1.msra.mxu0 %v2110
        %2571 = vmatprep.subr.mxu0 0.0
        %2572 = vmatpush1.msra.mxu0 %v2111
        %2573 = vmatprep.subr.mxu0 0.0
        %2574 = vmatpush1.msra.mxu0 %v2112
        %2575 = vmatprep.subr.mxu0 0.0
        %2576 = vmatpush1.msra.mxu0 %v2113
        %2577 = vmatprep.subr.mxu0 0.0
        %2578 = vmatpush1.msra.mxu0 %v2114
        %2579 = vmatprep.subr.mxu0 0.0
        %2580 = vmatpush1.msra.mxu0 %v2115
        %2581 = vmatprep.subr.mxu0 0.0
        %2582 = vmatpush1.msra.mxu0 %v2116
        %2583 = vmatprep.subr.mxu0 0.0
        %2584 = vmatpush1.msra.mxu0 %v2117
        %2585 = vmatprep.subr.mxu0 0.0
        %2586 = vmatpush1.msra.mxu0 %v2118
        %2587 = vmatprep.subr.mxu0 0.0
        %2588 = vmatpush1.msra.mxu0 %v2119
        %2589 = vmatprep.subr.mxu0 0.0
        %2590 = vmatpush1.msra.mxu0 %v2120
        %2591 = vmatprep.subr.mxu0 0.0
        %2592 = vmatpush1.msra.mxu0 %v2121
        %2593 = vmatprep.subr.mxu0 0.0
        %2594 = vmatpush1.msra.mxu0 %v2122
        %2595 = vmatprep.subr.mxu0 0.0
        %2596 = vmatpush1.msra.mxu0 %v2123
        %2597 = vmatprep.subr.mxu0 0.0
        %2598 = vmatpush1.msra.mxu0 %v2124
        %2599 = vmatprep.subr.mxu0 0.0
        %2600 = vmatpush1.msra.mxu0 %v2125
        %2601 = vmatprep.subr.mxu0 0.0
        %2602 = vmatpush1.msra.mxu0 %v2126
        %2603 = vmatprep.subr.mxu0 0.0
        %2604 = vmatpush1.msra.mxu0 %v2127
        %2605 = vmatprep.subr.mxu0 0.0
        %2606 = vmatpush1.msra.mxu0 %v2128
        %2607 = vmatprep.mubr.f32.mxu0 %v1932
        %2608 = vmatmul.mubr.f32.gmra.mrb[0].mxu0 %v1931
        %v2609 = vpop.f32.mrb[0].mxu0
        %v2610 = vadd.f32 %v2540, %v2609
        %v2611 = vpop.f32.mrb[0].mxu0
        %2612 = vdwg.mxu0
        %2613 = vmatprep.subr.mxu0 0.0
        %2614 = vmatpush1.msra.mxu0 %v2129
        %2615 = vmatprep.subr.mxu0 0.0
        %2616 = vmatpush1.msra.mxu0 %v2130
        %2617 = vmatprep.subr.mxu0 0.0
        %2618 = vmatpush1.msra.mxu0 %v2131
        %2619 = vmatprep.subr.mxu0 0.0
        %2620 = vmatpush1.msra.mxu0 %v2132
        %2621 = vmatprep.subr.mxu0 0.0
        %2622 = vmatpush1.msra.mxu0 %v2133
        %2623 = vmatprep.subr.mxu0 0.0
        %2624 = vmatpush1.msra.mxu0 %v2134
        %2625 = vmatprep.subr.mxu0 0.0
        %2626 = vmatpush1.msra.mxu0 %v2135
        %2627 = vmatprep.subr.mxu0 0.0
        %2628 = vmatpush1.msra.mxu0 %v2136
        %2629 = vmatprep.subr.mxu0 0.0
        %2630 = vmatpush1.msra.mxu0 %v2137
        %2631 = vmatprep.subr.mxu0 0.0
        %2632 = vmatpush1.msra.mxu0 %v2138
        %2633 = vmatprep.subr.mxu0 0.0
        %2634 = vmatpush1.msra.mxu0 %v2139
        %2635 = vmatprep.subr.mxu0 0.0
        %2636 = vmatpush1.msra.mxu0 %v2140
        %2637 = vmatprep.subr.mxu0 0.0
        %2638 = vmatpush1.msra.mxu0 %v2141
        %2639 = vmatprep.subr.mxu0 0.0
        %2640 = vmatpush1.msra.mxu0 %v2142
        %2641 = vmatprep.subr.mxu0 0.0
        %2642 = vmatpush1.msra.mxu0 %v2143
        %2643 = vmatprep.subr.mxu0 0.0
        %2644 = vmatpush1.msra.mxu0 %v2144
        %2645 = vmatprep.subr.mxu0 0.0
        %2646 = vmatpush1.msra.mxu0 %v2145
        %2647 = vmatprep.subr.mxu0 0.0
        %2648 = vmatpush1.msra.mxu0 %v2146
        %2649 = vmatprep.subr.mxu0 0.0
        %2650 = vmatpush1.msra.mxu0 %v2147
        %2651 = vmatprep.subr.mxu0 0.0
        %2652 = vmatpush1.msra.mxu0 %v2148
        %2653 = vmatprep.subr.mxu0 0.0
        %2654 = vmatpush1.msra.mxu0 %v2149
        %2655 = vmatprep.subr.mxu0 0.0
        %2656 = vmatpush1.msra.mxu0 %v2150
        %2657 = vmatprep.subr.mxu0 0.0
        %2658 = vmatpush1.msra.mxu0 %v2151
        %2659 = vmatprep.subr.mxu0 0.0
        %2660 = vmatpush1.msra.mxu0 %v2152
        %2661 = vmatprep.subr.mxu0 0.0
        %2662 = vmatpush1.msra.mxu0 %v2153
        %2663 = vmatprep.subr.mxu0 0.0
        %2664 = vmatpush1.msra.mxu0 %v2154
        %2665 = vmatprep.subr.mxu0 0.0
        %2666 = vmatpush1.msra.mxu0 %v2155
        %2667 = vmatprep.subr.mxu0 0.0
        %2668 = vmatpush1.msra.mxu0 %v2156
        %2669 = vmatprep.subr.mxu0 0.0
        %2670 = vmatpush1.msra.mxu0 %v2157
        %2671 = vmatprep.subr.mxu0 0.0
        %2672 = vmatpush1.msra.mxu0 %v2158
        %2673 = vmatprep.subr.mxu0 0.0
        %2674 = vmatpush1.msra.mxu0 %v2159
        %2675 = vmatprep.subr.mxu0 0.0
        %2676 = vmatpush1.msra.mxu0 %v2160
        %2677 = vmatprep.mubr.f32.mxu0 %v1934
        %2678 = vmatmul.mubr.f32.gmra.mrb[0].mxu0 %v1933
        %v2679 = vpop.f32.mrb[0].mxu0
        %v2680 = vadd.f32 %v2610, %v2679
        %v2681 = vpop.f32.mrb[0].mxu0
        %2682 = vdwg.mxu0
        %2683 = vmatprep.subr.mxu0 0.0
        %2684 = vmatpush1.msra.mxu0 %v2161
        %2685 = vmatprep.subr.mxu0 0.0
        %2686 = vmatpush1.msra.mxu0 %v2162
        %2687 = vmatprep.subr.mxu0 0.0
        %2688 = vmatpush1.msra.mxu0 %v2163
        %2689 = vmatprep.subr.mxu0 0.0
        %2690 = vmatpush1.msra.mxu0 %v2164
        %2691 = vmatprep.subr.mxu0 0.0
        %2692 = vmatpush1.msra.mxu0 %v2165
        %2693 = vmatprep.subr.mxu0 0.0
        %2694 = vmatpush1.msra.mxu0 %v2166
        %2695 = vmatprep.subr.mxu0 0.0
        %2696 = vmatpush1.msra.mxu0 %v2167
        %2697 = vmatprep.subr.mxu0 0.0
        %2698 = vmatpush1.msra.mxu0 %v2168
        %2699 = vmatprep.subr.mxu0 0.0
        %2700 = vmatpush1.msra.mxu0 %v2169
        %2701 = vmatprep.subr.mxu0 0.0
        %2702 = vmatpush1.msra.mxu0 %v2170
        %2703 = vmatprep.subr.mxu0 0.0
        %2704 = vmatpush1.msra.mxu0 %v2171
        %2705 = vmatprep.subr.mxu0 0.0
        %2706 = vmatpush1.msra.mxu0 %v2172
        %2707 = vmatprep.subr.mxu0 0.0
        %2708 = vmatpush1.msra.mxu0 %v2173
        %2709 = vmatprep.subr.mxu0 0.0
        %2710 = vmatpush1.msra.mxu0 %v2174
        %2711 = vmatprep.subr.mxu0 0.0
        %2712 = vmatpush1.msra.mxu0 %v2175
        %2713 = vmatprep.subr.mxu0 0.0
        %2714 = vmatpush1.msra.mxu0 %v2176
        %2715 = vmatprep.subr.mxu0 0.0
        %2716 = vmatpush1.msra.mxu0 %v2177
        %2717 = vmatprep.subr.mxu0 0.0
        %2718 = vmatpush1.msra.mxu0 %v2178
        %2719 = vmatprep.subr.mxu0 0.0
        %2720 = vmatpush1.msra.mxu0 %v2179
        %2721 = vmatprep.subr.mxu0 0.0
        %2722 = vmatpush1.msra.mxu0 %v2180
        %2723 = vmatprep.subr.mxu0 0.0
        %2724 = vmatpush1.msra.mxu0 %v2181
        %2725 = vmatprep.subr.mxu0 0.0
        %2726 = vmatpush1.msra.mxu0 %v2182
        %2727 = vmatprep.subr.mxu0 0.0
        %2728 = vmatpush1.msra.mxu0 %v2183
        %2729 = vmatprep.subr.mxu0 0.0
        %2730 = vmatpush1.msra.mxu0 %v2184
        %2731 = vmatprep.subr.mxu0 0.0
        %2732 = vmatpush1.msra.mxu0 %v2185
        %2733 = vmatprep.subr.mxu0 0.0
        %2734 = vmatpush1.msra.mxu0 %v2186
        %2735 = vmatprep.subr.mxu0 0.0
        %2736 = vmatpush1.msra.mxu0 %v2187
        %2737 = vmatprep.subr.mxu0 0.0
        %2738 = vmatpush1.msra.mxu0 %v2188
        %2739 = vmatprep.subr.mxu0 0.0
        %2740 = vmatpush1.msra.mxu0 %v2189
        %2741 = vmatprep.subr.mxu0 0.0
        %2742 = vmatpush1.msra.mxu0 %v2190
        %2743 = vmatprep.subr.mxu0 0.0
        %2744 = vmatpush1.msra.mxu0 %v2191
        %2745 = vmatprep.subr.mxu0 0.0
        %2746 = vmatpush1.msra.mxu0 %v2192
        %2747 = vmatprep.mubr.f32.mxu0 %v1936
        %2748 = vmatmul.mubr.f32.gmra.mrb[0].mxu0 %v1935
        %v2749 = vpop.f32.mrb[0].mxu0
        %v2750 = vadd.f32 %v2680, %v2749
        %v2751 = vpop.f32.mrb[0].mxu0
        %2752 = vdwg.mxu0
        %v2753 = vadd.f32 %v1195, %v2750
        %v2754 = vsel %vm1179, %v2753, 0.0
        %2755 = vadd.xlane.f32.xlu0 %v2754
        %v2756 = vpop.xlane.xlu0 %2755
        %v2757 = vmul.f32 %v2756, %v1183
        %v2758 = vsub.f32 %v2753, %v2757
        %v2759 = vmul.f32 %v2758, %v2758
        %v2760 = vsel %vm1179, %v2759, 0.0
        %2761 = vadd.xlane.f32.xlu0 %v2760
        %v2762 = vpop.xlane.xlu0 %2761
        %v2763 = vmul.f32 %v2762, %v1183
        %v2764 = vadd.f32 %v2763, 1e-05
        %v2765 = vrsqrt.pop %v2764
        %v2766 = vmul.f32 %v2758, %v2765
        %v2767 = vmul.f32 %v2766, %v311
        %v2768 = vadd.f32 %v2767, %v312
        %v2769 = vld [vmem:[%s7] sm:$0xff]
        %v2770 = vld [vmem:[%s7 + $0x8] sm:$0xff]
        %v2771 = vld [vmem:[%s7 + $0x10] sm:$0xff]
        %v2772 = vld [vmem:[%s7 + $0x18] sm:$0xff]
        %v2773 = vld [vmem:[%s7 + $0x20] sm:$0x1]
        %v2775 = vsel %vm357, %v2768, 0
        %2777 = vmatprep.subr.mxu0 0.0
        %2778 = vmatpush1.msra.mxu0 %v2769
        %2779 = vmatprep.subr.mxu0 0.0
        %2780 = vmatpush1.msra.mxu0 %v2770
        %2781 = vmatprep.subr.mxu0 0.0
        %2782 = vmatpush1.msra.mxu0 %v2771
        %2783 = vmatprep.subr.mxu0 0.0
        %2784 = vmatpush1.msra.mxu0 %v2772
        %2785 = vmatprep.subr.mxu0 0.0
        %2786 = vmatpush1.msra.mxu0 0.0
        %2787 = vmatprep.subr.mxu0 0.0
        %2788 = vmatpush1.msra.mxu0 0.0
        %2789 = vmatprep.subr.mxu0 0.0
        %2790 = vmatpush1.msra.mxu0 0.0
        %2791 = vmatprep.subr.mxu0 0.0
        %2792 = vmatpush1.msra.mxu0 0.0
        %2793 = vmatprep.subr.mxu0 0.0
        %2794 = vmatpush1.msra.mxu0 0.0
        %2795 = vmatprep.subr.mxu0 0.0
        %2796 = vmatpush1.msra.mxu0 0.0
        %2797 = vmatprep.subr.mxu0 0.0
        %2798 = vmatpush1.msra.mxu0 0.0
        %2799 = vmatprep.subr.mxu0 0.0
        %2800 = vmatpush1.msra.mxu0 0.0
        %2801 = vmatprep.subr.mxu0 0.0
        %2802 = vmatpush1.msra.mxu0 0.0
        %2803 = vmatprep.subr.mxu0 0.0
        %2804 = vmatpush1.msra.mxu0 0.0
        %2805 = vmatprep.subr.mxu0 0.0
        %2806 = vmatpush1.msra.mxu0 0.0
        %2807 = vmatprep.subr.mxu0 0.0
        %2808 = vmatpush1.msra.mxu0 0.0
        %2809 = vmatprep.subr.mxu0 0.0
        %2810 = vmatpush1.msra.mxu0 0.0
        %2811 = vmatprep.subr.mxu0 0.0
        %2812 = vmatpush1.msra.mxu0 0.0
        %2813 = vmatprep.subr.mxu0 0.0
        %2814 = vmatpush1.msra.mxu0 0.0
        %2815 = vmatprep.subr.mxu0 0.0
        %2816 = vmatpush1.msra.mxu0 0.0
        %2817 = vmatprep.subr.mxu0 0.0
        %2818 = vmatpush1.msra.mxu0 0.0
        %2819 = vmatprep.subr.mxu0 0.0
        %2820 = vmatpush1.msra.mxu0 0.0
        %2821 = vmatprep.subr.mxu0 0.0
        %2822 = vmatpush1.msra.mxu0 0.0
        %2823 = vmatprep.subr.mxu0 0.0
        %2824 = vmatpush1.msra.mxu0 0.0
        %2825 = vmatprep.subr.mxu0 0.0
        %2826 = vmatpush1.msra.mxu0 0.0
        %2827 = vmatprep.subr.mxu0 0.0
        %2828 = vmatpush1.msra.mxu0 0.0
        %2829 = vmatprep.subr.mxu0 0.0
        %2830 = vmatpush1.msra.mxu0 0.0
        %2831 = vmatprep.subr.mxu0 0.0
        %2832 = vmatpush1.msra.mxu0 0.0
        %2833 = vmatprep.subr.mxu0 0.0
        %2834 = vmatpush1.msra.mxu0 0.0
        %2835 = vmatprep.subr.mxu0 0.0
        %2836 = vmatpush1.msra.mxu0 0.0
        %2837 = vmatprep.subr.mxu0 0.0
        %2838 = vmatpush1.msra.mxu0 0.0
        %2839 = vmatprep.subr.mxu0 0.0
        %2840 = vmatpush1.msra.mxu0 0.0
        %2841 = vmatprep.mubr.f32.mxu0 0.0
        %2842 = vmatmul.mubr.f32.gmra.mrb[0].mxu0 %v2775
        %v2843 = vpop.f32.mrb[0].mxu0
        %v2844 = vadd.f32 %v2773, %v2843
        %v2845 = vpop.f32.mrb[0].mxu0
        %2846 = vdwg.mxu0
        %2847 = vst [vmem:[%s297] sm:$0x1] %v2844
        %s2848 = sand.u32 %s203, 1
        %s2849 = scalar_lea.sflag [#allocation3], %s2848
        %s2850 = sand.u32 %s203, 1
        %s2851 = scalar_lea.vmem [#allocation2], %s2850
        // Predicated region
        $region53: #{transformer_pool_cls.1} parent=51 // pred_check
          %p2852 = pneg %p213
        $region54: #{transformer_pool_cls.1} parent=51 // pred_check_branch
          %2854 = sbr.rel (%p2852) target = $region56
        $region55: #{transformer_pool_cls.1} parent=51 // pred_region
          %s2856 = ssub.s32 16, 16
          %2857 = vsyncadd %s2849, %s2856
          %s2858 = smul.addr %s22, 16
          %s2859 = scalar_lea.hbm %s8, %s2858
          %s2861 = sshll.u32 %s2851, 4
          %s2862 = int_to_ptr.vmem [resolvable:$true] %s2861
          %2864 = dma.vmem_to_hbm [thread:$0]  %s2862, 16, %s2859, %s2849
        $region56: #{transformer_pool_cls.1} parent=51 // pred_fallthru
          _
      $region52: #{transformer_pool_cls.1} parent=5 // pred_fallthru
        _
      %p2865 = scmp.le.s32.totalorder 2, %s17
      // Predicated region
      $region57: #{transformer_pool_cls.1} parent=5 // pred_check
        %p2866 = pneg %p2865
      $region58: #{transformer_pool_cls.1} parent=5 // pred_check_branch
        %2868 = sbr.rel (%p2866) target = $region60
      $region59: #{transformer_pool_cls.1} parent=5 // pred_region
        %s2869 = ssub.s32 %s17, 2
        // Predicated region
        $region61: #{transformer_pool_cls.1} parent=59 // pred_check
          %p2870 = pneg %p219
        $region62: #{transformer_pool_cls.1} parent=59 // pred_check_branch
          %2872 = sbr.rel (%p2870) target = $region64
        $region63: #{transformer_pool_cls.1} parent=59 // pred_region
          %s2873 = sand.u32 %s204, 1
          %s2874 = scalar_lea.sflag [#allocation3], %s2873
          %s2875 = sand.u32 %s204, 1
          %s2876 = scalar_lea.vmem [#allocation2], %s2875
          %2877 = dma.done %s2874, 16
        $region64: #{transformer_pool_cls.1} parent=59 // pred_fallthru
          _
      $region60: #{transformer_pool_cls.1} parent=5 // pred_fallthru
        _
    $region6: #{transformer_pool_cls.1} parent=1 // loop_footer
      %s21 = sadd.s32 1, %s17
    $region7: #{transformer_pool_cls.1} parent=1 // loop_footer_branch
      %16 = sbr.rel target = $region3
    $region8: #{transformer_pool_cls.1} parent=1 // loop_exit
      _
    %2878 = vsyncpa [#allocation3], 1
    %s2879 = scalar_lea.sflag [#allocation3], 1
    %2880 = vsyncpa %s2879, 1

</llo_original>
